<compile_context>
chip_gen: v5e
topology: v5e:2x2
jax: 0.10.0
libtpu: 0.0.40
codegen_flags: <defaults>
</compile_context>

<pallas_src>
import functools

import jax
import jax.numpy as jnp
from jax.experimental import pallas as pl
from jax.experimental.pallas import tpu as pltpu

_K = 7             # SpatialAttention kernel size
_P = _K // 2       # conv padding / halo rows (3)
_HALO_ROWS = 8     # sublane-aligned halo fetch height (>= _P, multiple of 8)
_ROW0 = 8          # sublane-aligned interior row offset inside the scratch pad
_COL0 = 128        # lane-aligned interior col offset inside the scratch pad


def _se_like_fusion_kernel(C1, C2, TH, W,
                           w_ref,
                           stu_ref, dup_ref,
                           stu_ab_ref, dup_ab_ref,
                           stu_be_ref, dup_be_ref,
                           out_ref, pad_ref):
    """Fused se-like DualBevAdaptiveFusion forward for one (batch, row-tile).

    w_ref      : (2*49,) f32 SMEM -- conv taps (first 49 = avg-map, last 49 = max-map)
    stu_ref    : (1, C1, TH, W) VMEM main tile of stu_bev
    dup_ref    : (1, C2, TH, W) VMEM main tile of duplicated_bev
    *_ab_ref   : (1, C, 8, W)  VMEM 8-row block just ABOVE the tile (clamped at h=0)
    *_be_ref   : (1, C, 8, W)  VMEM 8-row block just BELOW the tile (clamped at last h)
    out_ref    : (1, C1+C2, TH, W) VMEM output tile
    pad_ref    : (2, TH+2*_ROW0, _COL0+W+2*_ROW0) f32 VMEM padded [avg, max] maps,
                 interior at (sublane 8, lane 128) so interior stores are aligned.
    """
    h = pl.program_id(1)
    nh = pl.num_programs(1)
    inv_c = 1.0 / float(C1 + C2)

    # ---- channel mean / max of the (virtual) concat for the TH interior rows.
    #      Reductions run straight off the refs; no (C,TH,W) f32 temporaries bound.
    avg = (jnp.sum(stu_ref[0], axis=0, dtype=jnp.float32)
           + jnp.sum(dup_ref[0], axis=0, dtype=jnp.float32)) * inv_c       # (TH, W)
    mx = jnp.maximum(jnp.max(stu_ref[0], axis=0),
                     jnp.max(dup_ref[0], axis=0)).astype(jnp.float32)      # (TH, W)

    # ---- halo rows: 3 above / 3 below, recomputed from the 8-row neighbour fetches.
    #      At the image border they become the conv's zero padding.
    stu_ab = stu_ab_ref[0, :, _HALO_ROWS - _P:, :]                         # (C1, 3, W)
    dup_ab = dup_ab_ref[0, :, _HALO_ROWS - _P:, :]
    ab_avg = (jnp.sum(stu_ab, axis=0, dtype=jnp.float32)
              + jnp.sum(dup_ab, axis=0, dtype=jnp.float32)) * inv_c        # (3, W)
    ab_max = jnp.maximum(jnp.max(stu_ab, axis=0),
                         jnp.max(dup_ab, axis=0)).astype(jnp.float32)

    stu_be = stu_be_ref[0, :, :_P, :]                                      # (C1, 3, W)
    dup_be = dup_be_ref[0, :, :_P, :]
    be_avg = (jnp.sum(stu_be, axis=0, dtype=jnp.float32)
              + jnp.sum(dup_be, axis=0, dtype=jnp.float32)) * inv_c
    be_max = jnp.maximum(jnp.max(stu_be, axis=0),
                         jnp.max(dup_be, axis=0)).astype(jnp.float32)

    has_above = h > 0
    has_below = h < nh - 1
    ab_avg = jnp.where(has_above, ab_avg, 0.0)
    ab_max = jnp.where(has_above, ab_max, 0.0)
    be_avg = jnp.where(has_below, be_avg, 0.0)
    be_max = jnp.where(has_below, be_max, 0.0)

    # ---- write only the conv read footprint of the padded maps:
    #      zero 3-wide left/right strips, top/bottom halo rows, aligned interior.
    zcol = jnp.zeros((TH + 2 * _P, _P), jnp.float32)
    pad_ref[0, _ROW0 - _P:_ROW0 + TH + _P, _COL0 - _P:_COL0] = zcol
    pad_ref[1, _ROW0 - _P:_ROW0 + TH + _P, _COL0 - _P:_COL0] = zcol
    pad_ref[0, _ROW0 - _P:_ROW0 + TH + _P, _COL0 + W:_COL0 + W + _P] = zcol
    pad_ref[1, _ROW0 - _P:_ROW0 + TH + _P, _COL0 + W:_COL0 + W + _P] = zcol

    pad_ref[0, _ROW0 - _P:_ROW0, _COL0:_COL0 + W] = ab_avg
    pad_ref[1, _ROW0 - _P:_ROW0, _COL0:_COL0 + W] = ab_max
    pad_ref[0, _ROW0 + TH:_ROW0 + TH + _P, _COL0:_COL0 + W] = be_avg
    pad_ref[1, _ROW0 + TH:_ROW0 + TH + _P, _COL0:_COL0 + W] = be_max

    pad_ref[0, _ROW0:_ROW0 + TH, _COL0:_COL0 + W] = avg        # aligned interior store
    pad_ref[1, _ROW0:_ROW0 + TH, _COL0:_COL0 + W] = mx

    # ---- 7x7, 2->1 channel, bias-free conv as scalar-tap FMAs on the VPU.
    #      kx outer: one lane-shifted (TH+6, W) slab per kx & channel, then the ky
    #      loop only takes sublane offsets of the pre-shifted slab.
    acc = None
    for kx in range(_K):
        a_slab = pad_ref[0, _ROW0 - _P:_ROW0 + TH + _P,
                         _COL0 - _P + kx:_COL0 - _P + kx + W]              # (TH+6, W)
        m_slab = pad_ref[1, _ROW0 - _P:_ROW0 + TH + _P,
                         _COL0 - _P + kx:_COL0 - _P + kx + W]
        for ky in range(_K):
            term = (w_ref[ky * _K + kx] * a_slab[ky:ky + TH, :]
                    + w_ref[_K * _K + ky * _K + kx] * m_slab[ky:ky + TH, :])
            acc = term if acc is None else acc + term

    attn = jax.nn.sigmoid(acc)                                             # (TH, W) f32

    # ---- out = concat([stu, dup * attn], channel axis); I/O stays in input dtype.
    out_ref[0, 0:C1] = stu_ref[0].astype(out_ref.dtype)
    out_ref[0, C1:C1 + C2] = (dup_ref[0]
                              * attn.astype(dup_ref.dtype)[None, :, :]).astype(out_ref.dtype)


def _auto_tile_rows(H, c_total, W, esize, budget=40 * 1024 * 1024):
    """Largest row-tile (multiple of 8) whose double-buffered blocks fit the budget
    (sized for v7x's 64 MiB physical VMEM with headroom) and that divides H rounded
    up to a multiple of 8 (so no extra padding when H % 8 == 0)."""
    cap = 8
    for cand in (256, 128, 64, 32, 16, 8):
        per_step = esize * W * c_total * (2 * cand + 2 * _HALO_ROWS)
        if 2 * per_step <= budget:
            cap = cand
            break
    h8 = ((H + 7) // 8) * 8
    cap = max(8, min(cap, h8))
    t = (cap // 8) * 8
    while t >= 8:
        if h8 % t == 0:
            return t
        t -= 8
    return 8


def dual_bev_adaptive_fusion(stu_bev, dup_bev, w_spatial, *, tile_rows=None):
    """se-like DualBevAdaptiveFusion forward.

    stu_bev  : (N, C1, H, W)  NCHW, exactly as the PyTorch module (no transposes)
    dup_bev  : (N, C2, H, W)
    w_spatial: (2, 7, 7)      SpatialAttention Conv2d weight (out-channel squeezed);
                              channel 0 = avg-map taps, channel 1 = max-map taps
    returns  : (N, C1+C2, H, W)
    """
    N, C1, H, W = stu_bev.shape
    N2, C2, H2, W2 = dup_bev.shape
    assert (N, H, W) == (N2, H2, W2)
    assert stu_bev.dtype == dup_bev.dtype
    dtype = stu_bev.dtype
    esize = jnp.dtype(dtype).itemsize
    Cout = C1 + C2

    if tile_rows is None:
        tile_rows = _auto_tile_rows(H, Cout, W, esize)
    assert tile_rows % 8 == 0 and tile_rows >= 8
    TH = tile_rows

    # Zero-padding extra rows is semantics-preserving: all-zero channels give
    # mean = max = 0, which is exactly the conv's zero padding; padded output
    # rows are sliced off below.
    H_pad = ((H + TH - 1) // TH) * TH
    if H_pad != H:
        padw = [(0, 0), (0, 0), (0, H_pad - H), (0, 0)]
        stu_p = jnp.pad(stu_bev, padw)
        dup_p = jnp.pad(dup_bev, padw)
    else:
        stu_p, dup_p = stu_bev, dup_bev

    HT = H_pad // TH
    rb = TH // _HALO_ROWS                 # halo blocks per main row-tile
    hb_max = H_pad // _HALO_ROWS - 1      # last valid 8-row block index

    w_flat = w_spatial.reshape(-1).astype(jnp.float32)          # (98,) -> SMEM

    kernel = functools.partial(_se_like_fusion_kernel, C1, C2, TH, W)

    main_stu = pl.BlockSpec((1, C1, TH, W), lambda n, h: (n, 0, h, 0))
    main_dup = pl.BlockSpec((1, C2, TH, W), lambda n, h: (n, 0, h, 0))
    # 8-row neighbour fetches for the halo (clamped at the borders; the kernel
    # gates the clamped data off and substitutes the conv's zero padding).
    ab_stu = pl.BlockSpec((1, C1, _HALO_ROWS, W),
                          lambda n, h: (n, 0, jnp.maximum(h * rb - 1, 0), 0))
    ab_dup = pl.BlockSpec((1, C2, _HALO_ROWS, W),
                          lambda n, h: (n, 0, jnp.maximum(h * rb - 1, 0), 0))
    be_stu = pl.BlockSpec((1, C1, _HALO_ROWS, W),
                          lambda n, h: (n, 0, jnp.minimum((h + 1) * rb, hb_max), 0))
    be_dup = pl.BlockSpec((1, C2, _HALO_ROWS, W),
                          lambda n, h: (n, 0, jnp.minimum((h + 1) * rb, hb_max), 0))
    out_spec = pl.BlockSpec((1, Cout, TH, W), lambda n, h: (n, 0, h, 0))

    # VMEM budget: double-buffered main+halo input blocks + output block + scratch.
    block_bytes = esize * W * Cout * (2 * TH + 2 * _HALO_ROWS)
    scratch_bytes = 4 * 2 * (TH + 2 * _ROW0) * (_COL0 + W + 2 * _ROW0)
    vmem_limit = int(min(100 * 1024 * 1024,
                         max(32 * 1024 * 1024,
                             2 * block_bytes + scratch_bytes + (4 << 20))))

    flops = int(N * H_pad * W * (2 * Cout + 4 * _K * _K + C2 + 2))
    bytes_accessed = int(esize * N * W * Cout * (2 * H_pad + HT * 2 * _HALO_ROWS)
                         + 4 * 2 * _K * _K)

    out = pl.pallas_call(
        kernel,
        out_shape=jax.ShapeDtypeStruct((N, Cout, H_pad, W), dtype),
        grid_spec=pltpu.PrefetchScalarGridSpec(
            num_scalar_prefetch=0,
            grid=(N, HT),
            in_specs=[
                pl.BlockSpec(memory_space=pltpu.MemorySpace.SMEM),   # conv taps
                main_stu, main_dup,
                ab_stu, ab_dup,
                be_stu, be_dup,
            ],
            out_specs=out_spec,
            scratch_shapes=[
                pltpu.VMEM((2, TH + 2 * _ROW0, _COL0 + W + 2 * _ROW0), jnp.float32),
            ],
        ),
        compiler_params=pltpu.CompilerParams(
            dimension_semantics=("parallel", "parallel"),
            vmem_limit_bytes=vmem_limit,
        ),
        cost_estimate=pl.CostEstimate(
            flops=flops,
            transcendentals=int(N * H_pad * W),
            bytes_accessed=bytes_accessed),
    )(w_flat, stu_p, dup_p, stu_p, dup_p, stu_p, dup_p)

    if H_pad != H:
        out = out[:, :, :H, :]
    return out


def _reference_forward(stu_bev, dup_bev, w_spatial):
    """Pure-JAX reference of the same se-like forward for a correctness check."""
    cat = jnp.concatenate([stu_bev, dup_bev], axis=1)
    avg = jnp.mean(cat, axis=1, keepdims=True)
    mx = jnp.max(cat, axis=1, keepdims=True)
    am = jnp.concatenate([avg, mx], axis=1)                      # (N, 2, H, W)
    w = w_spatial.reshape(1, 2, _K, _K)
    attn = jax.lax.conv_general_dilated(
        am, w, window_strides=(1, 1), padding=[(_P, _P), (_P, _P)],
        dimension_numbers=("NCHW", "OIHW", "NCHW"))
    attn = jax.nn.sigmoid(attn)                                  # (N, 1, H, W)
    return jnp.concatenate([stu_bev, dup_bev * attn], axis=1)


if __name__ == "__main__":
    key = jax.random.PRNGKey(0)
    k1, k2, k3, k4, k5 = jax.random.split(key, 5)
    # SpatialAttention 7x7 conv weight (PyTorch shape (1, 2, 7, 7), out dim squeezed).
    w_spatial = 0.1 * jax.random.normal(k3, (2, _K, _K), jnp.float32)

    # Case 1: batch=2, stu C=8, dup C=4, 16x16 BEV, auto row-tile (single tile).
    N, C1, C2, H, W = 2, 8, 4, 16, 16
    stu = jax.random.normal(k1, (N, C1, H, W), jnp.float32)
    dup = jax.random.normal(k2, (N, C2, H, W), jnp.float32)
    out = jax.block_until_ready(dual_bev_adaptive_fusion(stu, dup, w_spatial))
    assert out.shape == (N, C1 + C2, H, W), out.shape
    ref = jax.block_until_ready(_reference_forward(stu, dup, w_spatial))
    assert jnp.allclose(out, ref, atol=1e-4, rtol=1e-4), (
        float(jnp.max(jnp.abs(out - ref))))

    # Case 2: 3 row-tiles of 8 rows -> exercises top / interior / bottom halo paths.
    N, C1, C2, H, W = 1, 4, 4, 24, 32
    stu2 = jax.random.normal(k4, (N, C1, H, W), jnp.float32)
    dup2 = jax.random.normal(k5, (N, C2, H, W), jnp.float32)
    out2 = jax.block_until_ready(
        dual_bev_adaptive_fusion(stu2, dup2, w_spatial, tile_rows=8))
    assert out2.shape == (N, C1 + C2, H, W), out2.shape
    ref2 = jax.block_until_ready(_reference_forward(stu2, dup2, w_spatial))
    assert jnp.allclose(out2, ref2, atol=1e-4, rtol=1e-4), (
        float(jnp.max(jnp.abs(out2 - ref2))))

    print("KERNEL_OK")
</pallas_src>

<mosaic_0001>
module attributes {stable_mosaic.version = 11 : i64} {
  func.func @_se_like_fusion_kernel(%arg0: i32, %arg1: i32, %arg2: memref<98xf32, #tpu.memory_space<smem>>, %arg3: memref<1x8x16x16xf32, #tpu.memory_space<vmem>>, %arg4: memref<1x4x16x16xf32, #tpu.memory_space<vmem>>, %arg5: memref<1x8x8x16xf32, #tpu.memory_space<vmem>>, %arg6: memref<1x4x8x16xf32, #tpu.memory_space<vmem>>, %arg7: memref<1x8x8x16xf32, #tpu.memory_space<vmem>>, %arg8: memref<1x4x8x16xf32, #tpu.memory_space<vmem>>, %arg9: memref<1x12x16x16xf32, #tpu.memory_space<vmem>>, %arg10: memref<2x32x160xf32, #tpu.memory_space<vmem>>) attributes {dimension_semantics = [#tpu.dimension_semantics<parallel>, #tpu.dimension_semantics<parallel>], iteration_bounds = array<i64: 2, 1>, scalar_prefetch = 0 : i64, scratch_operands = 1 : i64, tpu.core_type = #tpu.core_type<tc>, window_params = [{transform_indices = @transform_0, window_bounds = array<i64: 98>}, {transform_indices = @transform_1, window_bounds = array<i64: 1, 8, 16, 16>}, {transform_indices = @transform_2, window_bounds = array<i64: 1, 4, 16, 16>}, {transform_indices = @transform_3, window_bounds = array<i64: 1, 8, 8, 16>}, {transform_indices = @transform_4, window_bounds = array<i64: 1, 4, 8, 16>}, {transform_indices = @transform_5, window_bounds = array<i64: 1, 8, 8, 16>}, {transform_indices = @transform_6, window_bounds = array<i64: 1, 4, 8, 16>}, {transform_indices = @transform_7, window_bounds = array<i64: 1, 12, 16, 16>}]} {
    %c0 = arith.constant 0 : index
    %c0_0 = arith.constant 0 : index
    %c0_1 = arith.constant 0 : index
    %c0_2 = arith.constant 0 : index
    %0 = vector.load %arg3[%c0, %c0_0, %c0_1, %c0_2] : memref<1x8x16x16xf32, #tpu.memory_space<vmem>>, vector<1x8x16x16xf32>
    %1 = vector.shape_cast %0 : vector<1x8x16x16xf32> to vector<8x16x16xf32>
    %cst = arith.constant dense<0.000000e+00> : vector<16x16xf32>
    %2 = vector.multi_reduction <add>, %1, %cst [0] : vector<8x16x16xf32> to vector<16x16xf32>
    %c0_3 = arith.constant 0 : index
    %c0_4 = arith.constant 0 : index
    %c0_5 = arith.constant 0 : index
    %c0_6 = arith.constant 0 : index
    %3 = vector.load %arg4[%c0_3, %c0_4, %c0_5, %c0_6] : memref<1x4x16x16xf32, #tpu.memory_space<vmem>>, vector<1x4x16x16xf32>
    %4 = vector.shape_cast %3 : vector<1x4x16x16xf32> to vector<4x16x16xf32>
    %cst_7 = arith.constant dense<0.000000e+00> : vector<16x16xf32>
    %5 = vector.multi_reduction <add>, %4, %cst_7 [0] : vector<4x16x16xf32> to vector<16x16xf32>
    %6 = arith.addf %2, %5 : vector<16x16xf32>
    %cst_8 = arith.constant 0.0833333358 : f32
    %7 = vector.broadcast %cst_8 : f32 to vector<16x16xf32>
    %8 = arith.mulf %6, %7 : vector<16x16xf32>
    %c0_9 = arith.constant 0 : index
    %c0_10 = arith.constant 0 : index
    %c0_11 = arith.constant 0 : index
    %c0_12 = arith.constant 0 : index
    %9 = vector.load %arg3[%c0_9, %c0_10, %c0_11, %c0_12] : memref<1x8x16x16xf32, #tpu.memory_space<vmem>>, vector<1x8x16x16xf32>
    %10 = vector.shape_cast %9 : vector<1x8x16x16xf32> to vector<8x16x16xf32>
    %cst_13 = arith.constant dense<0xFF800000> : vector<16x16xf32>
    %11 = vector.multi_reduction <maximumf>, %10, %cst_13 [0] : vector<8x16x16xf32> to vector<16x16xf32>
    %c0_14 = arith.constant 0 : index
    %c0_15 = arith.constant 0 : index
    %c0_16 = arith.constant 0 : index
    %c0_17 = arith.constant 0 : index
    %12 = vector.load %arg4[%c0_14, %c0_15, %c0_16, %c0_17] : memref<1x4x16x16xf32, #tpu.memory_space<vmem>>, vector<1x4x16x16xf32>
    %13 = vector.shape_cast %12 : vector<1x4x16x16xf32> to vector<4x16x16xf32>
    %cst_18 = arith.constant dense<0xFF800000> : vector<16x16xf32>
    %14 = vector.multi_reduction <maximumf>, %13, %cst_18 [0] : vector<4x16x16xf32> to vector<16x16xf32>
    %15 = arith.maximumf %11, %14 : vector<16x16xf32>
    %c0_19 = arith.constant 0 : index
    %c0_20 = arith.constant 0 : index
    %c5 = arith.constant 5 : index
    %c0_21 = arith.constant 0 : index
    %16 = vector.load %arg5[%c0_19, %c0_20, %c5, %c0_21] : memref<1x8x8x16xf32, #tpu.memory_space<vmem>>, vector<1x8x3x16xf32>
    %17 = vector.shape_cast %16 : vector<1x8x3x16xf32> to vector<8x3x16xf32>
    %c0_22 = arith.constant 0 : index
    %c0_23 = arith.constant 0 : index
    %c5_24 = arith.constant 5 : index
    %c0_25 = arith.constant 0 : index
    %18 = vector.load %arg6[%c0_22, %c0_23, %c5_24, %c0_25] : memref<1x4x8x16xf32, #tpu.memory_space<vmem>>, vector<1x4x3x16xf32>
    %19 = vector.shape_cast %18 : vector<1x4x3x16xf32> to vector<4x3x16xf32>
    %cst_26 = arith.constant dense<0.000000e+00> : vector<3x16xf32>
    %20 = vector.multi_reduction <add>, %17, %cst_26 [0] : vector<8x3x16xf32> to vector<3x16xf32>
    %cst_27 = arith.constant dense<0.000000e+00> : vector<3x16xf32>
    %21 = vector.multi_reduction <add>, %19, %cst_27 [0] : vector<4x3x16xf32> to vector<3x16xf32>
    %22 = arith.addf %20, %21 : vector<3x16xf32>
    %cst_28 = arith.constant 0.0833333358 : f32
    %23 = vector.broadcast %cst_28 : f32 to vector<3x16xf32>
    %24 = arith.mulf %22, %23 : vector<3x16xf32>
    %cst_29 = arith.constant dense<0xFF800000> : vector<3x16xf32>
    %25 = vector.multi_reduction <maximumf>, %17, %cst_29 [0] : vector<8x3x16xf32> to vector<3x16xf32>
    %cst_30 = arith.constant dense<0xFF800000> : vector<3x16xf32>
    %26 = vector.multi_reduction <maximumf>, %19, %cst_30 [0] : vector<4x3x16xf32> to vector<3x16xf32>
    %27 = arith.maximumf %25, %26 : vector<3x16xf32>
    %c0_31 = arith.constant 0 : index
    %c0_32 = arith.constant 0 : index
    %c0_33 = arith.constant 0 : index
    %c0_34 = arith.constant 0 : index
    %28 = vector.load %arg7[%c0_31, %c0_32, %c0_33, %c0_34] : memref<1x8x8x16xf32, #tpu.memory_space<vmem>>, vector<1x8x3x16xf32>
    %29 = vector.shape_cast %28 : vector<1x8x3x16xf32> to vector<8x3x16xf32>
    %c0_35 = arith.constant 0 : index
    %c0_36 = arith.constant 0 : index
    %c0_37 = arith.constant 0 : index
    %c0_38 = arith.constant 0 : index
    %30 = vector.load %arg8[%c0_35, %c0_36, %c0_37, %c0_38] : memref<1x4x8x16xf32, #tpu.memory_space<vmem>>, vector<1x4x3x16xf32>
    %31 = vector.shape_cast %30 : vector<1x4x3x16xf32> to vector<4x3x16xf32>
    %cst_39 = arith.constant dense<0.000000e+00> : vector<3x16xf32>
    %32 = vector.multi_reduction <add>, %29, %cst_39 [0] : vector<8x3x16xf32> to vector<3x16xf32>
    %cst_40 = arith.constant dense<0.000000e+00> : vector<3x16xf32>
    %33 = vector.multi_reduction <add>, %31, %cst_40 [0] : vector<4x3x16xf32> to vector<3x16xf32>
    %34 = arith.addf %32, %33 : vector<3x16xf32>
    %cst_41 = arith.constant 0.0833333358 : f32
    %35 = vector.broadcast %cst_41 : f32 to vector<3x16xf32>
    %36 = arith.mulf %34, %35 : vector<3x16xf32>
    %cst_42 = arith.constant dense<0xFF800000> : vector<3x16xf32>
    %37 = vector.multi_reduction <maximumf>, %29, %cst_42 [0] : vector<8x3x16xf32> to vector<3x16xf32>
    %cst_43 = arith.constant dense<0xFF800000> : vector<3x16xf32>
    %38 = vector.multi_reduction <maximumf>, %31, %cst_43 [0] : vector<4x3x16xf32> to vector<3x16xf32>
    %39 = arith.maximumf %37, %38 : vector<3x16xf32>
    %c0_i32 = arith.constant 0 : i32
    %40 = arith.cmpi sgt, %arg1, %c0_i32 : i32
    %c0_i32_44 = arith.constant 0 : i32
    %41 = arith.cmpi slt, %arg1, %c0_i32_44 : i32
    %cst_45 = arith.constant 0.000000e+00 : f32
    %42 = vector.broadcast %cst_45 : f32 to vector<3x16xf32>
    %43 = arith.select %40, %24, %42 : vector<3x16xf32>
    %cst_46 = arith.constant 0.000000e+00 : f32
    %44 = vector.broadcast %cst_46 : f32 to vector<3x16xf32>
    %45 = arith.select %40, %27, %44 : vector<3x16xf32>
    %cst_47 = arith.constant 0.000000e+00 : f32
    %46 = vector.broadcast %cst_47 : f32 to vector<3x16xf32>
    %47 = arith.select %41, %36, %46 : vector<3x16xf32>
    %cst_48 = arith.constant 0.000000e+00 : f32
    %48 = vector.broadcast %cst_48 : f32 to vector<3x16xf32>
    %49 = arith.select %41, %39, %48 : vector<3x16xf32>
    %cst_49 = arith.constant 0.000000e+00 : f32
    %50 = vector.broadcast %cst_49 : f32 to vector<22x3xf32>
    %c0_50 = arith.constant 0 : index
    %c5_51 = arith.constant 5 : index
    %c125 = arith.constant 125 : index
    %51 = vector.load %arg10[%c0_50, %c5_51, %c125] : memref<2x32x160xf32, #tpu.memory_space<vmem>>, vector<1x22x3xf32>
    %52 = vector.shape_cast %51 : vector<1x22x3xf32> to vector<22x3xf32>
    %53 = vector.shape_cast %50 : vector<22x3xf32> to vector<1x22x3xf32>
    tpu.vector_store %arg10[%c0_50, %c5_51, %c125], %53 {strides = array<i32>} : memref<2x32x160xf32, #tpu.memory_space<vmem>>, vector<1x22x3xf32>,
    %c1 = arith.constant 1 : index
    %c5_52 = arith.constant 5 : index
    %c125_53 = arith.constant 125 : index
    %54 = vector.load %arg10[%c1, %c5_52, %c125_53] : memref<2x32x160xf32, #tpu.memory_space<vmem>>, vector<1x22x3xf32>
    %55 = vector.shape_cast %54 : vector<1x22x3xf32> to vector<22x3xf32>
    %56 = vector.shape_cast %50 : vector<22x3xf32> to vector<1x22x3xf32>
    tpu.vector_store %arg10[%c1, %c5_52, %c125_53], %56 {strides = array<i32>} : memref<2x32x160xf32, #tpu.memory_space<vmem>>, vector<1x22x3xf32>,
    %c0_54 = arith.constant 0 : index
    %c5_55 = arith.constant 5 : index
    %c144 = arith.constant 144 : index
    %57 = vector.load %arg10[%c0_54, %c5_55, %c144] : memref<2x32x160xf32, #tpu.memory_space<vmem>>, vector<1x22x3xf32>
    %58 = vector.shape_cast %57 : vector<1x22x3xf32> to vector<22x3xf32>
    %59 = vector.shape_cast %50 : vector<22x3xf32> to vector<1x22x3xf32>
    tpu.vector_store %arg10[%c0_54, %c5_55, %c144], %59 {strides = array<i32>} : memref<2x32x160xf32, #tpu.memory_space<vmem>>, vector<1x22x3xf32>,
    %c1_56 = arith.constant 1 : index
    %c5_57 = arith.constant 5 : index
    %c144_58 = arith.constant 144 : index
    %60 = vector.load %arg10[%c1_56, %c5_57, %c144_58] : memref<2x32x160xf32, #tpu.memory_space<vmem>>, vector<1x22x3xf32>
    %61 = vector.shape_cast %60 : vector<1x22x3xf32> to vector<22x3xf32>
    %62 = vector.shape_cast %50 : vector<22x3xf32> to vector<1x22x3xf32>
    tpu.vector_store %arg10[%c1_56, %c5_57, %c144_58], %62 {strides = array<i32>} : memref<2x32x160xf32, #tpu.memory_space<vmem>>, vector<1x22x3xf32>,
    %c0_59 = arith.constant 0 : index
    %c5_60 = arith.constant 5 : index
    %c128 = arith.constant 128 : index
    %63 = vector.load %arg10[%c0_59, %c5_60, %c128] : memref<2x32x160xf32, #tpu.memory_space<vmem>>, vector<1x3x16xf32>
    %64 = vector.shape_cast %63 : vector<1x3x16xf32> to vector<3x16xf32>
    %65 = vector.shape_cast %43 : vector<3x16xf32> to vector<1x3x16xf32>
    tpu.vector_store %arg10[%c0_59, %c5_60, %c128], %65 {strides = array<i32>} : memref<2x32x160xf32, #tpu.memory_space<vmem>>, vector<1x3x16xf32>,
    %c1_61 = arith.constant 1 : index
    %c5_62 = arith.constant 5 : index
    %c128_63 = arith.constant 128 : index
    %66 = vector.load %arg10[%c1_61, %c5_62, %c128_63] : memref<2x32x160xf32, #tpu.memory_space<vmem>>, vector<1x3x16xf32>
    %67 = vector.shape_cast %66 : vector<1x3x16xf32> to vector<3x16xf32>
    %68 = vector.shape_cast %45 : vector<3x16xf32> to vector<1x3x16xf32>
    tpu.vector_store %arg10[%c1_61, %c5_62, %c128_63], %68 {strides = array<i32>} : memref<2x32x160xf32, #tpu.memory_space<vmem>>, vector<1x3x16xf32>,
    %c0_64 = arith.constant 0 : index
    %c24 = arith.constant 24 : index
    %c128_65 = arith.constant 128 : index
    %69 = vector.load %arg10[%c0_64, %c24, %c128_65] : memref<2x32x160xf32, #tpu.memory_space<vmem>>, vector<1x3x16xf32>
    %70 = vector.shape_cast %69 : vector<1x3x16xf32> to vector<3x16xf32>
    %71 = vector.shape_cast %47 : vector<3x16xf32> to vector<1x3x16xf32>
    tpu.vector_store %arg10[%c0_64, %c24, %c128_65], %71 {strides = array<i32>} : memref<2x32x160xf32, #tpu.memory_space<vmem>>, vector<1x3x16xf32>,
    %c1_66 = arith.constant 1 : index
    %c24_67 = arith.constant 24 : index
    %c128_68 = arith.constant 128 : index
    %72 = vector.load %arg10[%c1_66, %c24_67, %c128_68] : memref<2x32x160xf32, #tpu.memory_space<vmem>>, vector<1x3x16xf32>
    %73 = vector.shape_cast %72 : vector<1x3x16xf32> to vector<3x16xf32>
    %74 = vector.shape_cast %49 : vector<3x16xf32> to vector<1x3x16xf32>
    tpu.vector_store %arg10[%c1_66, %c24_67, %c128_68], %74 {strides = array<i32>} : memref<2x32x160xf32, #tpu.memory_space<vmem>>, vector<1x3x16xf32>,
    %c0_69 = arith.constant 0 : index
    %c8 = arith.constant 8 : index
    %c128_70 = arith.constant 128 : index
    %75 = vector.load %arg10[%c0_69, %c8, %c128_70] : memref<2x32x160xf32, #tpu.memory_space<vmem>>, vector<1x16x16xf32>
    %76 = vector.shape_cast %75 : vector<1x16x16xf32> to vector<16x16xf32>
    %77 = vector.shape_cast %8 : vector<16x16xf32> to vector<1x16x16xf32>
    tpu.vector_store %arg10[%c0_69, %c8, %c128_70], %77 {strides = array<i32>} : memref<2x32x160xf32, #tpu.memory_space<vmem>>, vector<1x16x16xf32>,
    %c1_71 = arith.constant 1 : index
    %c8_72 = arith.constant 8 : index
    %c128_73 = arith.constant 128 : index
    %78 = vector.load %arg10[%c1_71, %c8_72, %c128_73] : memref<2x32x160xf32, #tpu.memory_space<vmem>>, vector<1x16x16xf32>
    %79 = vector.shape_cast %78 : vector<1x16x16xf32> to vector<16x16xf32>
    %80 = vector.shape_cast %15 : vector<16x16xf32> to vector<1x16x16xf32>
    tpu.vector_store %arg10[%c1_71, %c8_72, %c128_73], %80 {strides = array<i32>} : memref<2x32x160xf32, #tpu.memory_space<vmem>>, vector<1x16x16xf32>,
    %c0_74 = arith.constant 0 : index
    %c5_75 = arith.constant 5 : index
    %c125_76 = arith.constant 125 : index
    %81 = vector.load %arg10[%c0_74, %c5_75, %c125_76] : memref<2x32x160xf32, #tpu.memory_space<vmem>>, vector<1x22x16xf32>
    %82 = vector.shape_cast %81 : vector<1x22x16xf32> to vector<22x16xf32>
    %c1_77 = arith.constant 1 : index
    %c5_78 = arith.constant 5 : index
    %c125_79 = arith.constant 125 : index
    %83 = vector.load %arg10[%c1_77, %c5_78, %c125_79] : memref<2x32x160xf32, #tpu.memory_space<vmem>>, vector<1x22x16xf32>
    %84 = vector.shape_cast %83 : vector<1x22x16xf32> to vector<22x16xf32>
    %c0_80 = arith.constant 0 : index
    %85 = memref.load %arg2[%c0_80] : memref<98xf32, #tpu.memory_space<smem>>
    %86 = vector.extract_strided_slice %82 {offsets = [0, 0], sizes = [16, 16], strides = [1, 1]} : vector<22x16xf32> to vector<16x16xf32>
    %87 = vector.broadcast %85 : f32 to vector<16x16xf32>
    %88 = arith.mulf %87, %86 : vector<16x16xf32>
    %c49 = arith.constant 49 : index
    %89 = memref.load %arg2[%c49] : memref<98xf32, #tpu.memory_space<smem>>
    %90 = vector.extract_strided_slice %84 {offsets = [0, 0], sizes = [16, 16], strides = [1, 1]} : vector<22x16xf32> to vector<16x16xf32>
    %91 = vector.broadcast %89 : f32 to vector<16x16xf32>
    %92 = arith.mulf %91, %90 : vector<16x16xf32>
    %93 = arith.addf %88, %92 : vector<16x16xf32>
    %c7 = arith.constant 7 : index
    %94 = memref.load %arg2[%c7] : memref<98xf32, #tpu.memory_space<smem>>
    %95 = vector.extract_strided_slice %82 {offsets = [1, 0], sizes = [16, 16], strides = [1, 1]} : vector<22x16xf32> to vector<16x16xf32>
    %96 = vector.broadcast %94 : f32 to vector<16x16xf32>
    %97 = arith.mulf %96, %95 : vector<16x16xf32>
    %c56 = arith.constant 56 : index
    %98 = memref.load %arg2[%c56] : memref<98xf32, #tpu.memory_space<smem>>
    %99 = vector.extract_strided_slice %84 {offsets = [1, 0], sizes = [16, 16], strides = [1, 1]} : vector<22x16xf32> to vector<16x16xf32>
    %100 = vector.broadcast %98 : f32 to vector<16x16xf32>
    %101 = arith.mulf %100, %99 : vector<16x16xf32>
    %102 = arith.addf %97, %101 : vector<16x16xf32>
    %103 = arith.addf %93, %102 : vector<16x16xf32>
    %c14 = arith.constant 14 : index
    %104 = memref.load %arg2[%c14] : memref<98xf32, #tpu.memory_space<smem>>
    %105 = vector.extract_strided_slice %82 {offsets = [2, 0], sizes = [16, 16], strides = [1, 1]} : vector<22x16xf32> to vector<16x16xf32>
    %106 = vector.broadcast %104 : f32 to vector<16x16xf32>
    %107 = arith.mulf %106, %105 : vector<16x16xf32>
    %c63 = arith.constant 63 : index
    %108 = memref.load %arg2[%c63] : memref<98xf32, #tpu.memory_space<smem>>
    %109 = vector.extract_strided_slice %84 {offsets = [2, 0], sizes = [16, 16], strides = [1, 1]} : vector<22x16xf32> to vector<16x16xf32>
    %110 = vector.broadcast %108 : f32 to vector<16x16xf32>
    %111 = arith.mulf %110, %109 : vector<16x16xf32>
    %112 = arith.addf %107, %111 : vector<16x16xf32>
    %113 = arith.addf %103, %112 : vector<16x16xf32>
    %c21 = arith.constant 21 : index
    %114 = memref.load %arg2[%c21] : memref<98xf32, #tpu.memory_space<smem>>
    %115 = vector.extract_strided_slice %82 {offsets = [3, 0], sizes = [16, 16], strides = [1, 1]} : vector<22x16xf32> to vector<16x16xf32>
    %116 = vector.broadcast %114 : f32 to vector<16x16xf32>
    %117 = arith.mulf %116, %115 : vector<16x16xf32>
    %c70 = arith.constant 70 : index
    %118 = memref.load %arg2[%c70] : memref<98xf32, #tpu.memory_space<smem>>
    %119 = vector.extract_strided_slice %84 {offsets = [3, 0], sizes = [16, 16], strides = [1, 1]} : vector<22x16xf32> to vector<16x16xf32>
    %120 = vector.broadcast %118 : f32 to vector<16x16xf32>
    %121 = arith.mulf %120, %119 : vector<16x16xf32>
    %122 = arith.addf %117, %121 : vector<16x16xf32>
    %123 = arith.addf %113, %122 : vector<16x16xf32>
    %c28 = arith.constant 28 : index
    %124 = memref.load %arg2[%c28] : memref<98xf32, #tpu.memory_space<smem>>
    %125 = vector.extract_strided_slice %82 {offsets = [4, 0], sizes = [16, 16], strides = [1, 1]} : vector<22x16xf32> to vector<16x16xf32>
    %126 = vector.broadcast %124 : f32 to vector<16x16xf32>
    %127 = arith.mulf %126, %125 : vector<16x16xf32>
    %c77 = arith.constant 77 : index
    %128 = memref.load %arg2[%c77] : memref<98xf32, #tpu.memory_space<smem>>
    %129 = vector.extract_strided_slice %84 {offsets = [4, 0], sizes = [16, 16], strides = [1, 1]} : vector<22x16xf32> to vector<16x16xf32>
    %130 = vector.broadcast %128 : f32 to vector<16x16xf32>
    %131 = arith.mulf %130, %129 : vector<16x16xf32>
    %132 = arith.addf %127, %131 : vector<16x16xf32>
    %133 = arith.addf %123, %132 : vector<16x16xf32>
    %c35 = arith.constant 35 : index
    %134 = memref.load %arg2[%c35] : memref<98xf32, #tpu.memory_space<smem>>
    %135 = vector.extract_strided_slice %82 {offsets = [5, 0], sizes = [16, 16], strides = [1, 1]} : vector<22x16xf32> to vector<16x16xf32>
    %136 = vector.broadcast %134 : f32 to vector<16x16xf32>
    %137 = arith.mulf %136, %135 : vector<16x16xf32>
    %c84 = arith.constant 84 : index
    %138 = memref.load %arg2[%c84] : memref<98xf32, #tpu.memory_space<smem>>
    %139 = vector.extract_strided_slice %84 {offsets = [5, 0], sizes = [16, 16], strides = [1, 1]} : vector<22x16xf32> to vector<16x16xf32>
    %140 = vector.broadcast %138 : f32 to vector<16x16xf32>
    %141 = arith.mulf %140, %139 : vector<16x16xf32>
    %142 = arith.addf %137, %141 : vector<16x16xf32>
    %143 = arith.addf %133, %142 : vector<16x16xf32>
    %c42 = arith.constant 42 : index
    %144 = memref.load %arg2[%c42] : memref<98xf32, #tpu.memory_space<smem>>
    %145 = vector.extract_strided_slice %82 {offsets = [6, 0], sizes = [16, 16], strides = [1, 1]} : vector<22x16xf32> to vector<16x16xf32>
    %146 = vector.broadcast %144 : f32 to vector<16x16xf32>
    %147 = arith.mulf %146, %145 : vector<16x16xf32>
    %c91 = arith.constant 91 : index
    %148 = memref.load %arg2[%c91] : memref<98xf32, #tpu.memory_space<smem>>
    %149 = vector.extract_strided_slice %84 {offsets = [6, 0], sizes = [16, 16], strides = [1, 1]} : vector<22x16xf32> to vector<16x16xf32>
    %150 = vector.broadcast %148 : f32 to vector<16x16xf32>
    %151 = arith.mulf %150, %149 : vector<16x16xf32>
    %152 = arith.addf %147, %151 : vector<16x16xf32>
    %153 = arith.addf %143, %152 : vector<16x16xf32>
    %c0_81 = arith.constant 0 : index
    %c5_82 = arith.constant 5 : index
    %c126 = arith.constant 126 : index
    %154 = vector.load %arg10[%c0_81, %c5_82, %c126] : memref<2x32x160xf32, #tpu.memory_space<vmem>>, vector<1x22x16xf32>
    %155 = vector.shape_cast %154 : vector<1x22x16xf32> to vector<22x16xf32>
    %c1_83 = arith.constant 1 : index
    %c5_84 = arith.constant 5 : index
    %c126_85 = arith.constant 126 : index
    %156 = vector.load %arg10[%c1_83, %c5_84, %c126_85] : memref<2x32x160xf32, #tpu.memory_space<vmem>>, vector<1x22x16xf32>
    %157 = vector.shape_cast %156 : vector<1x22x16xf32> to vector<22x16xf32>
    %c1_86 = arith.constant 1 : index
    %158 = memref.load %arg2[%c1_86] : memref<98xf32, #tpu.memory_space<smem>>
    %159 = vector.extract_strided_slice %155 {offsets = [0, 0], sizes = [16, 16], strides = [1, 1]} : vector<22x16xf32> to vector<16x16xf32>
    %160 = vector.broadcast %158 : f32 to vector<16x16xf32>
    %161 = arith.mulf %160, %159 : vector<16x16xf32>
    %c50 = arith.constant 50 : index
    %162 = memref.load %arg2[%c50] : memref<98xf32, #tpu.memory_space<smem>>
    %163 = vector.extract_strided_slice %157 {offsets = [0, 0], sizes = [16, 16], strides = [1, 1]} : vector<22x16xf32> to vector<16x16xf32>
    %164 = vector.broadcast %162 : f32 to vector<16x16xf32>
    %165 = arith.mulf %164, %163 : vector<16x16xf32>
    %166 = arith.addf %161, %165 : vector<16x16xf32>
    %167 = arith.addf %153, %166 : vector<16x16xf32>
    %c8_87 = arith.constant 8 : index
    %168 = memref.load %arg2[%c8_87] : memref<98xf32, #tpu.memory_space<smem>>
    %169 = vector.extract_strided_slice %155 {offsets = [1, 0], sizes = [16, 16], strides = [1, 1]} : vector<22x16xf32> to vector<16x16xf32>
    %170 = vector.broadcast %168 : f32 to vector<16x16xf32>
    %171 = arith.mulf %170, %169 : vector<16x16xf32>
    %c57 = arith.constant 57 : index
    %172 = memref.load %arg2[%c57] : memref<98xf32, #tpu.memory_space<smem>>
    %173 = vector.extract_strided_slice %157 {offsets = [1, 0], sizes = [16, 16], strides = [1, 1]} : vector<22x16xf32> to vector<16x16xf32>
    %174 = vector.broadcast %172 : f32 to vector<16x16xf32>
    %175 = arith.mulf %174, %173 : vector<16x16xf32>
    %176 = arith.addf %171, %175 : vector<16x16xf32>
    %177 = arith.addf %167, %176 : vector<16x16xf32>
    %c15 = arith.constant 15 : index
    %178 = memref.load %arg2[%c15] : memref<98xf32, #tpu.memory_space<smem>>
    %179 = vector.extract_strided_slice %155 {offsets = [2, 0], sizes = [16, 16], strides = [1, 1]} : vector<22x16xf32> to vector<16x16xf32>
    %180 = vector.broadcast %178 : f32 to vector<16x16xf32>
    %181 = arith.mulf %180, %179 : vector<16x16xf32>
    %c64 = arith.constant 64 : index
    %182 = memref.load %arg2[%c64] : memref<98xf32, #tpu.memory_space<smem>>
    %183 = vector.extract_strided_slice %157 {offsets = [2, 0], sizes = [16, 16], strides = [1, 1]} : vector<22x16xf32> to vector<16x16xf32>
    %184 = vector.broadcast %182 : f32 to vector<16x16xf32>
    %185 = arith.mulf %184, %183 : vector<16x16xf32>
    %186 = arith.addf %181, %185 : vector<16x16xf32>
    %187 = arith.addf %177, %186 : vector<16x16xf32>
    %c22 = arith.constant 22 : index
    %188 = memref.load %arg2[%c22] : memref<98xf32, #tpu.memory_space<smem>>
    %189 = vector.extract_strided_slice %155 {offsets = [3, 0], sizes = [16, 16], strides = [1, 1]} : vector<22x16xf32> to vector<16x16xf32>
    %190 = vector.broadcast %188 : f32 to vector<16x16xf32>
    %191 = arith.mulf %190, %189 : vector<16x16xf32>
    %c71 = arith.constant 71 : index
    %192 = memref.load %arg2[%c71] : memref<98xf32, #tpu.memory_space<smem>>
    %193 = vector.extract_strided_slice %157 {offsets = [3, 0], sizes = [16, 16], strides = [1, 1]} : vector<22x16xf32> to vector<16x16xf32>
    %194 = vector.broadcast %192 : f32 to vector<16x16xf32>
    %195 = arith.mulf %194, %193 : vector<16x16xf32>
    %196 = arith.addf %191, %195 : vector<16x16xf32>
    %197 = arith.addf %187, %196 : vector<16x16xf32>
    %c29 = arith.constant 29 : index
    %198 = memref.load %arg2[%c29] : memref<98xf32, #tpu.memory_space<smem>>
    %199 = vector.extract_strided_slice %155 {offsets = [4, 0], sizes = [16, 16], strides = [1, 1]} : vector<22x16xf32> to vector<16x16xf32>
    %200 = vector.broadcast %198 : f32 to vector<16x16xf32>
    %201 = arith.mulf %200, %199 : vector<16x16xf32>
    %c78 = arith.constant 78 : index
    %202 = memref.load %arg2[%c78] : memref<98xf32, #tpu.memory_space<smem>>
    %203 = vector.extract_strided_slice %157 {offsets = [4, 0], sizes = [16, 16], strides = [1, 1]} : vector<22x16xf32> to vector<16x16xf32>
    %204 = vector.broadcast %202 : f32 to vector<16x16xf32>
    %205 = arith.mulf %204, %203 : vector<16x16xf32>
    %206 = arith.addf %201, %205 : vector<16x16xf32>
    %207 = arith.addf %197, %206 : vector<16x16xf32>
    %c36 = arith.constant 36 : index
    %208 = memref.load %arg2[%c36] : memref<98xf32, #tpu.memory_space<smem>>
    %209 = vector.extract_strided_slice %155 {offsets = [5, 0], sizes = [16, 16], strides = [1, 1]} : vector<22x16xf32> to vector<16x16xf32>
    %210 = vector.broadcast %208 : f32 to vector<16x16xf32>
    %211 = arith.mulf %210, %209 : vector<16x16xf32>
    %c85 = arith.constant 85 : index
    %212 = memref.load %arg2[%c85] : memref<98xf32, #tpu.memory_space<smem>>
    %213 = vector.extract_strided_slice %157 {offsets = [5, 0], sizes = [16, 16], strides = [1, 1]} : vector<22x16xf32> to vector<16x16xf32>
    %214 = vector.broadcast %212 : f32 to vector<16x16xf32>
    %215 = arith.mulf %214, %213 : vector<16x16xf32>
    %216 = arith.addf %211, %215 : vector<16x16xf32>
    %217 = arith.addf %207, %216 : vector<16x16xf32>
    %c43 = arith.constant 43 : index
    %218 = memref.load %arg2[%c43] : memref<98xf32, #tpu.memory_space<smem>>
    %219 = vector.extract_strided_slice %155 {offsets = [6, 0], sizes = [16, 16], strides = [1, 1]} : vector<22x16xf32> to vector<16x16xf32>
    %220 = vector.broadcast %218 : f32 to vector<16x16xf32>
    %221 = arith.mulf %220, %219 : vector<16x16xf32>
    %c92 = arith.constant 92 : index
    %222 = memref.load %arg2[%c92] : memref<98xf32, #tpu.memory_space<smem>>
    %223 = vector.extract_strided_slice %157 {offsets = [6, 0], sizes = [16, 16], strides = [1, 1]} : vector<22x16xf32> to vector<16x16xf32>
    %224 = vector.broadcast %222 : f32 to vector<16x16xf32>
    %225 = arith.mulf %224, %223 : vector<16x16xf32>
    %226 = arith.addf %221, %225 : vector<16x16xf32>
    %227 = arith.addf %217, %226 : vector<16x16xf32>
    %c0_88 = arith.constant 0 : index
    %c5_89 = arith.constant 5 : index
    %c127 = arith.constant 127 : index
    %228 = vector.load %arg10[%c0_88, %c5_89, %c127] : memref<2x32x160xf32, #tpu.memory_space<vmem>>, vector<1x22x16xf32>
    %229 = vector.shape_cast %228 : vector<1x22x16xf32> to vector<22x16xf32>
    %c1_90 = arith.constant 1 : index
    %c5_91 = arith.constant 5 : index
    %c127_92 = arith.constant 127 : index
    %230 = vector.load %arg10[%c1_90, %c5_91, %c127_92] : memref<2x32x160xf32, #tpu.memory_space<vmem>>, vector<1x22x16xf32>
    %231 = vector.shape_cast %230 : vector<1x22x16xf32> to vector<22x16xf32>
    %c2 = arith.constant 2 : index
    %232 = memref.load %arg2[%c2] : memref<98xf32, #tpu.memory_space<smem>>
    %233 = vector.extract_strided_slice %229 {offsets = [0, 0], sizes = [16, 16], strides = [1, 1]} : vector<22x16xf32> to vector<16x16xf32>
    %234 = vector.broadcast %232 : f32 to vector<16x16xf32>
    %235 = arith.mulf %234, %233 : vector<16x16xf32>
    %c51 = arith.constant 51 : index
    %236 = memref.load %arg2[%c51] : memref<98xf32, #tpu.memory_space<smem>>
    %237 = vector.extract_strided_slice %231 {offsets = [0, 0], sizes = [16, 16], strides = [1, 1]} : vector<22x16xf32> to vector<16x16xf32>
    %238 = vector.broadcast %236 : f32 to vector<16x16xf32>
    %239 = arith.mulf %238, %237 : vector<16x16xf32>
    %240 = arith.addf %235, %239 : vector<16x16xf32>
    %241 = arith.addf %227, %240 : vector<16x16xf32>
    %c9 = arith.constant 9 : index
    %242 = memref.load %arg2[%c9] : memref<98xf32, #tpu.memory_space<smem>>
    %243 = vector.extract_strided_slice %229 {offsets = [1, 0], sizes = [16, 16], strides = [1, 1]} : vector<22x16xf32> to vector<16x16xf32>
    %244 = vector.broadcast %242 : f32 to vector<16x16xf32>
    %245 = arith.mulf %244, %243 : vector<16x16xf32>
    %c58 = arith.constant 58 : index
    %246 = memref.load %arg2[%c58] : memref<98xf32, #tpu.memory_space<smem>>
    %247 = vector.extract_strided_slice %231 {offsets = [1, 0], sizes = [16, 16], strides = [1, 1]} : vector<22x16xf32> to vector<16x16xf32>
    %248 = vector.broadcast %246 : f32 to vector<16x16xf32>
    %249 = arith.mulf %248, %247 : vector<16x16xf32>
    %250 = arith.addf %245, %249 : vector<16x16xf32>
    %251 = arith.addf %241, %250 : vector<16x16xf32>
    %c16 = arith.constant 16 : index
    %252 = memref.load %arg2[%c16] : memref<98xf32, #tpu.memory_space<smem>>
    %253 = vector.extract_strided_slice %229 {offsets = [2, 0], sizes = [16, 16], strides = [1, 1]} : vector<22x16xf32> to vector<16x16xf32>
    %254 = vector.broadcast %252 : f32 to vector<16x16xf32>
    %255 = arith.mulf %254, %253 : vector<16x16xf32>
    %c65 = arith.constant 65 : index
    %256 = memref.load %arg2[%c65] : memref<98xf32, #tpu.memory_space<smem>>
    %257 = vector.extract_strided_slice %231 {offsets = [2, 0], sizes = [16, 16], strides = [1, 1]} : vector<22x16xf32> to vector<16x16xf32>
    %258 = vector.broadcast %256 : f32 to vector<16x16xf32>
    %259 = arith.mulf %258, %257 : vector<16x16xf32>
    %260 = arith.addf %255, %259 : vector<16x16xf32>
    %261 = arith.addf %251, %260 : vector<16x16xf32>
    %c23 = arith.constant 23 : index
    %262 = memref.load %arg2[%c23] : memref<98xf32, #tpu.memory_space<smem>>
    %263 = vector.extract_strided_slice %229 {offsets = [3, 0], sizes = [16, 16], strides = [1, 1]} : vector<22x16xf32> to vector<16x16xf32>
    %264 = vector.broadcast %262 : f32 to vector<16x16xf32>
    %265 = arith.mulf %264, %263 : vector<16x16xf32>
    %c72 = arith.constant 72 : index
    %266 = memref.load %arg2[%c72] : memref<98xf32, #tpu.memory_space<smem>>
    %267 = vector.extract_strided_slice %231 {offsets = [3, 0], sizes = [16, 16], strides = [1, 1]} : vector<22x16xf32> to vector<16x16xf32>
    %268 = vector.broadcast %266 : f32 to vector<16x16xf32>
    %269 = arith.mulf %268, %267 : vector<16x16xf32>
    %270 = arith.addf %265, %269 : vector<16x16xf32>
    %271 = arith.addf %261, %270 : vector<16x16xf32>
    %c30 = arith.constant 30 : index
    %272 = memref.load %arg2[%c30] : memref<98xf32, #tpu.memory_space<smem>>
    %273 = vector.extract_strided_slice %229 {offsets = [4, 0], sizes = [16, 16], strides = [1, 1]} : vector<22x16xf32> to vector<16x16xf32>
    %274 = vector.broadcast %272 : f32 to vector<16x16xf32>
    %275 = arith.mulf %274, %273 : vector<16x16xf32>
    %c79 = arith.constant 79 : index
    %276 = memref.load %arg2[%c79] : memref<98xf32, #tpu.memory_space<smem>>
    %277 = vector.extract_strided_slice %231 {offsets = [4, 0], sizes = [16, 16], strides = [1, 1]} : vector<22x16xf32> to vector<16x16xf32>
    %278 = vector.broadcast %276 : f32 to vector<16x16xf32>
    %279 = arith.mulf %278, %277 : vector<16x16xf32>
    %280 = arith.addf %275, %279 : vector<16x16xf32>
    %281 = arith.addf %271, %280 : vector<16x16xf32>
    %c37 = arith.constant 37 : index
    %282 = memref.load %arg2[%c37] : memref<98xf32, #tpu.memory_space<smem>>
    %283 = vector.extract_strided_slice %229 {offsets = [5, 0], sizes = [16, 16], strides = [1, 1]} : vector<22x16xf32> to vector<16x16xf32>
    %284 = vector.broadcast %282 : f32 to vector<16x16xf32>
    %285 = arith.mulf %284, %283 : vector<16x16xf32>
    %c86 = arith.constant 86 : index
    %286 = memref.load %arg2[%c86] : memref<98xf32, #tpu.memory_space<smem>>
    %287 = vector.extract_strided_slice %231 {offsets = [5, 0], sizes = [16, 16], strides = [1, 1]} : vector<22x16xf32> to vector<16x16xf32>
    %288 = vector.broadcast %286 : f32 to vector<16x16xf32>
    %289 = arith.mulf %288, %287 : vector<16x16xf32>
    %290 = arith.addf %285, %289 : vector<16x16xf32>
    %291 = arith.addf %281, %290 : vector<16x16xf32>
    %c44 = arith.constant 44 : index
    %292 = memref.load %arg2[%c44] : memref<98xf32, #tpu.memory_space<smem>>
    %293 = vector.extract_strided_slice %229 {offsets = [6, 0], sizes = [16, 16], strides = [1, 1]} : vector<22x16xf32> to vector<16x16xf32>
    %294 = vector.broadcast %292 : f32 to vector<16x16xf32>
    %295 = arith.mulf %294, %293 : vector<16x16xf32>
    %c93 = arith.constant 93 : index
    %296 = memref.load %arg2[%c93] : memref<98xf32, #tpu.memory_space<smem>>
    %297 = vector.extract_strided_slice %231 {offsets = [6, 0], sizes = [16, 16], strides = [1, 1]} : vector<22x16xf32> to vector<16x16xf32>
    %298 = vector.broadcast %296 : f32 to vector<16x16xf32>
    %299 = arith.mulf %298, %297 : vector<16x16xf32>
    %300 = arith.addf %295, %299 : vector<16x16xf32>
    %301 = arith.addf %291, %300 : vector<16x16xf32>
    %c0_93 = arith.constant 0 : index
    %c5_94 = arith.constant 5 : index
    %c128_95 = arith.constant 128 : index
    %302 = vector.load %arg10[%c0_93, %c5_94, %c128_95] : memref<2x32x160xf32, #tpu.memory_space<vmem>>, vector<1x22x16xf32>
    %303 = vector.shape_cast %302 : vector<1x22x16xf32> to vector<22x16xf32>
    %c1_96 = arith.constant 1 : index
    %c5_97 = arith.constant 5 : index
    %c128_98 = arith.constant 128 : index
    %304 = vector.load %arg10[%c1_96, %c5_97, %c128_98] : memref<2x32x160xf32, #tpu.memory_space<vmem>>, vector<1x22x16xf32>
    %305 = vector.shape_cast %304 : vector<1x22x16xf32> to vector<22x16xf32>
    %c3 = arith.constant 3 : index
    %306 = memref.load %arg2[%c3] : memref<98xf32, #tpu.memory_space<smem>>
    %307 = vector.extract_strided_slice %303 {offsets = [0, 0], sizes = [16, 16], strides = [1, 1]} : vector<22x16xf32> to vector<16x16xf32>
    %308 = vector.broadcast %306 : f32 to vector<16x16xf32>
    %309 = arith.mulf %308, %307 : vector<16x16xf32>
    %c52 = arith.constant 52 : index
    %310 = memref.load %arg2[%c52] : memref<98xf32, #tpu.memory_space<smem>>
    %311 = vector.extract_strided_slice %305 {offsets = [0, 0], sizes = [16, 16], strides = [1, 1]} : vector<22x16xf32> to vector<16x16xf32>
    %312 = vector.broadcast %310 : f32 to vector<16x16xf32>
    %313 = arith.mulf %312, %311 : vector<16x16xf32>
    %314 = arith.addf %309, %313 : vector<16x16xf32>
    %315 = arith.addf %301, %314 : vector<16x16xf32>
    %c10 = arith.constant 10 : index
    %316 = memref.load %arg2[%c10] : memref<98xf32, #tpu.memory_space<smem>>
    %317 = vector.extract_strided_slice %303 {offsets = [1, 0], sizes = [16, 16], strides = [1, 1]} : vector<22x16xf32> to vector<16x16xf32>
    %318 = vector.broadcast %316 : f32 to vector<16x16xf32>
    %319 = arith.mulf %318, %317 : vector<16x16xf32>
    %c59 = arith.constant 59 : index
    %320 = memref.load %arg2[%c59] : memref<98xf32, #tpu.memory_space<smem>>
    %321 = vector.extract_strided_slice %305 {offsets = [1, 0], sizes = [16, 16], strides = [1, 1]} : vector<22x16xf32> to vector<16x16xf32>
    %322 = vector.broadcast %320 : f32 to vector<16x16xf32>
    %323 = arith.mulf %322, %321 : vector<16x16xf32>
    %324 = arith.addf %319, %323 : vector<16x16xf32>
    %325 = arith.addf %315, %324 : vector<16x16xf32>
    %c17 = arith.constant 17 : index
    %326 = memref.load %arg2[%c17] : memref<98xf32, #tpu.memory_space<smem>>
    %327 = vector.extract_strided_slice %303 {offsets = [2, 0], sizes = [16, 16], strides = [1, 1]} : vector<22x16xf32> to vector<16x16xf32>
    %328 = vector.broadcast %326 : f32 to vector<16x16xf32>
    %329 = arith.mulf %328, %327 : vector<16x16xf32>
    %c66 = arith.constant 66 : index
    %330 = memref.load %arg2[%c66] : memref<98xf32, #tpu.memory_space<smem>>
    %331 = vector.extract_strided_slice %305 {offsets = [2, 0], sizes = [16, 16], strides = [1, 1]} : vector<22x16xf32> to vector<16x16xf32>
    %332 = vector.broadcast %330 : f32 to vector<16x16xf32>
    %333 = arith.mulf %332, %331 : vector<16x16xf32>
    %334 = arith.addf %329, %333 : vector<16x16xf32>
    %335 = arith.addf %325, %334 : vector<16x16xf32>
    %c24_99 = arith.constant 24 : index
    %336 = memref.load %arg2[%c24_99] : memref<98xf32, #tpu.memory_space<smem>>
    %337 = vector.extract_strided_slice %303 {offsets = [3, 0], sizes = [16, 16], strides = [1, 1]} : vector<22x16xf32> to vector<16x16xf32>
    %338 = vector.broadcast %336 : f32 to vector<16x16xf32>
    %339 = arith.mulf %338, %337 : vector<16x16xf32>
    %c73 = arith.constant 73 : index
    %340 = memref.load %arg2[%c73] : memref<98xf32, #tpu.memory_space<smem>>
    %341 = vector.extract_strided_slice %305 {offsets = [3, 0], sizes = [16, 16], strides = [1, 1]} : vector<22x16xf32> to vector<16x16xf32>
    %342 = vector.broadcast %340 : f32 to vector<16x16xf32>
    %343 = arith.mulf %342, %341 : vector<16x16xf32>
    %344 = arith.addf %339, %343 : vector<16x16xf32>
    %345 = arith.addf %335, %344 : vector<16x16xf32>
    %c31 = arith.constant 31 : index
    %346 = memref.load %arg2[%c31] : memref<98xf32, #tpu.memory_space<smem>>
    %347 = vector.extract_strided_slice %303 {offsets = [4, 0], sizes = [16, 16], strides = [1, 1]} : vector<22x16xf32> to vector<16x16xf32>
    %348 = vector.broadcast %346 : f32 to vector<16x16xf32>
    %349 = arith.mulf %348, %347 : vector<16x16xf32>
    %c80 = arith.constant 80 : index
    %350 = memref.load %arg2[%c80] : memref<98xf32, #tpu.memory_space<smem>>
    %351 = vector.extract_strided_slice %305 {offsets = [4, 0], sizes = [16, 16], strides = [1, 1]} : vector<22x16xf32> to vector<16x16xf32>
    %352 = vector.broadcast %350 : f32 to vector<16x16xf32>
    %353 = arith.mulf %352, %351 : vector<16x16xf32>
    %354 = arith.addf %349, %353 : vector<16x16xf32>
    %355 = arith.addf %345, %354 : vector<16x16xf32>
    %c38 = arith.constant 38 : index
    %356 = memref.load %arg2[%c38] : memref<98xf32, #tpu.memory_space<smem>>
    %357 = vector.extract_strided_slice %303 {offsets = [5, 0], sizes = [16, 16], strides = [1, 1]} : vector<22x16xf32> to vector<16x16xf32>
    %358 = vector.broadcast %356 : f32 to vector<16x16xf32>
    %359 = arith.mulf %358, %357 : vector<16x16xf32>
    %c87 = arith.constant 87 : index
    %360 = memref.load %arg2[%c87] : memref<98xf32, #tpu.memory_space<smem>>
    %361 = vector.extract_strided_slice %305 {offsets = [5, 0], sizes = [16, 16], strides = [1, 1]} : vector<22x16xf32> to vector<16x16xf32>
    %362 = vector.broadcast %360 : f32 to vector<16x16xf32>
    %363 = arith.mulf %362, %361 : vector<16x16xf32>
    %364 = arith.addf %359, %363 : vector<16x16xf32>
    %365 = arith.addf %355, %364 : vector<16x16xf32>
    %c45 = arith.constant 45 : index
    %366 = memref.load %arg2[%c45] : memref<98xf32, #tpu.memory_space<smem>>
    %367 = vector.extract_strided_slice %303 {offsets = [6, 0], sizes = [16, 16], strides = [1, 1]} : vector<22x16xf32> to vector<16x16xf32>
    %368 = vector.broadcast %366 : f32 to vector<16x16xf32>
    %369 = arith.mulf %368, %367 : vector<16x16xf32>
    %c94 = arith.constant 94 : index
    %370 = memref.load %arg2[%c94] : memref<98xf32, #tpu.memory_space<smem>>
    %371 = vector.extract_strided_slice %305 {offsets = [6, 0], sizes = [16, 16], strides = [1, 1]} : vector<22x16xf32> to vector<16x16xf32>
    %372 = vector.broadcast %370 : f32 to vector<16x16xf32>
    %373 = arith.mulf %372, %371 : vector<16x16xf32>
    %374 = arith.addf %369, %373 : vector<16x16xf32>
    %375 = arith.addf %365, %374 : vector<16x16xf32>
    %c0_100 = arith.constant 0 : index
    %c5_101 = arith.constant 5 : index
    %c129 = arith.constant 129 : index
    %376 = vector.load %arg10[%c0_100, %c5_101, %c129] : memref<2x32x160xf32, #tpu.memory_space<vmem>>, vector<1x22x16xf32>
    %377 = vector.shape_cast %376 : vector<1x22x16xf32> to vector<22x16xf32>
    %c1_102 = arith.constant 1 : index
    %c5_103 = arith.constant 5 : index
    %c129_104 = arith.constant 129 : index
    %378 = vector.load %arg10[%c1_102, %c5_103, %c129_104] : memref<2x32x160xf32, #tpu.memory_space<vmem>>, vector<1x22x16xf32>
    %379 = vector.shape_cast %378 : vector<1x22x16xf32> to vector<22x16xf32>
    %c4 = arith.constant 4 : index
    %380 = memref.load %arg2[%c4] : memref<98xf32, #tpu.memory_space<smem>>
    %381 = vector.extract_strided_slice %377 {offsets = [0, 0], sizes = [16, 16], strides = [1, 1]} : vector<22x16xf32> to vector<16x16xf32>
    %382 = vector.broadcast %380 : f32 to vector<16x16xf32>
    %383 = arith.mulf %382, %381 : vector<16x16xf32>
    %c53 = arith.constant 53 : index
    %384 = memref.load %arg2[%c53] : memref<98xf32, #tpu.memory_space<smem>>
    %385 = vector.extract_strided_slice %379 {offsets = [0, 0], sizes = [16, 16], strides = [1, 1]} : vector<22x16xf32> to vector<16x16xf32>
    %386 = vector.broadcast %384 : f32 to vector<16x16xf32>
    %387 = arith.mulf %386, %385 : vector<16x16xf32>
    %388 = arith.addf %383, %387 : vector<16x16xf32>
    %389 = arith.addf %375, %388 : vector<16x16xf32>
    %c11 = arith.constant 11 : index
    %390 = memref.load %arg2[%c11] : memref<98xf32, #tpu.memory_space<smem>>
    %391 = vector.extract_strided_slice %377 {offsets = [1, 0], sizes = [16, 16], strides = [1, 1]} : vector<22x16xf32> to vector<16x16xf32>
    %392 = vector.broadcast %390 : f32 to vector<16x16xf32>
    %393 = arith.mulf %392, %391 : vector<16x16xf32>
    %c60 = arith.constant 60 : index
    %394 = memref.load %arg2[%c60] : memref<98xf32, #tpu.memory_space<smem>>
    %395 = vector.extract_strided_slice %379 {offsets = [1, 0], sizes = [16, 16], strides = [1, 1]} : vector<22x16xf32> to vector<16x16xf32>
    %396 = vector.broadcast %394 : f32 to vector<16x16xf32>
    %397 = arith.mulf %396, %395 : vector<16x16xf32>
    %398 = arith.addf %393, %397 : vector<16x16xf32>
    %399 = arith.addf %389, %398 : vector<16x16xf32>
    %c18 = arith.constant 18 : index
    %400 = memref.load %arg2[%c18] : memref<98xf32, #tpu.memory_space<smem>>
    %401 = vector.extract_strided_slice %377 {offsets = [2, 0], sizes = [16, 16], strides = [1, 1]} : vector<22x16xf32> to vector<16x16xf32>
    %402 = vector.broadcast %400 : f32 to vector<16x16xf32>
    %403 = arith.mulf %402, %401 : vector<16x16xf32>
    %c67 = arith.constant 67 : index
    %404 = memref.load %arg2[%c67] : memref<98xf32, #tpu.memory_space<smem>>
    %405 = vector.extract_strided_slice %379 {offsets = [2, 0], sizes = [16, 16], strides = [1, 1]} : vector<22x16xf32> to vector<16x16xf32>
    %406 = vector.broadcast %404 : f32 to vector<16x16xf32>
    %407 = arith.mulf %406, %405 : vector<16x16xf32>
    %408 = arith.addf %403, %407 : vector<16x16xf32>
    %409 = arith.addf %399, %408 : vector<16x16xf32>
    %c25 = arith.constant 25 : index
    %410 = memref.load %arg2[%c25] : memref<98xf32, #tpu.memory_space<smem>>
    %411 = vector.extract_strided_slice %377 {offsets = [3, 0], sizes = [16, 16], strides = [1, 1]} : vector<22x16xf32> to vector<16x16xf32>
    %412 = vector.broadcast %410 : f32 to vector<16x16xf32>
    %413 = arith.mulf %412, %411 : vector<16x16xf32>
    %c74 = arith.constant 74 : index
    %414 = memref.load %arg2[%c74] : memref<98xf32, #tpu.memory_space<smem>>
    %415 = vector.extract_strided_slice %379 {offsets = [3, 0], sizes = [16, 16], strides = [1, 1]} : vector<22x16xf32> to vector<16x16xf32>
    %416 = vector.broadcast %414 : f32 to vector<16x16xf32>
    %417 = arith.mulf %416, %415 : vector<16x16xf32>
    %418 = arith.addf %413, %417 : vector<16x16xf32>
    %419 = arith.addf %409, %418 : vector<16x16xf32>
    %c32 = arith.constant 32 : index
    %420 = memref.load %arg2[%c32] : memref<98xf32, #tpu.memory_space<smem>>
    %421 = vector.extract_strided_slice %377 {offsets = [4, 0], sizes = [16, 16], strides = [1, 1]} : vector<22x16xf32> to vector<16x16xf32>
    %422 = vector.broadcast %420 : f32 to vector<16x16xf32>
    %423 = arith.mulf %422, %421 : vector<16x16xf32>
    %c81 = arith.constant 81 : index
    %424 = memref.load %arg2[%c81] : memref<98xf32, #tpu.memory_space<smem>>
    %425 = vector.extract_strided_slice %379 {offsets = [4, 0], sizes = [16, 16], strides = [1, 1]} : vector<22x16xf32> to vector<16x16xf32>
    %426 = vector.broadcast %424 : f32 to vector<16x16xf32>
    %427 = arith.mulf %426, %425 : vector<16x16xf32>
    %428 = arith.addf %423, %427 : vector<16x16xf32>
    %429 = arith.addf %419, %428 : vector<16x16xf32>
    %c39 = arith.constant 39 : index
    %430 = memref.load %arg2[%c39] : memref<98xf32, #tpu.memory_space<smem>>
    %431 = vector.extract_strided_slice %377 {offsets = [5, 0], sizes = [16, 16], strides = [1, 1]} : vector<22x16xf32> to vector<16x16xf32>
    %432 = vector.broadcast %430 : f32 to vector<16x16xf32>
    %433 = arith.mulf %432, %431 : vector<16x16xf32>
    %c88 = arith.constant 88 : index
    %434 = memref.load %arg2[%c88] : memref<98xf32, #tpu.memory_space<smem>>
    %435 = vector.extract_strided_slice %379 {offsets = [5, 0], sizes = [16, 16], strides = [1, 1]} : vector<22x16xf32> to vector<16x16xf32>
    %436 = vector.broadcast %434 : f32 to vector<16x16xf32>
    %437 = arith.mulf %436, %435 : vector<16x16xf32>
    %438 = arith.addf %433, %437 : vector<16x16xf32>
    %439 = arith.addf %429, %438 : vector<16x16xf32>
    %c46 = arith.constant 46 : index
    %440 = memref.load %arg2[%c46] : memref<98xf32, #tpu.memory_space<smem>>
    %441 = vector.extract_strided_slice %377 {offsets = [6, 0], sizes = [16, 16], strides = [1, 1]} : vector<22x16xf32> to vector<16x16xf32>
    %442 = vector.broadcast %440 : f32 to vector<16x16xf32>
    %443 = arith.mulf %442, %441 : vector<16x16xf32>
    %c95 = arith.constant 95 : index
    %444 = memref.load %arg2[%c95] : memref<98xf32, #tpu.memory_space<smem>>
    %445 = vector.extract_strided_slice %379 {offsets = [6, 0], sizes = [16, 16], strides = [1, 1]} : vector<22x16xf32> to vector<16x16xf32>
    %446 = vector.broadcast %444 : f32 to vector<16x16xf32>
    %447 = arith.mulf %446, %445 : vector<16x16xf32>
    %448 = arith.addf %443, %447 : vector<16x16xf32>
    %449 = arith.addf %439, %448 : vector<16x16xf32>
    %c0_105 = arith.constant 0 : index
    %c5_106 = arith.constant 5 : index
    %c130 = arith.constant 130 : index
    %450 = vector.load %arg10[%c0_105, %c5_106, %c130] : memref<2x32x160xf32, #tpu.memory_space<vmem>>, vector<1x22x16xf32>
    %451 = vector.shape_cast %450 : vector<1x22x16xf32> to vector<22x16xf32>
    %c1_107 = arith.constant 1 : index
    %c5_108 = arith.constant 5 : index
    %c130_109 = arith.constant 130 : index
    %452 = vector.load %arg10[%c1_107, %c5_108, %c130_109] : memref<2x32x160xf32, #tpu.memory_space<vmem>>, vector<1x22x16xf32>
    %453 = vector.shape_cast %452 : vector<1x22x16xf32> to vector<22x16xf32>
    %c5_110 = arith.constant 5 : index
    %454 = memref.load %arg2[%c5_110] : memref<98xf32, #tpu.memory_space<smem>>
    %455 = vector.extract_strided_slice %451 {offsets = [0, 0], sizes = [16, 16], strides = [1, 1]} : vector<22x16xf32> to vector<16x16xf32>
    %456 = vector.broadcast %454 : f32 to vector<16x16xf32>
    %457 = arith.mulf %456, %455 : vector<16x16xf32>
    %c54 = arith.constant 54 : index
    %458 = memref.load %arg2[%c54] : memref<98xf32, #tpu.memory_space<smem>>
    %459 = vector.extract_strided_slice %453 {offsets = [0, 0], sizes = [16, 16], strides = [1, 1]} : vector<22x16xf32> to vector<16x16xf32>
    %460 = vector.broadcast %458 : f32 to vector<16x16xf32>
    %461 = arith.mulf %460, %459 : vector<16x16xf32>
    %462 = arith.addf %457, %461 : vector<16x16xf32>
    %463 = arith.addf %449, %462 : vector<16x16xf32>
    %c12 = arith.constant 12 : index
    %464 = memref.load %arg2[%c12] : memref<98xf32, #tpu.memory_space<smem>>
    %465 = vector.extract_strided_slice %451 {offsets = [1, 0], sizes = [16, 16], strides = [1, 1]} : vector<22x16xf32> to vector<16x16xf32>
    %466 = vector.broadcast %464 : f32 to vector<16x16xf32>
    %467 = arith.mulf %466, %465 : vector<16x16xf32>
    %c61 = arith.constant 61 : index
    %468 = memref.load %arg2[%c61] : memref<98xf32, #tpu.memory_space<smem>>
    %469 = vector.extract_strided_slice %453 {offsets = [1, 0], sizes = [16, 16], strides = [1, 1]} : vector<22x16xf32> to vector<16x16xf32>
    %470 = vector.broadcast %468 : f32 to vector<16x16xf32>
    %471 = arith.mulf %470, %469 : vector<16x16xf32>
    %472 = arith.addf %467, %471 : vector<16x16xf32>
    %473 = arith.addf %463, %472 : vector<16x16xf32>
    %c19 = arith.constant 19 : index
    %474 = memref.load %arg2[%c19] : memref<98xf32, #tpu.memory_space<smem>>
    %475 = vector.extract_strided_slice %451 {offsets = [2, 0], sizes = [16, 16], strides = [1, 1]} : vector<22x16xf32> to vector<16x16xf32>
    %476 = vector.broadcast %474 : f32 to vector<16x16xf32>
    %477 = arith.mulf %476, %475 : vector<16x16xf32>
    %c68 = arith.constant 68 : index
    %478 = memref.load %arg2[%c68] : memref<98xf32, #tpu.memory_space<smem>>
    %479 = vector.extract_strided_slice %453 {offsets = [2, 0], sizes = [16, 16], strides = [1, 1]} : vector<22x16xf32> to vector<16x16xf32>
    %480 = vector.broadcast %478 : f32 to vector<16x16xf32>
    %481 = arith.mulf %480, %479 : vector<16x16xf32>
    %482 = arith.addf %477, %481 : vector<16x16xf32>
    %483 = arith.addf %473, %482 : vector<16x16xf32>
    %c26 = arith.constant 26 : index
    %484 = memref.load %arg2[%c26] : memref<98xf32, #tpu.memory_space<smem>>
    %485 = vector.extract_strided_slice %451 {offsets = [3, 0], sizes = [16, 16], strides = [1, 1]} : vector<22x16xf32> to vector<16x16xf32>
    %486 = vector.broadcast %484 : f32 to vector<16x16xf32>
    %487 = arith.mulf %486, %485 : vector<16x16xf32>
    %c75 = arith.constant 75 : index
    %488 = memref.load %arg2[%c75] : memref<98xf32, #tpu.memory_space<smem>>
    %489 = vector.extract_strided_slice %453 {offsets = [3, 0], sizes = [16, 16], strides = [1, 1]} : vector<22x16xf32> to vector<16x16xf32>
    %490 = vector.broadcast %488 : f32 to vector<16x16xf32>
    %491 = arith.mulf %490, %489 : vector<16x16xf32>
    %492 = arith.addf %487, %491 : vector<16x16xf32>
    %493 = arith.addf %483, %492 : vector<16x16xf32>
    %c33 = arith.constant 33 : index
    %494 = memref.load %arg2[%c33] : memref<98xf32, #tpu.memory_space<smem>>
    %495 = vector.extract_strided_slice %451 {offsets = [4, 0], sizes = [16, 16], strides = [1, 1]} : vector<22x16xf32> to vector<16x16xf32>
    %496 = vector.broadcast %494 : f32 to vector<16x16xf32>
    %497 = arith.mulf %496, %495 : vector<16x16xf32>
    %c82 = arith.constant 82 : index
    %498 = memref.load %arg2[%c82] : memref<98xf32, #tpu.memory_space<smem>>
    %499 = vector.extract_strided_slice %453 {offsets = [4, 0], sizes = [16, 16], strides = [1, 1]} : vector<22x16xf32> to vector<16x16xf32>
    %500 = vector.broadcast %498 : f32 to vector<16x16xf32>
    %501 = arith.mulf %500, %499 : vector<16x16xf32>
    %502 = arith.addf %497, %501 : vector<16x16xf32>
    %503 = arith.addf %493, %502 : vector<16x16xf32>
    %c40 = arith.constant 40 : index
    %504 = memref.load %arg2[%c40] : memref<98xf32, #tpu.memory_space<smem>>
    %505 = vector.extract_strided_slice %451 {offsets = [5, 0], sizes = [16, 16], strides = [1, 1]} : vector<22x16xf32> to vector<16x16xf32>
    %506 = vector.broadcast %504 : f32 to vector<16x16xf32>
    %507 = arith.mulf %506, %505 : vector<16x16xf32>
    %c89 = arith.constant 89 : index
    %508 = memref.load %arg2[%c89] : memref<98xf32, #tpu.memory_space<smem>>
    %509 = vector.extract_strided_slice %453 {offsets = [5, 0], sizes = [16, 16], strides = [1, 1]} : vector<22x16xf32> to vector<16x16xf32>
    %510 = vector.broadcast %508 : f32 to vector<16x16xf32>
    %511 = arith.mulf %510, %509 : vector<16x16xf32>
    %512 = arith.addf %507, %511 : vector<16x16xf32>
    %513 = arith.addf %503, %512 : vector<16x16xf32>
    %c47 = arith.constant 47 : index
    %514 = memref.load %arg2[%c47] : memref<98xf32, #tpu.memory_space<smem>>
    %515 = vector.extract_strided_slice %451 {offsets = [6, 0], sizes = [16, 16], strides = [1, 1]} : vector<22x16xf32> to vector<16x16xf32>
    %516 = vector.broadcast %514 : f32 to vector<16x16xf32>
    %517 = arith.mulf %516, %515 : vector<16x16xf32>
    %c96 = arith.constant 96 : index
    %518 = memref.load %arg2[%c96] : memref<98xf32, #tpu.memory_space<smem>>
    %519 = vector.extract_strided_slice %453 {offsets = [6, 0], sizes = [16, 16], strides = [1, 1]} : vector<22x16xf32> to vector<16x16xf32>
    %520 = vector.broadcast %518 : f32 to vector<16x16xf32>
    %521 = arith.mulf %520, %519 : vector<16x16xf32>
    %522 = arith.addf %517, %521 : vector<16x16xf32>
    %523 = arith.addf %513, %522 : vector<16x16xf32>
    %c0_111 = arith.constant 0 : index
    %c5_112 = arith.constant 5 : index
    %c131 = arith.constant 131 : index
    %524 = vector.load %arg10[%c0_111, %c5_112, %c131] : memref<2x32x160xf32, #tpu.memory_space<vmem>>, vector<1x22x16xf32>
    %525 = vector.shape_cast %524 : vector<1x22x16xf32> to vector<22x16xf32>
    %c1_113 = arith.constant 1 : index
    %c5_114 = arith.constant 5 : index
    %c131_115 = arith.constant 131 : index
    %526 = vector.load %arg10[%c1_113, %c5_114, %c131_115] : memref<2x32x160xf32, #tpu.memory_space<vmem>>, vector<1x22x16xf32>
    %527 = vector.shape_cast %526 : vector<1x22x16xf32> to vector<22x16xf32>
    %c6 = arith.constant 6 : index
    %528 = memref.load %arg2[%c6] : memref<98xf32, #tpu.memory_space<smem>>
    %529 = vector.extract_strided_slice %525 {offsets = [0, 0], sizes = [16, 16], strides = [1, 1]} : vector<22x16xf32> to vector<16x16xf32>
    %530 = vector.broadcast %528 : f32 to vector<16x16xf32>
    %531 = arith.mulf %530, %529 : vector<16x16xf32>
    %c55 = arith.constant 55 : index
    %532 = memref.load %arg2[%c55] : memref<98xf32, #tpu.memory_space<smem>>
    %533 = vector.extract_strided_slice %527 {offsets = [0, 0], sizes = [16, 16], strides = [1, 1]} : vector<22x16xf32> to vector<16x16xf32>
    %534 = vector.broadcast %532 : f32 to vector<16x16xf32>
    %535 = arith.mulf %534, %533 : vector<16x16xf32>
    %536 = arith.addf %531, %535 : vector<16x16xf32>
    %537 = arith.addf %523, %536 : vector<16x16xf32>
    %c13 = arith.constant 13 : index
    %538 = memref.load %arg2[%c13] : memref<98xf32, #tpu.memory_space<smem>>
    %539 = vector.extract_strided_slice %525 {offsets = [1, 0], sizes = [16, 16], strides = [1, 1]} : vector<22x16xf32> to vector<16x16xf32>
    %540 = vector.broadcast %538 : f32 to vector<16x16xf32>
    %541 = arith.mulf %540, %539 : vector<16x16xf32>
    %c62 = arith.constant 62 : index
    %542 = memref.load %arg2[%c62] : memref<98xf32, #tpu.memory_space<smem>>
    %543 = vector.extract_strided_slice %527 {offsets = [1, 0], sizes = [16, 16], strides = [1, 1]} : vector<22x16xf32> to vector<16x16xf32>
    %544 = vector.broadcast %542 : f32 to vector<16x16xf32>
    %545 = arith.mulf %544, %543 : vector<16x16xf32>
    %546 = arith.addf %541, %545 : vector<16x16xf32>
    %547 = arith.addf %537, %546 : vector<16x16xf32>
    %c20 = arith.constant 20 : index
    %548 = memref.load %arg2[%c20] : memref<98xf32, #tpu.memory_space<smem>>
    %549 = vector.extract_strided_slice %525 {offsets = [2, 0], sizes = [16, 16], strides = [1, 1]} : vector<22x16xf32> to vector<16x16xf32>
    %550 = vector.broadcast %548 : f32 to vector<16x16xf32>
    %551 = arith.mulf %550, %549 : vector<16x16xf32>
    %c69 = arith.constant 69 : index
    %552 = memref.load %arg2[%c69] : memref<98xf32, #tpu.memory_space<smem>>
    %553 = vector.extract_strided_slice %527 {offsets = [2, 0], sizes = [16, 16], strides = [1, 1]} : vector<22x16xf32> to vector<16x16xf32>
    %554 = vector.broadcast %552 : f32 to vector<16x16xf32>
    %555 = arith.mulf %554, %553 : vector<16x16xf32>
    %556 = arith.addf %551, %555 : vector<16x16xf32>
    %557 = arith.addf %547, %556 : vector<16x16xf32>
    %c27 = arith.constant 27 : index
    %558 = memref.load %arg2[%c27] : memref<98xf32, #tpu.memory_space<smem>>
    %559 = vector.extract_strided_slice %525 {offsets = [3, 0], sizes = [16, 16], strides = [1, 1]} : vector<22x16xf32> to vector<16x16xf32>
    %560 = vector.broadcast %558 : f32 to vector<16x16xf32>
    %561 = arith.mulf %560, %559 : vector<16x16xf32>
    %c76 = arith.constant 76 : index
    %562 = memref.load %arg2[%c76] : memref<98xf32, #tpu.memory_space<smem>>
    %563 = vector.extract_strided_slice %527 {offsets = [3, 0], sizes = [16, 16], strides = [1, 1]} : vector<22x16xf32> to vector<16x16xf32>
    %564 = vector.broadcast %562 : f32 to vector<16x16xf32>
    %565 = arith.mulf %564, %563 : vector<16x16xf32>
    %566 = arith.addf %561, %565 : vector<16x16xf32>
    %567 = arith.addf %557, %566 : vector<16x16xf32>
    %c34 = arith.constant 34 : index
    %568 = memref.load %arg2[%c34] : memref<98xf32, #tpu.memory_space<smem>>
    %569 = vector.extract_strided_slice %525 {offsets = [4, 0], sizes = [16, 16], strides = [1, 1]} : vector<22x16xf32> to vector<16x16xf32>
    %570 = vector.broadcast %568 : f32 to vector<16x16xf32>
    %571 = arith.mulf %570, %569 : vector<16x16xf32>
    %c83 = arith.constant 83 : index
    %572 = memref.load %arg2[%c83] : memref<98xf32, #tpu.memory_space<smem>>
    %573 = vector.extract_strided_slice %527 {offsets = [4, 0], sizes = [16, 16], strides = [1, 1]} : vector<22x16xf32> to vector<16x16xf32>
    %574 = vector.broadcast %572 : f32 to vector<16x16xf32>
    %575 = arith.mulf %574, %573 : vector<16x16xf32>
    %576 = arith.addf %571, %575 : vector<16x16xf32>
    %577 = arith.addf %567, %576 : vector<16x16xf32>
    %c41 = arith.constant 41 : index
    %578 = memref.load %arg2[%c41] : memref<98xf32, #tpu.memory_space<smem>>
    %579 = vector.extract_strided_slice %525 {offsets = [5, 0], sizes = [16, 16], strides = [1, 1]} : vector<22x16xf32> to vector<16x16xf32>
    %580 = vector.broadcast %578 : f32 to vector<16x16xf32>
    %581 = arith.mulf %580, %579 : vector<16x16xf32>
    %c90 = arith.constant 90 : index
    %582 = memref.load %arg2[%c90] : memref<98xf32, #tpu.memory_space<smem>>
    %583 = vector.extract_strided_slice %527 {offsets = [5, 0], sizes = [16, 16], strides = [1, 1]} : vector<22x16xf32> to vector<16x16xf32>
    %584 = vector.broadcast %582 : f32 to vector<16x16xf32>
    %585 = arith.mulf %584, %583 : vector<16x16xf32>
    %586 = arith.addf %581, %585 : vector<16x16xf32>
    %587 = arith.addf %577, %586 : vector<16x16xf32>
    %c48 = arith.constant 48 : index
    %588 = memref.load %arg2[%c48] : memref<98xf32, #tpu.memory_space<smem>>
    %589 = vector.extract_strided_slice %525 {offsets = [6, 0], sizes = [16, 16], strides = [1, 1]} : vector<22x16xf32> to vector<16x16xf32>
    %590 = vector.broadcast %588 : f32 to vector<16x16xf32>
    %591 = arith.mulf %590, %589 : vector<16x16xf32>
    %c97 = arith.constant 97 : index
    %592 = memref.load %arg2[%c97] : memref<98xf32, #tpu.memory_space<smem>>
    %593 = vector.extract_strided_slice %527 {offsets = [6, 0], sizes = [16, 16], strides = [1, 1]} : vector<22x16xf32> to vector<16x16xf32>
    %594 = vector.broadcast %592 : f32 to vector<16x16xf32>
    %595 = arith.mulf %594, %593 : vector<16x16xf32>
    %596 = arith.addf %591, %595 : vector<16x16xf32>
    %597 = arith.addf %587, %596 : vector<16x16xf32>
    %598 = arith.negf %597 : vector<16x16xf32>
    %599 = math.exp %598 : vector<16x16xf32>
    %cst_116 = arith.constant 1.000000e+00 : f32
    %600 = vector.broadcast %cst_116 : f32 to vector<16x16xf32>
    %601 = arith.addf %600, %599 : vector<16x16xf32>
    %602 = arith.divf %600, %601 : vector<16x16xf32>
    %c0_117 = arith.constant 0 : index
    %c0_118 = arith.constant 0 : index
    %c0_119 = arith.constant 0 : index
    %c0_120 = arith.constant 0 : index
    %603 = vector.load %arg3[%c0_117, %c0_118, %c0_119, %c0_120] : memref<1x8x16x16xf32, #tpu.memory_space<vmem>>, vector<1x8x16x16xf32>
    %604 = vector.shape_cast %603 : vector<1x8x16x16xf32> to vector<8x16x16xf32>
    %c0_121 = arith.constant 0 : index
    %c0_122 = arith.constant 0 : index
    %c0_123 = arith.constant 0 : index
    %c0_124 = arith.constant 0 : index
    %605 = vector.load %arg9[%c0_121, %c0_122, %c0_123, %c0_124] : memref<1x12x16x16xf32, #tpu.memory_space<vmem>>, vector<1x8x16x16xf32>
    %606 = vector.shape_cast %605 : vector<1x8x16x16xf32> to vector<8x16x16xf32>
    %607 = vector.shape_cast %604 : vector<8x16x16xf32> to vector<1x8x16x16xf32>
    tpu.vector_store %arg9[%c0_121, %c0_122, %c0_123, %c0_124], %607 {strides = array<i32>} : memref<1x12x16x16xf32, #tpu.memory_space<vmem>>, vector<1x8x16x16xf32>,
    %c0_125 = arith.constant 0 : index
    %c0_126 = arith.constant 0 : index
    %c0_127 = arith.constant 0 : index
    %c0_128 = arith.constant 0 : index
    %608 = vector.load %arg4[%c0_125, %c0_126, %c0_127, %c0_128] : memref<1x4x16x16xf32, #tpu.memory_space<vmem>>, vector<1x4x16x16xf32>
    %609 = vector.shape_cast %608 : vector<1x4x16x16xf32> to vector<4x16x16xf32>
    %610 = vector.shape_cast %602 : vector<16x16xf32> to vector<1x16x16xf32>
    %611 = vector.broadcast %610 : vector<1x16x16xf32> to vector<4x16x16xf32>
    %612 = arith.mulf %609, %611 : vector<4x16x16xf32>
    %c0_129 = arith.constant 0 : index
    %c8_130 = arith.constant 8 : index
    %c0_131 = arith.constant 0 : index
    %c0_132 = arith.constant 0 : index
    %613 = vector.load %arg9[%c0_129, %c8_130, %c0_131, %c0_132] : memref<1x12x16x16xf32, #tpu.memory_space<vmem>>, vector<1x4x16x16xf32>
    %614 = vector.shape_cast %613 : vector<1x4x16x16xf32> to vector<4x16x16xf32>
    %615 = vector.shape_cast %612 : vector<4x16x16xf32> to vector<1x4x16x16xf32>
    tpu.vector_store %arg9[%c0_129, %c8_130, %c0_131, %c0_132], %615 {strides = array<i32>} : memref<1x12x16x16xf32, #tpu.memory_space<vmem>>, vector<1x4x16x16xf32>,
    return
  }
  func.func @transform_0(%arg0: i32, %arg1: i32) -> i32 {
    %c0_i32 = arith.constant 0 : i32
    %c0_i32_0 = arith.constant 0 : i32
    return %c0_i32 : i32
  }
  func.func @transform_1(%arg0: i32, %arg1: i32) -> (i32, i32, i32, i32) {
    %c0_i32 = arith.constant 0 : i32
    %c0_i32_0 = arith.constant 0 : i32
    %c0_i32_1 = arith.constant 0 : i32
    return %arg0, %c0_i32, %arg1, %c0_i32_0 : i32, i32, i32, i32
  }
  func.func @transform_2(%arg0: i32, %arg1: i32) -> (i32, i32, i32, i32) {
    %c0_i32 = arith.constant 0 : i32
    %c0_i32_0 = arith.constant 0 : i32
    %c0_i32_1 = arith.constant 0 : i32
    return %arg0, %c0_i32, %arg1, %c0_i32_0 : i32, i32, i32, i32
  }
  func.func @transform_3(%arg0: i32, %arg1: i32) -> (i32, i32, i32, i32) {
    %c2_i32 = arith.constant 2 : i32
    %0 = arith.muli %arg1, %c2_i32 : i32
    %c1_i32 = arith.constant 1 : i32
    %1 = arith.subi %0, %c1_i32 : i32
    %c0_i32 = arith.constant 0 : i32
    %2 = arith.maxsi %1, %c0_i32 : i32
    %c0_i32_0 = arith.constant 0 : i32
    %c0_i32_1 = arith.constant 0 : i32
    %c0_i32_2 = arith.constant 0 : i32
    return %arg0, %c0_i32_0, %2, %c0_i32_1 : i32, i32, i32, i32
  }
  func.func @transform_4(%arg0: i32, %arg1: i32) -> (i32, i32, i32, i32) {
    %c2_i32 = arith.constant 2 : i32
    %0 = arith.muli %arg1, %c2_i32 : i32
    %c1_i32 = arith.constant 1 : i32
    %1 = arith.subi %0, %c1_i32 : i32
    %c0_i32 = arith.constant 0 : i32
    %2 = arith.maxsi %1, %c0_i32 : i32
    %c0_i32_0 = arith.constant 0 : i32
    %c0_i32_1 = arith.constant 0 : i32
    %c0_i32_2 = arith.constant 0 : i32
    return %arg0, %c0_i32_0, %2, %c0_i32_1 : i32, i32, i32, i32
  }
  func.func @transform_5(%arg0: i32, %arg1: i32) -> (i32, i32, i32, i32) {
    %c1_i32 = arith.constant 1 : i32
    %0 = arith.addi %arg1, %c1_i32 : i32
    %c2_i32 = arith.constant 2 : i32
    %1 = arith.muli %0, %c2_i32 : i32
    %c1_i32_0 = arith.constant 1 : i32
    %2 = arith.minsi %1, %c1_i32_0 : i32
    %c0_i32 = arith.constant 0 : i32
    %c0_i32_1 = arith.constant 0 : i32
    %c0_i32_2 = arith.constant 0 : i32
    return %arg0, %c0_i32, %2, %c0_i32_1 : i32, i32, i32, i32
  }
  func.func @transform_6(%arg0: i32, %arg1: i32) -> (i32, i32, i32, i32) {
    %c1_i32 = arith.constant 1 : i32
    %0 = arith.addi %arg1, %c1_i32 : i32
    %c2_i32 = arith.constant 2 : i32
    %1 = arith.muli %0, %c2_i32 : i32
    %c1_i32_0 = arith.constant 1 : i32
    %2 = arith.minsi %1, %c1_i32_0 : i32
    %c0_i32 = arith.constant 0 : i32
    %c0_i32_1 = arith.constant 0 : i32
    %c0_i32_2 = arith.constant 0 : i32
    return %arg0, %c0_i32, %2, %c0_i32_1 : i32, i32, i32, i32
  }
  func.func @transform_7(%arg0: i32, %arg1: i32) -> (i32, i32, i32, i32) {
    %c0_i32 = arith.constant 0 : i32
    %c0_i32_0 = arith.constant 0 : i32
    %c0_i32_1 = arith.constant 0 : i32
    return %arg0, %c0_i32, %arg1, %c0_i32_0 : i32, i32, i32, i32
  }
}

</mosaic_0001>

<llo_original>
// kernel: tpu_custom_call.1
$region0: #{tpu_custom_call.1}
  #allocation0 [shape = 'u32[]', space=smem, size = 0x4, offset = 0x4, fixed_abs, tag = 'smem constant byte address 0x4 - core index']
  #allocation1 [shape = 'u32[72,128]{1,0:T(1,128)}', space=vmem, size = 0x9000, scoped, tag = 'internal scratch']
  #allocation2 [shape = 'f32[2,32,160]{2,1,0:T(8,128)}', space=vmem, size = 0x10000, scoped, tag = 'scratch operand']
  %s0 = inlined_call_operand.hbm [shape: f32[98], index: 0, kind: input, shape index: {}]
  %s1 = inlined_call_operand.hbm [shape: f32[2,8,16,16], index: 1, kind: input, shape index: {}]
  %s2 = inlined_call_operand.hbm [shape: f32[2,4,16,16], index: 2, kind: input, shape index: {}]
  %s3 = inlined_call_operand.hbm [shape: f32[2,8,16,16], index: 3, kind: input, shape index: {}]
  %s4 = inlined_call_operand.hbm [shape: f32[2,4,16,16], index: 4, kind: input, shape index: {}]
  %s5 = inlined_call_operand.hbm [shape: f32[2,8,16,16], index: 5, kind: input, shape index: {}]
  %s6 = inlined_call_operand.hbm [shape: f32[2,4,16,16], index: 6, kind: input, shape index: {}]
  %s7 = inlined_call_operand.hbm [shape: f32[2,12,16,16], index: 7, kind: output, shape index: {}]
  %s8 = sld [smem:[#allocation0]]
  $region89: #{tpu_custom_call.1} parent=0
    _
  %s10 = ssub.s32 1, %s8
  %s11 = scalar_select 0, %s10, %s8
  $region1: #{tpu_custom_call.1} parent=0
    #allocation3 [shape = 'u8[512]{0}', space=smem, size = 0x200, scoped, tag = 'input window, operand 0, single buffered']
    #allocation4 [shape = 's32[2]{0}', space=sflag, size = 0x8, scoped, tag = 'scoped memory for tpu_custom_call.1']
    #allocation5 [shape = 's32[2]{0}', space=sflag, size = 0x8, scoped, tag = 'scoped memory for tpu_custom_call.1']
    #allocation6 [shape = 's32[2]{0}', space=sflag, size = 0x8, scoped, tag = 'scoped memory for tpu_custom_call.1']
    #allocation7 [shape = 'u8[131072]{0}', space=vmem, size = 0x20000, scoped, tag = 'input window, operand 1']
    #allocation8 [shape = 'u8[65536]{0}', space=vmem, size = 0x10000, scoped, tag = 'input window, operand 2']
    #allocation9 [shape = 's32[2]{0}', space=sflag, size = 0x8, scoped, tag = 'scoped memory for tpu_custom_call.1']
    #allocation10 [shape = 'u8[65536]{0}', space=vmem, size = 0x10000, scoped, tag = 'input window, operand 3']
    #allocation11 [shape = 'u8[32768]{0}', space=vmem, size = 0x8000, scoped, tag = 'input window, operand 4']
    #allocation12 [shape = 's32[2]{0}', space=sflag, size = 0x8, scoped, tag = 'scoped memory for tpu_custom_call.1']
    #allocation13 [shape = 'u8[65536]{0}', space=vmem, size = 0x10000, scoped, tag = 'input window, operand 5']
    #allocation14 [shape = 'u8[32768]{0}', space=vmem, size = 0x8000, scoped, tag = 'input window, operand 6']
    #allocation15 [shape = 's32[2]{0}', space=sflag, size = 0x8, scoped, tag = 'scoped memory for tpu_custom_call.1']
    #allocation16 [shape = 'u8[196608]{0}', space=vmem, size = 0x30000, scoped, tag = 'output window, operand 0']
    %12 = vsyncpa [#allocation6], 0
    %13 = vsyncpa [#allocation4], 0
    %s14 = scalar_lea.sflag [#allocation4], 1
    %15 = vsyncpa %s14, 0
    %16 = vsyncpa [#allocation9], 0
    %s17 = scalar_lea.sflag [#allocation9], 1
    %18 = vsyncpa %s17, 0
    %19 = vsyncpa [#allocation12], 0
    %s20 = scalar_lea.sflag [#allocation12], 1
    %21 = vsyncpa %s20, 0
    %22 = vsyncpa [#allocation15], 0
    %s23 = scalar_lea.sflag [#allocation15], 1
    %24 = vsyncpa %s23, 0
    %25 = vsyncpa [#allocation5], 0
    %s26 = scalar_lea.sflag [#allocation5], 1
    %27 = vsyncpa %s26, 0
    loop: start=0, step=1, limit=4
    $region2: #{tpu_custom_call.1} parent=1 // loop_pre_header
      _
    $region3: #{tpu_custom_call.1} parent=1 // loop_header
      %s29 = sphi 0, %s33
      %p30 = scmp.ge.s32.totalorder %s29, 4
      %s36 = sphi 0, %s48
      %s37 = sphi 0, %s44
      %s38 = sphi 0, %s36
      %s39 = sphi 0, %s37
      %s40 = sphi 0, %s38
      %s41 = sphi 0, %s39
      %s49 = sphi 0, %s49
      %s51 = sphi 0, %s49
      %s52 = sphi 0, %s51
      %s66 = sphi 0, %s52
      %s74 = sphi 0, %s76
      %s77 = sphi 0, %s74
      %s78 = sphi 0, %s77
      %s94 = sphi 0, %s78
      %s102 = sphi 0, %s104
      %s105 = sphi 0, %s102
      %s106 = sphi 0, %s105
      %s122 = sphi 0, %s106
      %s138 = sphi 0, %s140
      %s141 = sphi 0, %s138
      %s142 = sphi 0, %s141
      %s158 = sphi 0, %s142
      %s174 = sphi 0, %s176
      %s177 = sphi 0, %s174
      %s178 = sphi 0, %s177
      %s194 = sphi 0, %s178
      %s210 = sphi 0, %s212
      %s213 = sphi 0, %s210
      %s214 = sphi 0, %s213
      %s230 = sphi 0, %s214
      %s246 = sphi 0, %s248
      %s249 = sphi 0, %s246
      %s250 = sphi 0, %s249
      %s266 = sphi 0, %s250
      %s274 = sphi 0, %s276
      %s277 = sphi 0, %s274
      %s278 = sphi 0, %s277
      %s294 = sphi 0, %s278
    $region4: #{tpu_custom_call.1} parent=1 // loop_header_branch
      %32 = sbr.rel (%p30) target = $region8
    $region5: #{tpu_custom_call.1} parent=1 // loop_body
      %s34 = ssub.s32 %s29, 1
      %s35 = ssub.s32 %s29, 2
      %s42 = sadd.s32 1, %s37
      %p43 = scmp.ge.s32.totalorder %s42, 1
      %s44 = scalar_select %p43, 0, %s42
      %s45 = sadd.s32 1, %s36
      %s46 = scalar_select %p43, %s45, %s36
      %p47 = scmp.ge.s32.totalorder %s46, 2
      %s48 = scalar_select %p47, 0, %s46
      %s50 = sadd.s32 %s49, 1
      %p53 = scmp.eq.s32.totalorder %s29, 1
      %p54 = scmp.ne.s32.totalorder %s49, %s51
      %p55 = scmp.eq.s32.totalorder %s29, 0
      %p56 = por %p54, %p55
      %p57 = scmp.ne.s32.totalorder %s49, %s51
      %p58 = scmp.eq.s32.totalorder %s34, 1
      %p59 = por %p57, %p58
      %p60 = scmp.ne.s32.totalorder %s51, %s52
      %p61 = scmp.eq.s32.totalorder %s34, 0
      %p62 = por %p60, %p61
      %p63 = scmp.ne.s32.totalorder %s51, %s52
      %p64 = scmp.eq.s32.totalorder %s35, 1
      %p65 = por %p63, %p64
      %p67 = scmp.ne.s32.totalorder %s52, %s66
      %p68 = scmp.eq.s32.totalorder %s35, 0
      %p69 = por %p67, %p68
      %s70 = ssub.s32 %s36, %s48
      %s71 = ssub.s32 %s37, %s44
      %s72 = sor.u32 %s70, %s71
      %p73 = scmp.eq.s32.totalorder %s72, 0
      %s75 = sadd.s32 %s74, 1
      %s76 = scalar_select %p73, %s74, %s75
      %p79 = pneg %p73
      %p80 = scmp.eq.s32.totalorder %s29, 1
      %p81 = por %p79, %p80
      %p82 = scmp.ne.s32.totalorder %s74, %s77
      %p83 = scmp.eq.s32.totalorder %s29, 0
      %p84 = por %p82, %p83
      %p85 = scmp.ne.s32.totalorder %s74, %s77
      %p86 = scmp.eq.s32.totalorder %s34, 1
      %p87 = por %p85, %p86
      %p88 = scmp.ne.s32.totalorder %s77, %s78
      %p89 = scmp.eq.s32.totalorder %s34, 0
      %p90 = por %p88, %p89
      %p91 = scmp.ne.s32.totalorder %s77, %s78
      %p92 = scmp.eq.s32.totalorder %s35, 1
      %p93 = por %p91, %p92
      %p95 = scmp.ne.s32.totalorder %s78, %s94
      %p96 = scmp.eq.s32.totalorder %s35, 0
      %p97 = por %p95, %p96
      %s98 = ssub.s32 %s36, %s48
      %s99 = ssub.s32 %s37, %s44
      %s100 = sor.u32 %s98, %s99
      %p101 = scmp.eq.s32.totalorder %s100, 0
      %s103 = sadd.s32 %s102, 1
      %s104 = scalar_select %p101, %s102, %s103
      %p107 = pneg %p101
      %p108 = scmp.eq.s32.totalorder %s29, 1
      %p109 = por %p107, %p108
      %p110 = scmp.ne.s32.totalorder %s102, %s105
      %p111 = scmp.eq.s32.totalorder %s29, 0
      %p112 = por %p110, %p111
      %p113 = scmp.ne.s32.totalorder %s102, %s105
      %p114 = scmp.eq.s32.totalorder %s34, 1
      %p115 = por %p113, %p114
      %p116 = scmp.ne.s32.totalorder %s105, %s106
      %p117 = scmp.eq.s32.totalorder %s34, 0
      %p118 = por %p116, %p117
      %p119 = scmp.ne.s32.totalorder %s105, %s106
      %p120 = scmp.eq.s32.totalorder %s35, 1
      %p121 = por %p119, %p120
      %p123 = scmp.ne.s32.totalorder %s106, %s122
      %p124 = scmp.eq.s32.totalorder %s35, 0
      %p125 = por %p123, %p124
      %s126 = smul.u32 %s37, 2
      %s127 = ssub.s32 %s126, 1
      %p128 = scmp.gt.s32.totalorder %s127, 0
      %s129 = scalar_select %p128, %s127, 0
      %s130 = smul.u32 %s44, 2
      %s131 = ssub.s32 %s130, 1
      %p132 = scmp.gt.s32.totalorder %s131, 0
      %s133 = scalar_select %p132, %s131, 0
      %s134 = ssub.s32 %s36, %s48
      %s135 = ssub.s32 %s129, %s133
      %s136 = sor.u32 %s134, %s135
      %p137 = scmp.eq.s32.totalorder %s136, 0
      %s139 = sadd.s32 %s138, 1
      %s140 = scalar_select %p137, %s138, %s139
      %p143 = pneg %p137
      %p144 = scmp.eq.s32.totalorder %s29, 1
      %p145 = por %p143, %p144
      %p146 = scmp.ne.s32.totalorder %s138, %s141
      %p147 = scmp.eq.s32.totalorder %s29, 0
      %p148 = por %p146, %p147
      %p149 = scmp.ne.s32.totalorder %s138, %s141
      %p150 = scmp.eq.s32.totalorder %s34, 1
      %p151 = por %p149, %p150
      %p152 = scmp.ne.s32.totalorder %s141, %s142
      %p153 = scmp.eq.s32.totalorder %s34, 0
      %p154 = por %p152, %p153
      %p155 = scmp.ne.s32.totalorder %s141, %s142
      %p156 = scmp.eq.s32.totalorder %s35, 1
      %p157 = por %p155, %p156
      %p159 = scmp.ne.s32.totalorder %s142, %s158
      %p160 = scmp.eq.s32.totalorder %s35, 0
      %p161 = por %p159, %p160
      %s162 = smul.u32 %s37, 2
      %s163 = ssub.s32 %s162, 1
      %p164 = scmp.gt.s32.totalorder %s163, 0
      %s165 = scalar_select %p164, %s163, 0
      %s166 = smul.u32 %s44, 2
      %s167 = ssub.s32 %s166, 1
      %p168 = scmp.gt.s32.totalorder %s167, 0
      %s169 = scalar_select %p168, %s167, 0
      %s170 = ssub.s32 %s36, %s48
      %s171 = ssub.s32 %s165, %s169
      %s172 = sor.u32 %s170, %s171
      %p173 = scmp.eq.s32.totalorder %s172, 0
      %s175 = sadd.s32 %s174, 1
      %s176 = scalar_select %p173, %s174, %s175
      %p179 = pneg %p173
      %p180 = scmp.eq.s32.totalorder %s29, 1
      %p181 = por %p179, %p180
      %p182 = scmp.ne.s32.totalorder %s174, %s177
      %p183 = scmp.eq.s32.totalorder %s29, 0
      %p184 = por %p182, %p183
      %p185 = scmp.ne.s32.totalorder %s174, %s177
      %p186 = scmp.eq.s32.totalorder %s34, 1
      %p187 = por %p185, %p186
      %p188 = scmp.ne.s32.totalorder %s177, %s178
      %p189 = scmp.eq.s32.totalorder %s34, 0
      %p190 = por %p188, %p189
      %p191 = scmp.ne.s32.totalorder %s177, %s178
      %p192 = scmp.eq.s32.totalorder %s35, 1
      %p193 = por %p191, %p192
      %p195 = scmp.ne.s32.totalorder %s178, %s194
      %p196 = scmp.eq.s32.totalorder %s35, 0
      %p197 = por %p195, %p196
      %s198 = sadd.s32 %s37, 1
      %s199 = smul.u32 %s198, 2
      %p200 = scmp.lt.s32.totalorder %s199, 1
      %s201 = scalar_select %p200, %s199, 1
      %s202 = sadd.s32 %s44, 1
      %s203 = smul.u32 %s202, 2
      %p204 = scmp.lt.s32.totalorder %s203, 1
      %s205 = scalar_select %p204, %s203, 1
      %s206 = ssub.s32 %s36, %s48
      %s207 = ssub.s32 %s201, %s205
      %s208 = sor.u32 %s206, %s207
      %p209 = scmp.eq.s32.totalorder %s208, 0
      %s211 = sadd.s32 %s210, 1
      %s212 = scalar_select %p209, %s210, %s211
      %p215 = pneg %p209
      %p216 = scmp.eq.s32.totalorder %s29, 1
      %p217 = por %p215, %p216
      %p218 = scmp.ne.s32.totalorder %s210, %s213
      %p219 = scmp.eq.s32.totalorder %s29, 0
      %p220 = por %p218, %p219
      %p221 = scmp.ne.s32.totalorder %s210, %s213
      %p222 = scmp.eq.s32.totalorder %s34, 1
      %p223 = por %p221, %p222
      %p224 = scmp.ne.s32.totalorder %s213, %s214
      %p225 = scmp.eq.s32.totalorder %s34, 0
      %p226 = por %p224, %p225
      %p227 = scmp.ne.s32.totalorder %s213, %s214
      %p228 = scmp.eq.s32.totalorder %s35, 1
      %p229 = por %p227, %p228
      %p231 = scmp.ne.s32.totalorder %s214, %s230
      %p232 = scmp.eq.s32.totalorder %s35, 0
      %p233 = por %p231, %p232
      %s234 = sadd.s32 %s37, 1
      %s235 = smul.u32 %s234, 2
      %p236 = scmp.lt.s32.totalorder %s235, 1
      %s237 = scalar_select %p236, %s235, 1
      %s238 = sadd.s32 %s44, 1
      %s239 = smul.u32 %s238, 2
      %p240 = scmp.lt.s32.totalorder %s239, 1
      %s241 = scalar_select %p240, %s239, 1
      %s242 = ssub.s32 %s36, %s48
      %s243 = ssub.s32 %s237, %s241
      %s244 = sor.u32 %s242, %s243
      %p245 = scmp.eq.s32.totalorder %s244, 0
      %s247 = sadd.s32 %s246, 1
      %s248 = scalar_select %p245, %s246, %s247
      %p251 = pneg %p245
      %p252 = scmp.eq.s32.totalorder %s29, 1
      %p253 = por %p251, %p252
      %p254 = scmp.ne.s32.totalorder %s246, %s249
      %p255 = scmp.eq.s32.totalorder %s29, 0
      %p256 = por %p254, %p255
      %p257 = scmp.ne.s32.totalorder %s246, %s249
      %p258 = scmp.eq.s32.totalorder %s34, 1
      %p259 = por %p257, %p258
      %p260 = scmp.ne.s32.totalorder %s249, %s250
      %p261 = scmp.eq.s32.totalorder %s34, 0
      %p262 = por %p260, %p261
      %p263 = scmp.ne.s32.totalorder %s249, %s250
      %p264 = scmp.eq.s32.totalorder %s35, 1
      %p265 = por %p263, %p264
      %p267 = scmp.ne.s32.totalorder %s250, %s266
      %p268 = scmp.eq.s32.totalorder %s35, 0
      %p269 = por %p267, %p268
      %s270 = ssub.s32 %s36, %s48
      %s271 = ssub.s32 %s37, %s44
      %s272 = sor.u32 %s270, %s271
      %p273 = scmp.eq.s32.totalorder %s272, 0
      %s275 = sadd.s32 %s274, 1
      %s276 = scalar_select %p273, %s274, %s275
      %p279 = pneg %p273
      %p280 = scmp.eq.s32.totalorder %s29, 1
      %p281 = por %p279, %p280
      %p282 = scmp.ne.s32.totalorder %s274, %s277
      %p283 = scmp.eq.s32.totalorder %s29, 0
      %p284 = por %p282, %p283
      %p285 = scmp.ne.s32.totalorder %s274, %s277
      %p286 = scmp.eq.s32.totalorder %s34, 1
      %p287 = por %p285, %p286
      %p288 = scmp.ne.s32.totalorder %s277, %s278
      %p289 = scmp.eq.s32.totalorder %s34, 0
      %p290 = por %p288, %p289
      %p291 = scmp.ne.s32.totalorder %s277, %s278
      %p292 = scmp.eq.s32.totalorder %s35, 1
      %p293 = por %p291, %p292
      %p295 = scmp.ne.s32.totalorder %s278, %s294
      %p296 = scmp.eq.s32.totalorder %s35, 0
      %p297 = por %p295, %p296
      %p298 = scmp.le.s32.totalorder 1, %s29
      %p299 = scmp.lt.s32.totalorder %s29, 3
      %p300 = pnand %p298, %p299
      %p301 = pneg %p300
      // Predicated region
      $region9: #{tpu_custom_call.1} parent=5 // pred_check
        _
      $region10: #{tpu_custom_call.1} parent=5 // pred_check_branch
        %303 = sbr.rel (%p300) target = $region12
      $region11: #{tpu_custom_call.1} parent=5 // pred_region
        %s304 = ssub.s32 %s29, 1
        // Predicated region
        $region13: #{tpu_custom_call.1} parent=11 // pred_check
          %p305 = pneg %p62
        $region14: #{tpu_custom_call.1} parent=11 // pred_check_branch
          %307 = sbr.rel (%p305) target = $region16
        $region15: #{tpu_custom_call.1} parent=11 // pred_region
          %309 = vsyncadd [#allocation6], 0
          %s311 = sshll.u32 %s0, 4
          %s312 = int_to_ptr.hbm [resolvable:$true] %s311
          %314 = dma.hbm_to_smem %s312, 16, [#allocation3], [#allocation6]
        $region16: #{tpu_custom_call.1} parent=11 // pred_fallthru
          _
      $region12: #{tpu_custom_call.1} parent=5 // pred_fallthru
        _
      %p315 = scmp.lt.s32.totalorder %s29, 2
      // Predicated region
      $region17: #{tpu_custom_call.1} parent=5 // pred_check
        %p316 = pneg %p315
      $region18: #{tpu_custom_call.1} parent=5 // pred_check_branch
        %318 = sbr.rel (%p316) target = $region20
      $region19: #{tpu_custom_call.1} parent=5 // pred_region
        // Predicated region
        $region21: #{tpu_custom_call.1} parent=19 // pred_check
          %p319 = pneg %p84
        $region22: #{tpu_custom_call.1} parent=19 // pred_check_branch
          %321 = sbr.rel (%p319) target = $region24
        $region23: #{tpu_custom_call.1} parent=19 // pred_region
          %s322 = sand.u32 %s74, 1
          %s323 = scalar_lea.sflag [#allocation4], %s322
          %s324 = sand.u32 %s74, 1
          %s325 = smul.addr %s324, 128
          %s326 = scalar_lea.vmem [#allocation7], %s325
          %s327 = smul.u32 2, %s37
          %329 = vsyncadd %s323, 0
          %s330 = smul.addr %s36, 16
          %s331 = sadd.s32 %s327, %s330
          %s332 = smul.addr %s331, 8
          %s333 = scalar_lea.hbm %s1, %s332
          %s334 = sshll.u32 %s333, 4
          %s335 = int_to_ptr.hbm [resolvable:$true] %s334
          %s336 = sshll.u32 %s326, 4
          %s337 = int_to_ptr.vmem [resolvable:$true] %s336
          %342 = dma.hbm_to_vmem [thread:$0]  %s335, 2048, %s337, %s323, 128, 128, 8
        $region24: #{tpu_custom_call.1} parent=19 // pred_fallthru
          _
        // Predicated region
        $region25: #{tpu_custom_call.1} parent=19 // pred_check
          %p343 = pneg %p112
        $region26: #{tpu_custom_call.1} parent=19 // pred_check_branch
          %345 = sbr.rel (%p343) target = $region28
        $region27: #{tpu_custom_call.1} parent=19 // pred_region
          %s346 = sand.u32 %s29, 1
          %s347 = scalar_lea.sflag [#allocation9], %s346
          %s348 = sand.u32 %s102, 1
          %s349 = smul.addr %s348, 64
          %s350 = scalar_lea.vmem [#allocation8], %s349
          %s351 = smul.u32 2, %s37
          %353 = vsyncadd %s347, 0
          %s354 = smul.addr %s36, 8
          %s355 = sadd.s32 %s351, %s354
          %s356 = smul.addr %s355, 8
          %s357 = scalar_lea.hbm %s2, %s356
          %s358 = sshll.u32 %s357, 4
          %s359 = int_to_ptr.hbm [resolvable:$true] %s358
          %s360 = sshll.u32 %s350, 4
          %s361 = int_to_ptr.vmem [resolvable:$true] %s360
          %366 = dma.hbm_to_vmem [thread:$0]  %s359, 1024, %s361, %s347, 128, 128, 8
        $region28: #{tpu_custom_call.1} parent=19 // pred_fallthru
          _
        // Predicated region
        $region29: #{tpu_custom_call.1} parent=19 // pred_check
          %p367 = pneg %p148
        $region30: #{tpu_custom_call.1} parent=19 // pred_check_branch
          %369 = sbr.rel (%p367) target = $region32
        $region31: #{tpu_custom_call.1} parent=19 // pred_region
          %s370 = sand.u32 %s29, 1
          %s371 = scalar_lea.sflag [#allocation9], %s370
          %s372 = sand.u32 %s138, 1
          %s373 = smul.addr %s372, 64
          %s374 = scalar_lea.vmem [#allocation10], %s373
          %s375 = smul.u32 %s37, 2
          %s376 = ssub.s32 %s375, 1
          %p377 = scmp.gt.s32.totalorder %s376, 0
          %s378 = scalar_select %p377, %s376, 0
          %380 = vsyncadd %s371, 0
          %s381 = smul.addr %s36, 16
          %s382 = sadd.s32 %s378, %s381
          %s383 = smul.addr %s382, 8
          %s384 = scalar_lea.hbm %s3, %s383
          %s385 = sshll.u32 %s384, 4
          %s386 = int_to_ptr.hbm [resolvable:$true] %s385
          %s387 = sshll.u32 %s374, 4
          %s388 = int_to_ptr.vmem [resolvable:$true] %s387
          %393 = dma.hbm_to_vmem [thread:$0]  %s386, 1024, %s388, %s371, 256, 128, 8
        $region32: #{tpu_custom_call.1} parent=19 // pred_fallthru
          _
        // Predicated region
        $region33: #{tpu_custom_call.1} parent=19 // pred_check
          %p394 = pneg %p184
        $region34: #{tpu_custom_call.1} parent=19 // pred_check_branch
          %396 = sbr.rel (%p394) target = $region36
        $region35: #{tpu_custom_call.1} parent=19 // pred_region
          %s397 = sand.u32 %s29, 1
          %s398 = scalar_lea.sflag [#allocation12], %s397
          %s399 = sand.u32 %s174, 1
          %s400 = smul.addr %s399, 32
          %s401 = scalar_lea.vmem [#allocation11], %s400
          %s402 = smul.u32 %s37, 2
          %s403 = ssub.s32 %s402, 1
          %p404 = scmp.gt.s32.totalorder %s403, 0
          %s405 = scalar_select %p404, %s403, 0
          %407 = vsyncadd %s398, 0
          %s408 = smul.addr %s36, 8
          %s409 = sadd.s32 %s405, %s408
          %s410 = smul.addr %s409, 8
          %s411 = scalar_lea.hbm %s4, %s410
          %s412 = sshll.u32 %s411, 4
          %s413 = int_to_ptr.hbm [resolvable:$true] %s412
          %s414 = sshll.u32 %s401, 4
          %s415 = int_to_ptr.vmem [resolvable:$true] %s414
          %420 = dma.hbm_to_vmem [thread:$0]  %s413, 512, %s415, %s398, 256, 128, 8
        $region36: #{tpu_custom_call.1} parent=19 // pred_fallthru
          _
        // Predicated region
        $region37: #{tpu_custom_call.1} parent=19 // pred_check
          %p421 = pneg %p220
        $region38: #{tpu_custom_call.1} parent=19 // pred_check_branch
          %423 = sbr.rel (%p421) target = $region40
        $region39: #{tpu_custom_call.1} parent=19 // pred_region
          %s424 = sand.u32 %s29, 1
          %s425 = scalar_lea.sflag [#allocation12], %s424
          %s426 = sand.u32 %s210, 1
          %s427 = smul.addr %s426, 64
          %s428 = scalar_lea.vmem [#allocation13], %s427
          %s429 = sadd.s32 %s37, 1
          %s430 = smul.u32 %s429, 2
          %p431 = scmp.lt.s32.totalorder %s430, 1
          %s432 = scalar_select %p431, %s430, 1
          %434 = vsyncadd %s425, 0
          %s435 = smul.addr %s36, 16
          %s436 = sadd.s32 %s432, %s435
          %s437 = smul.addr %s436, 8
          %s438 = scalar_lea.hbm %s5, %s437
          %s439 = sshll.u32 %s438, 4
          %s440 = int_to_ptr.hbm [resolvable:$true] %s439
          %s441 = sshll.u32 %s428, 4
          %s442 = int_to_ptr.vmem [resolvable:$true] %s441
          %447 = dma.hbm_to_vmem [thread:$0]  %s440, 1024, %s442, %s425, 256, 128, 8
        $region40: #{tpu_custom_call.1} parent=19 // pred_fallthru
          _
        // Predicated region
        $region41: #{tpu_custom_call.1} parent=19 // pred_check
          %p448 = pneg %p256
        $region42: #{tpu_custom_call.1} parent=19 // pred_check_branch
          %450 = sbr.rel (%p448) target = $region44
        $region43: #{tpu_custom_call.1} parent=19 // pred_region
          %s451 = sand.u32 %s246, 1
          %s452 = scalar_lea.sflag [#allocation15], %s451
          %s453 = sand.u32 %s246, 1
          %s454 = smul.addr %s453, 32
          %s455 = scalar_lea.vmem [#allocation14], %s454
          %s456 = sadd.s32 %s37, 1
          %s457 = smul.u32 %s456, 2
          %p458 = scmp.lt.s32.totalorder %s457, 1
          %s459 = scalar_select %p458, %s457, 1
          %461 = vsyncadd %s452, 0
          %s462 = smul.addr %s36, 8
          %s463 = sadd.s32 %s459, %s462
          %s464 = smul.addr %s463, 8
          %s465 = scalar_lea.hbm %s6, %s464
          %s466 = sshll.u32 %s465, 4
          %s467 = int_to_ptr.hbm [resolvable:$true] %s466
          %s468 = sshll.u32 %s455, 4
          %s469 = int_to_ptr.vmem [resolvable:$true] %s468
          %474 = dma.hbm_to_vmem [thread:$0]  %s467, 512, %s469, %s452, 256, 128, 8
        $region44: #{tpu_custom_call.1} parent=19 // pred_fallthru
          _
      $region20: #{tpu_custom_call.1} parent=5 // pred_fallthru
        _
      %p475 = scmp.le.s32.totalorder 1, %s29
      %p476 = scmp.lt.s32.totalorder %s29, 3
      %p477 = pnand %p475, %p476
      %p478 = pneg %p477
      // Predicated region
      $region45: #{tpu_custom_call.1} parent=5 // pred_check
        _
      $region46: #{tpu_custom_call.1} parent=5 // pred_check_branch
        %480 = sbr.rel (%p477) target = $region48
      $region47: #{tpu_custom_call.1} parent=5 // pred_region
        %s481 = ssub.s32 %s29, 1
        // Predicated region
        $region49: #{tpu_custom_call.1} parent=47 // pred_check
          %p482 = pneg %p62
        $region50: #{tpu_custom_call.1} parent=47 // pred_check_branch
          %484 = sbr.rel (%p482) target = $region52
        $region51: #{tpu_custom_call.1} parent=47 // pred_region
          %486 = dma.done [#allocation6], 16
        $region52: #{tpu_custom_call.1} parent=47 // pred_fallthru
          _
        %s487 = sand.u32 %s77, 1
        %s488 = scalar_lea.sflag [#allocation4], %s487
        %s489 = sand.u32 %s77, 1
        %s490 = smul.addr %s489, 128
        %s491 = scalar_lea.vmem [#allocation7], %s490
        // Predicated region
        $region53: #{tpu_custom_call.1} parent=47 // pred_check
          %p492 = pneg %p90
        $region54: #{tpu_custom_call.1} parent=47 // pred_check_branch
          %494 = sbr.rel (%p492) target = $region56
        $region55: #{tpu_custom_call.1} parent=47 // pred_region
          %496 = dma.done %s488, 2048
        $region56: #{tpu_custom_call.1} parent=47 // pred_fallthru
          _
        %s497 = sand.u32 %s34, 1
        %s498 = scalar_lea.sflag [#allocation9], %s497
        %s499 = sand.u32 %s105, 1
        %s500 = smul.addr %s499, 64
        %s501 = scalar_lea.vmem [#allocation8], %s500
        // Predicated region
        $region57: #{tpu_custom_call.1} parent=47 // pred_check
          %p502 = pneg %p118
        $region58: #{tpu_custom_call.1} parent=47 // pred_check_branch
          %504 = sbr.rel (%p502) target = $region60
        $region59: #{tpu_custom_call.1} parent=47 // pred_region
          %506 = dma.done %s498, 1024
        $region60: #{tpu_custom_call.1} parent=47 // pred_fallthru
          _
        %s507 = sand.u32 %s34, 1
        %s508 = scalar_lea.sflag [#allocation9], %s507
        %s509 = sand.u32 %s141, 1
        %s510 = smul.addr %s509, 64
        %s511 = scalar_lea.vmem [#allocation10], %s510
        // Predicated region
        $region61: #{tpu_custom_call.1} parent=47 // pred_check
          %p512 = pneg %p154
        $region62: #{tpu_custom_call.1} parent=47 // pred_check_branch
          %514 = sbr.rel (%p512) target = $region64
        $region63: #{tpu_custom_call.1} parent=47 // pred_region
          %516 = dma.done %s508, 1024
        $region64: #{tpu_custom_call.1} parent=47 // pred_fallthru
          _
        %s517 = sand.u32 %s34, 1
        %s518 = scalar_lea.sflag [#allocation12], %s517
        %s519 = sand.u32 %s177, 1
        %s520 = smul.addr %s519, 32
        %s521 = scalar_lea.vmem [#allocation11], %s520
        // Predicated region
        $region65: #{tpu_custom_call.1} parent=47 // pred_check
          %p522 = pneg %p190
        $region66: #{tpu_custom_call.1} parent=47 // pred_check_branch
          %524 = sbr.rel (%p522) target = $region68
        $region67: #{tpu_custom_call.1} parent=47 // pred_region
          %526 = dma.done %s518, 512
        $region68: #{tpu_custom_call.1} parent=47 // pred_fallthru
          _
        %s527 = sand.u32 %s34, 1
        %s528 = scalar_lea.sflag [#allocation12], %s527
        %s529 = sand.u32 %s213, 1
        %s530 = smul.addr %s529, 64
        %s531 = scalar_lea.vmem [#allocation13], %s530
        // Predicated region
        $region69: #{tpu_custom_call.1} parent=47 // pred_check
          %p532 = pneg %p226
        $region70: #{tpu_custom_call.1} parent=47 // pred_check_branch
          %534 = sbr.rel (%p532) target = $region72
        $region71: #{tpu_custom_call.1} parent=47 // pred_region
          %536 = dma.done %s528, 1024
        $region72: #{tpu_custom_call.1} parent=47 // pred_fallthru
          _
        %s537 = sand.u32 %s249, 1
        %s538 = scalar_lea.sflag [#allocation15], %s537
        %s539 = sand.u32 %s249, 1
        %s540 = smul.addr %s539, 32
        %s541 = scalar_lea.vmem [#allocation14], %s540
        // Predicated region
        $region73: #{tpu_custom_call.1} parent=47 // pred_check
          %p542 = pneg %p262
        $region74: #{tpu_custom_call.1} parent=47 // pred_check_branch
          %544 = sbr.rel (%p542) target = $region76
        $region75: #{tpu_custom_call.1} parent=47 // pred_region
          %546 = dma.done %s538, 512
        $region76: #{tpu_custom_call.1} parent=47 // pred_fallthru
          _
        %547 = sfence
        %p548 = pneg %p62
        %p549 = pneg %p59
        %s550 = sand.u32 %s77, 1
        %s551 = scalar_lea.sflag [#allocation4], %s550
        %s552 = sand.u32 %s77, 1
        %s553 = smul.addr %s552, 128
        %s554 = scalar_lea.vmem [#allocation7], %s553
        %p555 = pneg %p90
        %p556 = pneg %p87
        %s557 = sand.u32 %s34, 1
        %s558 = scalar_lea.sflag [#allocation9], %s557
        %s559 = sand.u32 %s105, 1
        %s560 = smul.addr %s559, 64
        %s561 = scalar_lea.vmem [#allocation8], %s560
        %p562 = pneg %p118
        %p563 = pneg %p115
        %s564 = sand.u32 %s34, 1
        %s565 = scalar_lea.sflag [#allocation9], %s564
        %s566 = sand.u32 %s141, 1
        %s567 = smul.addr %s566, 64
        %s568 = scalar_lea.vmem [#allocation10], %s567
        %p569 = pneg %p154
        %p570 = pneg %p151
        %s571 = sand.u32 %s34, 1
        %s572 = scalar_lea.sflag [#allocation12], %s571
        %s573 = sand.u32 %s177, 1
        %s574 = smul.addr %s573, 32
        %s575 = scalar_lea.vmem [#allocation11], %s574
        %p576 = pneg %p190
        %p577 = pneg %p187
        %s578 = sand.u32 %s34, 1
        %s579 = scalar_lea.sflag [#allocation12], %s578
        %s580 = sand.u32 %s213, 1
        %s581 = smul.addr %s580, 64
        %s582 = scalar_lea.vmem [#allocation13], %s581
        %p583 = pneg %p226
        %p584 = pneg %p223
        %s585 = sand.u32 %s249, 1
        %s586 = scalar_lea.sflag [#allocation15], %s585
        %s587 = sand.u32 %s249, 1
        %s588 = smul.addr %s587, 32
        %s589 = scalar_lea.vmem [#allocation14], %s588
        %p590 = pneg %p262
        %p591 = pneg %p259
        %p592 = pneg %p290
        %p593 = pneg %p287
        %s594 = sand.u32 %s277, 1
        %s595 = scalar_lea.sflag [#allocation5], %s594
        %s596 = sand.u32 %s277, 1
        %s597 = smul.addr %s596, 192
        %s598 = scalar_lea.vmem [#allocation16], %s597
        %s599 = smul.u32 2, %s39
        %s600 = smul.u32 2, %s39
        %s601 = smul.u32 %s39, 2
        %s602 = ssub.s32 %s601, 1
        %p603 = scmp.gt.s32.totalorder %s602, 0
        %s604 = scalar_select %p603, %s602, 0
        %s605 = smul.u32 %s39, 2
        %s606 = ssub.s32 %s605, 1
        %p607 = scmp.gt.s32.totalorder %s606, 0
        %s608 = scalar_select %p607, %s606, 0
        %s609 = sadd.s32 %s39, 1
        %s610 = smul.u32 %s609, 2
        %p611 = scmp.lt.s32.totalorder %s610, 1
        %s612 = scalar_select %p611, %s610, 1
        %s613 = sadd.s32 %s39, 1
        %s614 = smul.u32 %s613, 2
        %p615 = scmp.lt.s32.totalorder %s614, 1
        %s616 = scalar_select %p615, %s614, 1
        %s617 = smul.u32 2, %s39
        %v618 = vld [vmem:[%s491] sm:$0xff]
        %v619 = vld [vmem:[%s491 + $0x8] sm:$0xff]
        %v620 = vld [vmem:[%s491 + $0x10] sm:$0xff]
        %v621 = vld [vmem:[%s491 + $0x18] sm:$0xff]
        %v622 = vld [vmem:[%s491 + $0x20] sm:$0xff]
        %v623 = vld [vmem:[%s491 + $0x28] sm:$0xff]
        %v624 = vld [vmem:[%s491 + $0x30] sm:$0xff]
        %v625 = vld [vmem:[%s491 + $0x38] sm:$0xff]
        %v626 = vld [vmem:[%s491 + $0x40] sm:$0xff]
        %v627 = vld [vmem:[%s491 + $0x48] sm:$0xff]
        %v628 = vld [vmem:[%s491 + $0x50] sm:$0xff]
        %v629 = vld [vmem:[%s491 + $0x58] sm:$0xff]
        %v630 = vld [vmem:[%s491 + $0x60] sm:$0xff]
        %v631 = vld [vmem:[%s491 + $0x68] sm:$0xff]
        %v632 = vld [vmem:[%s491 + $0x70] sm:$0xff]
        %v633 = vld [vmem:[%s491 + $0x78] sm:$0xff]
        %vm634 = vcmask 130048
        %v635 = vsel %vm634, %v618, 0.0
        %v636 = vsel %vm634, %v620, 0.0
        %v637 = vadd.f32 %v635, %v636
        %v638 = vsel %vm634, %v622, 0.0
        %v639 = vadd.f32 %v637, %v638
        %v640 = vsel %vm634, %v624, 0.0
        %v641 = vadd.f32 %v639, %v640
        %v642 = vsel %vm634, %v626, 0.0
        %v643 = vadd.f32 %v641, %v642
        %v644 = vsel %vm634, %v628, 0.0
        %v645 = vadd.f32 %v643, %v644
        %v646 = vsel %vm634, %v630, 0.0
        %v647 = vadd.f32 %v645, %v646
        %v648 = vsel %vm634, %v632, 0.0
        %v649 = vadd.f32 %v647, %v648
        %v650 = vsel %vm634, %v619, 0.0
        %v651 = vsel %vm634, %v621, 0.0
        %v652 = vadd.f32 %v650, %v651
        %v653 = vsel %vm634, %v623, 0.0
        %v654 = vadd.f32 %v652, %v653
        %v655 = vsel %vm634, %v625, 0.0
        %v656 = vadd.f32 %v654, %v655
        %v657 = vsel %vm634, %v627, 0.0
        %v658 = vadd.f32 %v656, %v657
        %v659 = vsel %vm634, %v629, 0.0
        %v660 = vadd.f32 %v658, %v659
        %v661 = vsel %vm634, %v631, 0.0
        %v662 = vadd.f32 %v660, %v661
        %v663 = vsel %vm634, %v633, 0.0
        %v664 = vadd.f32 %v662, %v663
        %v665 = vld [vmem:[%s501] sm:$0xff]
        %v666 = vld [vmem:[%s501 + $0x8] sm:$0xff]
        %v667 = vld [vmem:[%s501 + $0x10] sm:$0xff]
        %v668 = vld [vmem:[%s501 + $0x18] sm:$0xff]
        %v669 = vld [vmem:[%s501 + $0x20] sm:$0xff]
        %v670 = vld [vmem:[%s501 + $0x28] sm:$0xff]
        %v671 = vld [vmem:[%s501 + $0x30] sm:$0xff]
        %v672 = vld [vmem:[%s501 + $0x38] sm:$0xff]
        %v673 = vsel %vm634, %v665, 0.0
        %v674 = vsel %vm634, %v667, 0.0
        %v675 = vadd.f32 %v673, %v674
        %v676 = vsel %vm634, %v669, 0.0
        %v677 = vadd.f32 %v675, %v676
        %v678 = vsel %vm634, %v671, 0.0
        %v679 = vadd.f32 %v677, %v678
        %v680 = vsel %vm634, %v666, 0.0
        %v681 = vsel %vm634, %v668, 0.0
        %v682 = vadd.f32 %v680, %v681
        %v683 = vsel %vm634, %v670, 0.0
        %v684 = vadd.f32 %v682, %v683
        %v685 = vsel %vm634, %v672, 0.0
        %v686 = vadd.f32 %v684, %v685
        %v687 = vadd.f32 %v649, %v679
        %v688 = vadd.f32 %v664, %v686
        %v689 = vmul.f32 %v687, 0.083333336
        %v690 = vmul.f32 %v688, 0.083333336
        %v691 = vsel %vm634, %v618, -inf
        %v692 = vsel %vm634, %v620, -inf
        %v693 = vsel %vm634, %v622, -inf
        %v694 = vmax.f32 %v691, %v693
        %v695 = vsel %vm634, %v624, -inf
        %v696 = vmax.f32 %v692, %v695
        %v697 = vsel %vm634, %v626, -inf
        %v698 = vmax.f32 %v694, %v697
        %v699 = vsel %vm634, %v628, -inf
        %v700 = vmax.f32 %v696, %v699
        %v701 = vsel %vm634, %v630, -inf
        %v702 = vmax.f32 %v698, %v701
        %v703 = vsel %vm634, %v632, -inf
        %v704 = vmax.f32 %v700, %v703
        %v705 = vmax.f32 %v702, %v704
        %v706 = vsel %vm634, %v619, -inf
        %v707 = vsel %vm634, %v621, -inf
        %v708 = vsel %vm634, %v623, -inf
        %v709 = vmax.f32 %v706, %v708
        %v710 = vsel %vm634, %v625, -inf
        %v711 = vmax.f32 %v707, %v710
        %v712 = vsel %vm634, %v627, -inf
        %v713 = vmax.f32 %v709, %v712
        %v714 = vsel %vm634, %v629, -inf
        %v715 = vmax.f32 %v711, %v714
        %v716 = vsel %vm634, %v631, -inf
        %v717 = vmax.f32 %v713, %v716
        %v718 = vsel %vm634, %v633, -inf
        %v719 = vmax.f32 %v715, %v718
        %v720 = vmax.f32 %v717, %v719
        %v721 = vsel %vm634, %v665, -inf
        %v722 = vsel %vm634, %v667, -inf
        %v723 = vsel %vm634, %v669, -inf
        %v724 = vmax.f32 %v721, %v723
        %v725 = vsel %vm634, %v671, -inf
        %v726 = vmax.f32 %v722, %v725
        %v727 = vmax.f32 %v724, %v726
        %v728 = vsel %vm634, %v666, -inf
        %v729 = vsel %vm634, %v668, -inf
        %v730 = vsel %vm634, %v670, -inf
        %v731 = vmax.f32 %v728, %v730
        %v732 = vsel %vm634, %v672, -inf
        %v733 = vmax.f32 %v729, %v732
        %v734 = vmax.f32 %v731, %v733
        %v735 = vmax.f32 %v705, %v727
        %v736 = vmax.f32 %v720, %v734
        %v737 = vld [vmem:[%s511 + $0x5] sm:$0x7]
        %v738 = vld [vmem:[%s511 + $0xd] sm:$0x7]
        %v739 = vld [vmem:[%s511 + $0x15] sm:$0x7]
        %v740 = vld [vmem:[%s511 + $0x1d] sm:$0x7]
        %v741 = vld [vmem:[%s511 + $0x25] sm:$0x7]
        %v742 = vld [vmem:[%s511 + $0x2d] sm:$0x7]
        %v743 = vld [vmem:[%s511 + $0x35] sm:$0x7]
        %v744 = vld [vmem:[%s511 + $0x3d] sm:$0x7]
        %v745 = vld [vmem:[%s521 + $0x5] sm:$0x7]
        %v746 = vld [vmem:[%s521 + $0xd] sm:$0x7]
        %v747 = vld [vmem:[%s521 + $0x15] sm:$0x7]
        %v748 = vld [vmem:[%s521 + $0x1d] sm:$0x7]
        %vm749 = vcmask 124928
        %v750 = vsel %vm749, %v737, 0.0
        %v751 = vsel %vm749, %v738, 0.0
        %v752 = vadd.f32 %v750, %v751
        %v753 = vsel %vm749, %v739, 0.0
        %v754 = vadd.f32 %v752, %v753
        %v755 = vsel %vm749, %v740, 0.0
        %v756 = vadd.f32 %v754, %v755
        %v757 = vsel %vm749, %v741, 0.0
        %v758 = vadd.f32 %v756, %v757
        %v759 = vsel %vm749, %v742, 0.0
        %v760 = vadd.f32 %v758, %v759
        %v761 = vsel %vm749, %v743, 0.0
        %v762 = vadd.f32 %v760, %v761
        %v763 = vsel %vm749, %v744, 0.0
        %v764 = vadd.f32 %v762, %v763
        %v765 = vsel %vm749, %v745, 0.0
        %v766 = vsel %vm749, %v746, 0.0
        %v767 = vadd.f32 %v765, %v766
        %v768 = vsel %vm749, %v747, 0.0
        %v769 = vadd.f32 %v767, %v768
        %v770 = vsel %vm749, %v748, 0.0
        %v771 = vadd.f32 %v769, %v770
        %v772 = vadd.f32 %v764, %v771
        %v773 = vmul.f32 %v772, 0.083333336
        %v774 = vsel %vm749, %v737, -inf
        %v775 = vsel %vm749, %v738, -inf
        %v776 = vsel %vm749, %v739, -inf
        %v777 = vsel %vm749, %v740, -inf
        %v778 = vsel %vm749, %v741, -inf
        %v779 = vmax.f32 %v774, %v778
        %v780 = vsel %vm749, %v742, -inf
        %v781 = vmax.f32 %v775, %v780
        %v782 = vsel %vm749, %v743, -inf
        %v783 = vmax.f32 %v776, %v782
        %v784 = vsel %vm749, %v744, -inf
        %v785 = vmax.f32 %v777, %v784
        %v786 = vmax.f32 %v779, %v781
        %v787 = vmax.f32 %v783, %v785
        %v788 = vmax.f32 %v786, %v787
        %v789 = vsel %vm749, %v745, -inf
        %v790 = vsel %vm749, %v746, -inf
        %v791 = vsel %vm749, %v747, -inf
        %v792 = vsel %vm749, %v748, -inf
        %v793 = vmax.f32 %v789, %v790
        %v794 = vmax.f32 %v791, %v792
        %v795 = vmax.f32 %v793, %v794
        %v796 = vmax.f32 %v788, %v795
        %v797 = vld [vmem:[%s531] sm:$0x7]
        %v798 = vld [vmem:[%s531 + $0x8] sm:$0x7]
        %v799 = vld [vmem:[%s531 + $0x10] sm:$0x7]
        %v800 = vld [vmem:[%s531 + $0x18] sm:$0x7]
        %v801 = vld [vmem:[%s531 + $0x20] sm:$0x7]
        %v802 = vld [vmem:[%s531 + $0x28] sm:$0x7]
        %v803 = vld [vmem:[%s531 + $0x30] sm:$0x7]
        %v804 = vld [vmem:[%s531 + $0x38] sm:$0x7]
        %v805 = vld [vmem:[%s541] sm:$0x7]
        %v806 = vld [vmem:[%s541 + $0x8] sm:$0x7]
        %v807 = vld [vmem:[%s541 + $0x10] sm:$0x7]
        %v808 = vld [vmem:[%s541 + $0x18] sm:$0x7]
        %v809 = vsel %vm749, %v797, 0.0
        %v810 = vsel %vm749, %v798, 0.0
        %v811 = vadd.f32 %v809, %v810
        %v812 = vsel %vm749, %v799, 0.0
        %v813 = vadd.f32 %v811, %v812
        %v814 = vsel %vm749, %v800, 0.0
        %v815 = vadd.f32 %v813, %v814
        %v816 = vsel %vm749, %v801, 0.0
        %v817 = vadd.f32 %v815, %v816
        %v818 = vsel %vm749, %v802, 0.0
        %v819 = vadd.f32 %v817, %v818
        %v820 = vsel %vm749, %v803, 0.0
        %v821 = vadd.f32 %v819, %v820
        %v822 = vsel %vm749, %v804, 0.0
        %v823 = vadd.f32 %v821, %v822
        %v824 = vsel %vm749, %v805, 0.0
        %v825 = vsel %vm749, %v806, 0.0
        %v826 = vadd.f32 %v824, %v825
        %v827 = vsel %vm749, %v807, 0.0
        %v828 = vadd.f32 %v826, %v827
        %v829 = vsel %vm749, %v808, 0.0
        %v830 = vadd.f32 %v828, %v829
        %v831 = vadd.f32 %v823, %v830
        %v832 = vmul.f32 %v831, 0.083333336
        %v833 = vsel %vm749, %v797, -inf
        %v834 = vsel %vm749, %v798, -inf
        %v835 = vsel %vm749, %v799, -inf
        %v836 = vsel %vm749, %v800, -inf
        %v837 = vsel %vm749, %v801, -inf
        %v838 = vmax.f32 %v833, %v837
        %v839 = vsel %vm749, %v802, -inf
        %v840 = vmax.f32 %v834, %v839
        %v841 = vsel %vm749, %v803, -inf
        %v842 = vmax.f32 %v835, %v841
        %v843 = vsel %vm749, %v804, -inf
        %v844 = vmax.f32 %v836, %v843
        %v845 = vmax.f32 %v838, %v840
        %v846 = vmax.f32 %v842, %v844
        %v847 = vmax.f32 %v845, %v846
        %v848 = vsel %vm749, %v805, -inf
        %v849 = vsel %vm749, %v806, -inf
        %v850 = vsel %vm749, %v807, -inf
        %v851 = vsel %vm749, %v808, -inf
        %v852 = vmax.f32 %v848, %v849
        %v853 = vmax.f32 %v850, %v851
        %v854 = vmax.f32 %v852, %v853
        %v855 = vmax.f32 %v847, %v854
        %p856 = scmp.gt.s32.totalorder %s39, 0
        %p857 = scmp.lt.s32.totalorder %s39, 0
        %s858 = scalar_select %p856, 1, 0
        %v859 = vstv %s858
        %vm860 = vcmp.eq.s32.totalorder %v859, 1
        %v861 = vsel %vm860, %v773, 0.0
        %v862 = vsel %vm860, %v796, 0.0
        %s863 = scalar_select %p857, 1, 0
        %v864 = vstv %s863
        %vm865 = vcmp.eq.s32.totalorder %v864, 1
        %v866 = vsel %vm865, %v832, 0.0
        %v867 = vsel %vm865, %v855, 0.0
        %vm868 = vcmask 1048557
        %869 = vst.msk [vmem:[#allocation2] sm:$0xe0] %vm868, 0.0
        %vm870 = vcmask 1048552
        %871 = vst.msk [vmem:[#allocation2 + $0x10] sm:$0xff] %vm870, 0.0
        %872 = vst.msk [vmem:[#allocation2 + $0x20] sm:$0xff] %vm870, 0.0
        %vm873 = vcmask 1043432
        %874 = vst.msk [vmem:[#allocation2 + $0x30] sm:$0x7] %vm873, 0.0
        %s875 = scalar_lea.vmem [#allocation2], 64
        %876 = vst.msk [vmem:[%s875] sm:$0xe0] %vm868, 0.0
        %877 = vst.msk [vmem:[%s875 + $0x10] sm:$0xff] %vm870, 0.0
        %878 = vst.msk [vmem:[%s875 + $0x20] sm:$0xff] %vm870, 0.0
        %879 = vst.msk [vmem:[%s875 + $0x30] sm:$0x7] %vm873, 0.0
        %vm880 = vcmask 154757
        %881 = vst.msk [vmem:[#allocation2 + $0x8] sm:$0xe0] %vm880, 0.0
        %vm882 = vcmask 154752
        %883 = vst.msk [vmem:[#allocation2 + $0x18] sm:$0xff] %vm882, 0.0
        %884 = vst.msk [vmem:[#allocation2 + $0x28] sm:$0xff] %vm882, 0.0
        %vm885 = vcmask 149632
        %886 = vst.msk [vmem:[#allocation2 + $0x38] sm:$0x7] %vm885, 0.0
        %887 = vst.msk [vmem:[%s875 + $0x8] sm:$0xe0] %vm880, 0.0
        %888 = vst.msk [vmem:[%s875 + $0x18] sm:$0xff] %vm882, 0.0
        %889 = vst.msk [vmem:[%s875 + $0x28] sm:$0xff] %vm882, 0.0
        %890 = vst.msk [vmem:[%s875 + $0x38] sm:$0x7] %vm885, 0.0
        %v892 = vrot.slane %v861, 3
        %vm894 = vcmask 130053
        %895 = vst.msk [vmem:[#allocation2 + $0x8] sm:$0xe0] %vm894, %v892
        %v897 = vrot.slane %v862, 3
        %899 = vst.msk [vmem:[%s875 + $0x8] sm:$0xe0] %vm894, %v897
        %900 = vst.msk [vmem:[#allocation2 + $0x38] sm:$0x7] %vm749, %v866
        %901 = vst.msk [vmem:[%s875 + $0x38] sm:$0x7] %vm749, %v867
        %902 = vst.msk [vmem:[#allocation2 + $0x18] sm:$0xff] %vm634, %v689
        %903 = vst.msk [vmem:[#allocation2 + $0x28] sm:$0xff] %vm634, %v690
        %904 = vst.msk [vmem:[%s875 + $0x18] sm:$0xff] %vm634, %v735
        %905 = vst.msk [vmem:[%s875 + $0x28] sm:$0xff] %vm634, %v736
        %v906 = vld [vmem:[#allocation2] sm:$0xe0]
        %v907 = vld [vmem:[#allocation2 + $0x8] sm:$0xe0]
        %v908 = vld [vmem:[#allocation2 + $0x10] sm:$0xff]
        %v909 = vld [vmem:[#allocation2 + $0x18] sm:$0xff]
        %v910 = vld [vmem:[#allocation2 + $0x20] sm:$0xff]
        %v911 = vld [vmem:[#allocation2 + $0x28] sm:$0xff]
        %v912 = vld [vmem:[#allocation2 + $0x30] sm:$0x7]
        %v913 = vld [vmem:[#allocation2 + $0x38] sm:$0x7]
        %v914 = vld [vmem:[%s875] sm:$0xe0]
        %v915 = vld [vmem:[%s875 + $0x8] sm:$0xe0]
        %v916 = vld [vmem:[%s875 + $0x10] sm:$0xff]
        %v917 = vld [vmem:[%s875 + $0x18] sm:$0xff]
        %v918 = vld [vmem:[%s875 + $0x20] sm:$0xff]
        %v919 = vld [vmem:[%s875 + $0x28] sm:$0xff]
        %v920 = vld [vmem:[%s875 + $0x30] sm:$0x7]
        %v921 = vld [vmem:[%s875 + $0x38] sm:$0x7]
        %s922 = sld [smem:[#allocation3]]
        %v923 = vstv %s922
        %v924 = vmul.f32 %v923, %v906
        %v925 = vmul.f32 %v923, %v907
        %v926 = vmul.f32 %v923, %v908
        %v927 = vmul.f32 %v923, %v909
        %v928 = vmul.f32 %v923, %v910
        %v929 = vmul.f32 %v923, %v911
        %s930 = sld [smem:[#allocation3 + $0x31]]
        %v931 = vstv %s930
        %v932 = vmul.f32 %v931, %v914
        %v933 = vmul.f32 %v931, %v915
        %v934 = vmul.f32 %v931, %v916
        %v935 = vmul.f32 %v931, %v917
        %v936 = vmul.f32 %v931, %v918
        %v937 = vmul.f32 %v931, %v919
        %v938 = vadd.f32 %v924, %v932
        %v939 = vadd.f32 %v925, %v933
        %v940 = vadd.f32 %v926, %v934
        %v941 = vadd.f32 %v927, %v935
        %v942 = vadd.f32 %v928, %v936
        %v943 = vadd.f32 %v929, %v937
        %s944 = sld [smem:[#allocation3 + $0x7]]
        %v945 = vstv %s944
        %v946 = vmul.f32 %v945, %v906
        %v947 = vmul.f32 %v945, %v907
        %v948 = vmul.f32 %v945, %v908
        %v949 = vmul.f32 %v945, %v909
        %v950 = vmul.f32 %v945, %v910
        %v951 = vmul.f32 %v945, %v911
        %s952 = sld [smem:[#allocation3 + $0x38]]
        %v953 = vstv %s952
        %v954 = vmul.f32 %v953, %v914
        %v955 = vmul.f32 %v953, %v915
        %v956 = vmul.f32 %v953, %v916
        %v957 = vmul.f32 %v953, %v917
        %v958 = vmul.f32 %v953, %v918
        %v959 = vmul.f32 %v953, %v919
        %v960 = vadd.f32 %v946, %v954
        %v961 = vadd.f32 %v947, %v955
        %v962 = vadd.f32 %v948, %v956
        %v963 = vadd.f32 %v949, %v957
        %v964 = vadd.f32 %v950, %v958
        %v965 = vadd.f32 %v951, %v959
        %vm972 = vcmask 1046528
        %v973 = vrot.slane %v960, 1
        %v974 = vrot.slane %v962, 1
        %v975 = vsel %vm972, %v973, %v974
        %v976 = vrot.slane %v961, 1
        %v977 = vrot.slane %v963, 1
        %v978 = vsel %vm972, %v976, %v977
        %v979 = vrot.slane %v964, 1
        %v980 = vsel %vm972, %v974, %v979
        %v981 = vrot.slane %v965, 1
        %v982 = vsel %vm972, %v977, %v981
        %v989 = vadd.f32 %v938, %v975
        %v990 = vadd.f32 %v939, %v978
        %v991 = vadd.f32 %v940, %v980
        %v992 = vadd.f32 %v941, %v982
        %v993 = vadd.f32 %v942, %v979
        %v994 = vadd.f32 %v943, %v981
        %s995 = sld [smem:[#allocation3 + $0xe]]
        %v996 = vstv %s995
        %v997 = vmul.f32 %v996, %v906
        %v998 = vmul.f32 %v996, %v907
        %v999 = vmul.f32 %v996, %v908
        %v1000 = vmul.f32 %v996, %v909
        %v1001 = vmul.f32 %v996, %v910
        %v1002 = vmul.f32 %v996, %v911
        %s1003 = sld [smem:[#allocation3 + $0x3f]]
        %v1004 = vstv %s1003
        %v1005 = vmul.f32 %v1004, %v914
        %v1006 = vmul.f32 %v1004, %v915
        %v1007 = vmul.f32 %v1004, %v916
        %v1008 = vmul.f32 %v1004, %v917
        %v1009 = vmul.f32 %v1004, %v918
        %v1010 = vmul.f32 %v1004, %v919
        %v1011 = vadd.f32 %v997, %v1005
        %v1012 = vadd.f32 %v998, %v1006
        %v1013 = vadd.f32 %v999, %v1007
        %v1014 = vadd.f32 %v1000, %v1008
        %v1015 = vadd.f32 %v1001, %v1009
        %v1016 = vadd.f32 %v1002, %v1010
        %vm1023 = vcmask 1045504
        %v1024 = vrot.slane %v1011, 2
        %v1025 = vrot.slane %v1013, 2
        %v1026 = vsel %vm1023, %v1024, %v1025
        %v1027 = vrot.slane %v1012, 2
        %v1028 = vrot.slane %v1014, 2
        %v1029 = vsel %vm1023, %v1027, %v1028
        %v1030 = vrot.slane %v1015, 2
        %v1031 = vsel %vm1023, %v1025, %v1030
        %v1032 = vrot.slane %v1016, 2
        %v1033 = vsel %vm1023, %v1028, %v1032
        %v1040 = vadd.f32 %v989, %v1026
        %v1041 = vadd.f32 %v990, %v1029
        %v1042 = vadd.f32 %v991, %v1031
        %v1043 = vadd.f32 %v992, %v1033
        %v1044 = vadd.f32 %v993, %v1030
        %v1045 = vadd.f32 %v994, %v1032
        %s1046 = sld [smem:[#allocation3 + $0x15]]
        %v1047 = vstv %s1046
        %v1048 = vmul.f32 %v1047, %v908
        %v1049 = vmul.f32 %v1047, %v909
        %v1050 = vmul.f32 %v1047, %v910
        %v1051 = vmul.f32 %v1047, %v911
        %s1052 = sld [smem:[#allocation3 + $0x46]]
        %v1053 = vstv %s1052
        %v1054 = vmul.f32 %v1053, %v916
        %v1055 = vmul.f32 %v1053, %v917
        %v1056 = vmul.f32 %v1053, %v918
        %v1057 = vmul.f32 %v1053, %v919
        %v1058 = vadd.f32 %v1048, %v1054
        %v1059 = vadd.f32 %v1049, %v1055
        %v1060 = vadd.f32 %v1050, %v1056
        %v1061 = vadd.f32 %v1051, %v1057
        %vm1066 = vcmask 1044480
        %v1067 = vrot.slane %v1058, 3
        %v1068 = vrot.slane %v1059, 3
        %v1069 = vrot.slane %v1060, 3
        %v1070 = vsel %vm1066, %v1067, %v1069
        %v1071 = vrot.slane %v1061, 3
        %v1072 = vsel %vm1066, %v1068, %v1071
        %v1079 = vadd.f32 %v1040, %v1067
        %v1080 = vadd.f32 %v1041, %v1068
        %v1081 = vadd.f32 %v1042, %v1070
        %v1082 = vadd.f32 %v1043, %v1072
        %v1083 = vadd.f32 %v1044, %v1069
        %v1084 = vadd.f32 %v1045, %v1071
        %s1085 = sld [smem:[#allocation3 + $0x1c]]
        %v1086 = vstv %s1085
        %v1087 = vmul.f32 %v1086, %v908
        %v1088 = vmul.f32 %v1086, %v909
        %v1089 = vmul.f32 %v1086, %v910
        %v1090 = vmul.f32 %v1086, %v911
        %v1091 = vmul.f32 %v1086, %v912
        %v1092 = vmul.f32 %v1086, %v913
        %s1093 = sld [smem:[#allocation3 + $0x4d]]
        %v1094 = vstv %s1093
        %v1095 = vmul.f32 %v1094, %v916
        %v1096 = vmul.f32 %v1094, %v917
        %v1097 = vmul.f32 %v1094, %v918
        %v1098 = vmul.f32 %v1094, %v919
        %v1099 = vmul.f32 %v1094, %v920
        %v1100 = vmul.f32 %v1094, %v921
        %v1101 = vadd.f32 %v1087, %v1095
        %v1102 = vadd.f32 %v1088, %v1096
        %v1103 = vadd.f32 %v1089, %v1097
        %v1104 = vadd.f32 %v1090, %v1098
        %v1105 = vadd.f32 %v1091, %v1099
        %v1106 = vadd.f32 %v1092, %v1100
        %vm1113 = vcmask 1043456
        %v1114 = vrot.slane %v1101, 4
        %v1115 = vrot.slane %v1102, 4
        %v1116 = vrot.slane %v1103, 4
        %v1117 = vsel %vm1113, %v1114, %v1116
        %v1118 = vrot.slane %v1104, 4
        %v1119 = vsel %vm1113, %v1115, %v1118
        %v1120 = vrot.slane %v1105, 4
        %v1121 = vsel %vm1113, %v1116, %v1120
        %v1122 = vrot.slane %v1106, 4
        %v1123 = vsel %vm1113, %v1118, %v1122
        %v1130 = vadd.f32 %v1079, %v1114
        %v1131 = vadd.f32 %v1080, %v1115
        %v1132 = vadd.f32 %v1081, %v1117
        %v1133 = vadd.f32 %v1082, %v1119
        %v1134 = vadd.f32 %v1083, %v1121
        %v1135 = vadd.f32 %v1084, %v1123
        %s1136 = sld [smem:[#allocation3 + $0x23]]
        %v1137 = vstv %s1136
        %v1138 = vmul.f32 %v1137, %v908
        %v1139 = vmul.f32 %v1137, %v909
        %v1140 = vmul.f32 %v1137, %v910
        %v1141 = vmul.f32 %v1137, %v911
        %v1142 = vmul.f32 %v1137, %v912
        %v1143 = vmul.f32 %v1137, %v913
        %s1144 = sld [smem:[#allocation3 + $0x54]]
        %v1145 = vstv %s1144
        %v1146 = vmul.f32 %v1145, %v916
        %v1147 = vmul.f32 %v1145, %v917
        %v1148 = vmul.f32 %v1145, %v918
        %v1149 = vmul.f32 %v1145, %v919
        %v1150 = vmul.f32 %v1145, %v920
        %v1151 = vmul.f32 %v1145, %v921
        %v1152 = vadd.f32 %v1138, %v1146
        %v1153 = vadd.f32 %v1139, %v1147
        %v1154 = vadd.f32 %v1140, %v1148
        %v1155 = vadd.f32 %v1141, %v1149
        %v1156 = vadd.f32 %v1142, %v1150
        %v1157 = vadd.f32 %v1143, %v1151
        %vm1164 = vcmask 1042432
        %v1165 = vrot.slane %v1152, 5
        %v1166 = vrot.slane %v1153, 5
        %v1167 = vrot.slane %v1154, 5
        %v1168 = vsel %vm1164, %v1165, %v1167
        %v1169 = vrot.slane %v1155, 5
        %v1170 = vsel %vm1164, %v1166, %v1169
        %v1171 = vrot.slane %v1156, 5
        %v1172 = vsel %vm1164, %v1167, %v1171
        %v1173 = vrot.slane %v1157, 5
        %v1174 = vsel %vm1164, %v1169, %v1173
        %v1181 = vadd.f32 %v1130, %v1165
        %v1182 = vadd.f32 %v1131, %v1166
        %v1183 = vadd.f32 %v1132, %v1168
        %v1184 = vadd.f32 %v1133, %v1170
        %v1185 = vadd.f32 %v1134, %v1172
        %v1186 = vadd.f32 %v1135, %v1174
        %s1187 = sld [smem:[#allocation3 + $0x2a]]
        %v1188 = vstv %s1187
        %v1189 = vmul.f32 %v1188, %v908
        %v1190 = vmul.f32 %v1188, %v909
        %v1191 = vmul.f32 %v1188, %v910
        %v1192 = vmul.f32 %v1188, %v911
        %v1193 = vmul.f32 %v1188, %v912
        %v1194 = vmul.f32 %v1188, %v913
        %s1195 = sld [smem:[#allocation3 + $0x5b]]
        %v1196 = vstv %s1195
        %v1197 = vmul.f32 %v1196, %v916
        %v1198 = vmul.f32 %v1196, %v917
        %v1199 = vmul.f32 %v1196, %v918
        %v1200 = vmul.f32 %v1196, %v919
        %v1201 = vmul.f32 %v1196, %v920
        %v1202 = vmul.f32 %v1196, %v921
        %v1203 = vadd.f32 %v1189, %v1197
        %v1204 = vadd.f32 %v1190, %v1198
        %v1205 = vadd.f32 %v1191, %v1199
        %v1206 = vadd.f32 %v1192, %v1200
        %v1207 = vadd.f32 %v1193, %v1201
        %v1208 = vadd.f32 %v1194, %v1202
        %vm1215 = vcmask 1041408
        %v1216 = vrot.slane %v1203, 6
        %v1217 = vrot.slane %v1204, 6
        %v1218 = vrot.slane %v1205, 6
        %v1219 = vsel %vm1215, %v1216, %v1218
        %v1220 = vrot.slane %v1206, 6
        %v1221 = vsel %vm1215, %v1217, %v1220
        %v1222 = vrot.slane %v1207, 6
        %v1223 = vsel %vm1215, %v1218, %v1222
        %v1224 = vrot.slane %v1208, 6
        %v1225 = vsel %vm1215, %v1220, %v1224
        %v1232 = vadd.f32 %v1181, %v1216
        %v1233 = vadd.f32 %v1182, %v1217
        %v1234 = vadd.f32 %v1183, %v1219
        %v1235 = vadd.f32 %v1184, %v1221
        %v1236 = vadd.f32 %v1185, %v1223
        %v1237 = vadd.f32 %v1186, %v1225
        %s1238 = sld [smem:[#allocation3 + $0x1]]
        %v1239 = vstv %s1238
        %v1240 = vmul.f32 %v1239, %v906
        %v1241 = vmul.f32 %v1239, %v907
        %v1242 = vmul.f32 %v1239, %v908
        %v1243 = vmul.f32 %v1239, %v909
        %v1244 = vmul.f32 %v1239, %v910
        %v1245 = vmul.f32 %v1239, %v911
        %s1246 = sld [smem:[#allocation3 + $0x32]]
        %v1247 = vstv %s1246
        %v1248 = vmul.f32 %v1247, %v914
        %v1249 = vmul.f32 %v1247, %v915
        %v1250 = vmul.f32 %v1247, %v916
        %v1251 = vmul.f32 %v1247, %v917
        %v1252 = vmul.f32 %v1247, %v918
        %v1253 = vmul.f32 %v1247, %v919
        %v1254 = vadd.f32 %v1240, %v1248
        %v1255 = vadd.f32 %v1241, %v1249
        %v1256 = vadd.f32 %v1242, %v1250
        %v1257 = vadd.f32 %v1243, %v1251
        %v1258 = vadd.f32 %v1244, %v1252
        %v1259 = vadd.f32 %v1245, %v1253
        %1266 = vrot.lane.b32.xlu0 %v1254, 127
        %v1267 = vpop.permute.xlu0 %1266
        %1268 = vrot.lane.b32.xlu0 %v1255, 127
        %v1269 = vpop.permute.xlu0 %1268
        %1270 = vrot.lane.b32.xlu0 %v1256, 127
        %v1271 = vpop.permute.xlu0 %1270
        %1272 = vrot.lane.b32.xlu0 %v1257, 127
        %v1273 = vpop.permute.xlu0 %1272
        %1274 = vrot.lane.b32.xlu0 %v1258, 127
        %v1275 = vpop.permute.xlu0 %1274
        %1276 = vrot.lane.b32.xlu0 %v1259, 127
        %v1277 = vpop.permute.xlu0 %1276
        %vm1278 = vcmask 1039360
        %v1279 = vsel %vm1278, %v1267, %v1269
        %v1280 = vsel %vm1278, %v1271, %v1273
        %v1281 = vsel %vm1278, %v1275, %v1277
        %v1288 = vadd.f32 %v1232, %v1279
        %v1289 = vadd.f32 %v1233, %v1269
        %v1290 = vadd.f32 %v1234, %v1280
        %v1291 = vadd.f32 %v1235, %v1273
        %v1292 = vadd.f32 %v1236, %v1281
        %v1293 = vadd.f32 %v1237, %v1277
        %s1294 = sld [smem:[#allocation3 + $0x8]]
        %v1295 = vstv %s1294
        %v1296 = vmul.f32 %v1295, %v906
        %v1297 = vmul.f32 %v1295, %v907
        %v1298 = vmul.f32 %v1295, %v908
        %v1299 = vmul.f32 %v1295, %v909
        %v1300 = vmul.f32 %v1295, %v910
        %v1301 = vmul.f32 %v1295, %v911
        %s1302 = sld [smem:[#allocation3 + $0x39]]
        %v1303 = vstv %s1302
        %v1304 = vmul.f32 %v1303, %v914
        %v1305 = vmul.f32 %v1303, %v915
        %v1306 = vmul.f32 %v1303, %v916
        %v1307 = vmul.f32 %v1303, %v917
        %v1308 = vmul.f32 %v1303, %v918
        %v1309 = vmul.f32 %v1303, %v919
        %v1310 = vadd.f32 %v1296, %v1304
        %v1311 = vadd.f32 %v1297, %v1305
        %v1312 = vadd.f32 %v1298, %v1306
        %v1313 = vadd.f32 %v1299, %v1307
        %v1314 = vadd.f32 %v1300, %v1308
        %v1315 = vadd.f32 %v1301, %v1309
        %v1322 = vrot.slane %v1310, 1
        %v1323 = vrot.slane %v1312, 1
        %v1324 = vsel %vm972, %v1322, %v1323
        %v1325 = vrot.slane %v1311, 1
        %v1326 = vrot.slane %v1313, 1
        %v1327 = vsel %vm972, %v1325, %v1326
        %v1328 = vrot.slane %v1314, 1
        %v1329 = vsel %vm972, %v1323, %v1328
        %v1330 = vrot.slane %v1315, 1
        %v1331 = vsel %vm972, %v1326, %v1330
        %1332 = vrot.lane.b32.xlu0 %v1324, 127
        %v1333 = vpop.permute.xlu0 %1332
        %1334 = vrot.lane.b32.xlu0 %v1327, 127
        %v1335 = vpop.permute.xlu0 %1334
        %1336 = vrot.lane.b32.xlu0 %v1329, 127
        %v1337 = vpop.permute.xlu0 %1336
        %1338 = vrot.lane.b32.xlu0 %v1331, 127
        %v1339 = vpop.permute.xlu0 %1338
        %1340 = vrot.lane.b32.xlu0 %v1328, 127
        %v1341 = vpop.permute.xlu0 %1340
        %1342 = vrot.lane.b32.xlu0 %v1330, 127
        %v1343 = vpop.permute.xlu0 %1342
        %v1344 = vsel %vm1278, %v1333, %v1335
        %v1345 = vsel %vm1278, %v1337, %v1339
        %v1346 = vsel %vm1278, %v1341, %v1343
        %v1353 = vadd.f32 %v1288, %v1344
        %v1354 = vadd.f32 %v1289, %v1335
        %v1355 = vadd.f32 %v1290, %v1345
        %v1356 = vadd.f32 %v1291, %v1339
        %v1357 = vadd.f32 %v1292, %v1346
        %v1358 = vadd.f32 %v1293, %v1343
        %s1359 = sld [smem:[#allocation3 + $0xf]]
        %v1360 = vstv %s1359
        %v1361 = vmul.f32 %v1360, %v906
        %v1362 = vmul.f32 %v1360, %v907
        %v1363 = vmul.f32 %v1360, %v908
        %v1364 = vmul.f32 %v1360, %v909
        %v1365 = vmul.f32 %v1360, %v910
        %v1366 = vmul.f32 %v1360, %v911
        %s1367 = sld [smem:[#allocation3 + $0x40]]
        %v1368 = vstv %s1367
        %v1369 = vmul.f32 %v1368, %v914
        %v1370 = vmul.f32 %v1368, %v915
        %v1371 = vmul.f32 %v1368, %v916
        %v1372 = vmul.f32 %v1368, %v917
        %v1373 = vmul.f32 %v1368, %v918
        %v1374 = vmul.f32 %v1368, %v919
        %v1375 = vadd.f32 %v1361, %v1369
        %v1376 = vadd.f32 %v1362, %v1370
        %v1377 = vadd.f32 %v1363, %v1371
        %v1378 = vadd.f32 %v1364, %v1372
        %v1379 = vadd.f32 %v1365, %v1373
        %v1380 = vadd.f32 %v1366, %v1374
        %v1387 = vrot.slane %v1375, 2
        %v1388 = vrot.slane %v1377, 2
        %v1389 = vsel %vm1023, %v1387, %v1388
        %v1390 = vrot.slane %v1376, 2
        %v1391 = vrot.slane %v1378, 2
        %v1392 = vsel %vm1023, %v1390, %v1391
        %v1393 = vrot.slane %v1379, 2
        %v1394 = vsel %vm1023, %v1388, %v1393
        %v1395 = vrot.slane %v1380, 2
        %v1396 = vsel %vm1023, %v1391, %v1395
        %1397 = vrot.lane.b32.xlu0 %v1389, 127
        %v1398 = vpop.permute.xlu0 %1397
        %1399 = vrot.lane.b32.xlu0 %v1392, 127
        %v1400 = vpop.permute.xlu0 %1399
        %1401 = vrot.lane.b32.xlu0 %v1394, 127
        %v1402 = vpop.permute.xlu0 %1401
        %1403 = vrot.lane.b32.xlu0 %v1396, 127
        %v1404 = vpop.permute.xlu0 %1403
        %1405 = vrot.lane.b32.xlu0 %v1393, 127
        %v1406 = vpop.permute.xlu0 %1405
        %1407 = vrot.lane.b32.xlu0 %v1395, 127
        %v1408 = vpop.permute.xlu0 %1407
        %v1409 = vsel %vm1278, %v1398, %v1400
        %v1410 = vsel %vm1278, %v1402, %v1404
        %v1411 = vsel %vm1278, %v1406, %v1408
        %v1418 = vadd.f32 %v1353, %v1409
        %v1419 = vadd.f32 %v1354, %v1400
        %v1420 = vadd.f32 %v1355, %v1410
        %v1421 = vadd.f32 %v1356, %v1404
        %v1422 = vadd.f32 %v1357, %v1411
        %v1423 = vadd.f32 %v1358, %v1408
        %s1424 = sld [smem:[#allocation3 + $0x16]]
        %v1425 = vstv %s1424
        %v1426 = vmul.f32 %v1425, %v908
        %v1427 = vmul.f32 %v1425, %v909
        %v1428 = vmul.f32 %v1425, %v910
        %v1429 = vmul.f32 %v1425, %v911
        %s1430 = sld [smem:[#allocation3 + $0x47]]
        %v1431 = vstv %s1430
        %v1432 = vmul.f32 %v1431, %v916
        %v1433 = vmul.f32 %v1431, %v917
        %v1434 = vmul.f32 %v1431, %v918
        %v1435 = vmul.f32 %v1431, %v919
        %v1436 = vadd.f32 %v1426, %v1432
        %v1437 = vadd.f32 %v1427, %v1433
        %v1438 = vadd.f32 %v1428, %v1434
        %v1439 = vadd.f32 %v1429, %v1435
        %v1444 = vrot.slane %v1436, 3
        %v1445 = vrot.slane %v1437, 3
        %v1446 = vrot.slane %v1438, 3
        %v1447 = vsel %vm1066, %v1444, %v1446
        %v1448 = vrot.slane %v1439, 3
        %v1449 = vsel %vm1066, %v1445, %v1448
        %1450 = vrot.lane.b32.xlu0 %v1444, 127
        %v1451 = vpop.permute.xlu0 %1450
        %1452 = vrot.lane.b32.xlu0 %v1445, 127
        %v1453 = vpop.permute.xlu0 %1452
        %1454 = vrot.lane.b32.xlu0 %v1447, 127
        %v1455 = vpop.permute.xlu0 %1454
        %1456 = vrot.lane.b32.xlu0 %v1449, 127
        %v1457 = vpop.permute.xlu0 %1456
        %1458 = vrot.lane.b32.xlu0 %v1446, 127
        %v1459 = vpop.permute.xlu0 %1458
        %1460 = vrot.lane.b32.xlu0 %v1448, 127
        %v1461 = vpop.permute.xlu0 %1460
        %v1462 = vsel %vm1278, %v1451, %v1453
        %v1463 = vsel %vm1278, %v1455, %v1457
        %v1464 = vsel %vm1278, %v1459, %v1461
        %v1471 = vadd.f32 %v1418, %v1462
        %v1472 = vadd.f32 %v1419, %v1453
        %v1473 = vadd.f32 %v1420, %v1463
        %v1474 = vadd.f32 %v1421, %v1457
        %v1475 = vadd.f32 %v1422, %v1464
        %v1476 = vadd.f32 %v1423, %v1461
        %s1477 = sld [smem:[#allocation3 + $0x1d]]
        %v1478 = vstv %s1477
        %v1479 = vmul.f32 %v1478, %v908
        %v1480 = vmul.f32 %v1478, %v909
        %v1481 = vmul.f32 %v1478, %v910
        %v1482 = vmul.f32 %v1478, %v911
        %v1483 = vmul.f32 %v1478, %v912
        %v1484 = vmul.f32 %v1478, %v913
        %s1485 = sld [smem:[#allocation3 + $0x4e]]
        %v1486 = vstv %s1485
        %v1487 = vmul.f32 %v1486, %v916
        %v1488 = vmul.f32 %v1486, %v917
        %v1489 = vmul.f32 %v1486, %v918
        %v1490 = vmul.f32 %v1486, %v919
        %v1491 = vmul.f32 %v1486, %v920
        %v1492 = vmul.f32 %v1486, %v921
        %v1493 = vadd.f32 %v1479, %v1487
        %v1494 = vadd.f32 %v1480, %v1488
        %v1495 = vadd.f32 %v1481, %v1489
        %v1496 = vadd.f32 %v1482, %v1490
        %v1497 = vadd.f32 %v1483, %v1491
        %v1498 = vadd.f32 %v1484, %v1492
        %v1505 = vrot.slane %v1493, 4
        %v1506 = vrot.slane %v1494, 4
        %v1507 = vrot.slane %v1495, 4
        %v1508 = vsel %vm1113, %v1505, %v1507
        %v1509 = vrot.slane %v1496, 4
        %v1510 = vsel %vm1113, %v1506, %v1509
        %v1511 = vrot.slane %v1497, 4
        %v1512 = vsel %vm1113, %v1507, %v1511
        %v1513 = vrot.slane %v1498, 4
        %v1514 = vsel %vm1113, %v1509, %v1513
        %1515 = vrot.lane.b32.xlu0 %v1505, 127
        %v1516 = vpop.permute.xlu0 %1515
        %1517 = vrot.lane.b32.xlu0 %v1506, 127
        %v1518 = vpop.permute.xlu0 %1517
        %1519 = vrot.lane.b32.xlu0 %v1508, 127
        %v1520 = vpop.permute.xlu0 %1519
        %1521 = vrot.lane.b32.xlu0 %v1510, 127
        %v1522 = vpop.permute.xlu0 %1521
        %1523 = vrot.lane.b32.xlu0 %v1512, 127
        %v1524 = vpop.permute.xlu0 %1523
        %1525 = vrot.lane.b32.xlu0 %v1514, 127
        %v1526 = vpop.permute.xlu0 %1525
        %v1527 = vsel %vm1278, %v1516, %v1518
        %v1528 = vsel %vm1278, %v1520, %v1522
        %v1529 = vsel %vm1278, %v1524, %v1526
        %v1536 = vadd.f32 %v1471, %v1527
        %v1537 = vadd.f32 %v1472, %v1518
        %v1538 = vadd.f32 %v1473, %v1528
        %v1539 = vadd.f32 %v1474, %v1522
        %v1540 = vadd.f32 %v1475, %v1529
        %v1541 = vadd.f32 %v1476, %v1526
        %s1542 = sld [smem:[#allocation3 + $0x24]]
        %v1543 = vstv %s1542
        %v1544 = vmul.f32 %v1543, %v908
        %v1545 = vmul.f32 %v1543, %v909
        %v1546 = vmul.f32 %v1543, %v910
        %v1547 = vmul.f32 %v1543, %v911
        %v1548 = vmul.f32 %v1543, %v912
        %v1549 = vmul.f32 %v1543, %v913
        %s1550 = sld [smem:[#allocation3 + $0x55]]
        %v1551 = vstv %s1550
        %v1552 = vmul.f32 %v1551, %v916
        %v1553 = vmul.f32 %v1551, %v917
        %v1554 = vmul.f32 %v1551, %v918
        %v1555 = vmul.f32 %v1551, %v919
        %v1556 = vmul.f32 %v1551, %v920
        %v1557 = vmul.f32 %v1551, %v921
        %v1558 = vadd.f32 %v1544, %v1552
        %v1559 = vadd.f32 %v1545, %v1553
        %v1560 = vadd.f32 %v1546, %v1554
        %v1561 = vadd.f32 %v1547, %v1555
        %v1562 = vadd.f32 %v1548, %v1556
        %v1563 = vadd.f32 %v1549, %v1557
        %v1570 = vrot.slane %v1558, 5
        %v1571 = vrot.slane %v1559, 5
        %v1572 = vrot.slane %v1560, 5
        %v1573 = vsel %vm1164, %v1570, %v1572
        %v1574 = vrot.slane %v1561, 5
        %v1575 = vsel %vm1164, %v1571, %v1574
        %v1576 = vrot.slane %v1562, 5
        %v1577 = vsel %vm1164, %v1572, %v1576
        %v1578 = vrot.slane %v1563, 5
        %v1579 = vsel %vm1164, %v1574, %v1578
        %1580 = vrot.lane.b32.xlu0 %v1570, 127
        %v1581 = vpop.permute.xlu0 %1580
        %1582 = vrot.lane.b32.xlu0 %v1571, 127
        %v1583 = vpop.permute.xlu0 %1582
        %1584 = vrot.lane.b32.xlu0 %v1573, 127
        %v1585 = vpop.permute.xlu0 %1584
        %1586 = vrot.lane.b32.xlu0 %v1575, 127
        %v1587 = vpop.permute.xlu0 %1586
        %1588 = vrot.lane.b32.xlu0 %v1577, 127
        %v1589 = vpop.permute.xlu0 %1588
        %1590 = vrot.lane.b32.xlu0 %v1579, 127
        %v1591 = vpop.permute.xlu0 %1590
        %v1592 = vsel %vm1278, %v1581, %v1583
        %v1593 = vsel %vm1278, %v1585, %v1587
        %v1594 = vsel %vm1278, %v1589, %v1591
        %v1601 = vadd.f32 %v1536, %v1592
        %v1602 = vadd.f32 %v1537, %v1583
        %v1603 = vadd.f32 %v1538, %v1593
        %v1604 = vadd.f32 %v1539, %v1587
        %v1605 = vadd.f32 %v1540, %v1594
        %v1606 = vadd.f32 %v1541, %v1591
        %s1607 = sld [smem:[#allocation3 + $0x2b]]
        %v1608 = vstv %s1607
        %v1609 = vmul.f32 %v1608, %v908
        %v1610 = vmul.f32 %v1608, %v909
        %v1611 = vmul.f32 %v1608, %v910
        %v1612 = vmul.f32 %v1608, %v911
        %v1613 = vmul.f32 %v1608, %v912
        %v1614 = vmul.f32 %v1608, %v913
        %s1615 = sld [smem:[#allocation3 + $0x5c]]
        %v1616 = vstv %s1615
        %v1617 = vmul.f32 %v1616, %v916
        %v1618 = vmul.f32 %v1616, %v917
        %v1619 = vmul.f32 %v1616, %v918
        %v1620 = vmul.f32 %v1616, %v919
        %v1621 = vmul.f32 %v1616, %v920
        %v1622 = vmul.f32 %v1616, %v921
        %v1623 = vadd.f32 %v1609, %v1617
        %v1624 = vadd.f32 %v1610, %v1618
        %v1625 = vadd.f32 %v1611, %v1619
        %v1626 = vadd.f32 %v1612, %v1620
        %v1627 = vadd.f32 %v1613, %v1621
        %v1628 = vadd.f32 %v1614, %v1622
        %v1635 = vrot.slane %v1623, 6
        %v1636 = vrot.slane %v1624, 6
        %v1637 = vrot.slane %v1625, 6
        %v1638 = vsel %vm1215, %v1635, %v1637
        %v1639 = vrot.slane %v1626, 6
        %v1640 = vsel %vm1215, %v1636, %v1639
        %v1641 = vrot.slane %v1627, 6
        %v1642 = vsel %vm1215, %v1637, %v1641
        %v1643 = vrot.slane %v1628, 6
        %v1644 = vsel %vm1215, %v1639, %v1643
        %1645 = vrot.lane.b32.xlu0 %v1635, 127
        %v1646 = vpop.permute.xlu0 %1645
        %1647 = vrot.lane.b32.xlu0 %v1636, 127
        %v1648 = vpop.permute.xlu0 %1647
        %1649 = vrot.lane.b32.xlu0 %v1638, 127
        %v1650 = vpop.permute.xlu0 %1649
        %1651 = vrot.lane.b32.xlu0 %v1640, 127
        %v1652 = vpop.permute.xlu0 %1651
        %1653 = vrot.lane.b32.xlu0 %v1642, 127
        %v1654 = vpop.permute.xlu0 %1653
        %1655 = vrot.lane.b32.xlu0 %v1644, 127
        %v1656 = vpop.permute.xlu0 %1655
        %v1657 = vsel %vm1278, %v1646, %v1648
        %v1658 = vsel %vm1278, %v1650, %v1652
        %v1659 = vsel %vm1278, %v1654, %v1656
        %v1666 = vadd.f32 %v1601, %v1657
        %v1667 = vadd.f32 %v1602, %v1648
        %v1668 = vadd.f32 %v1603, %v1658
        %v1669 = vadd.f32 %v1604, %v1652
        %v1670 = vadd.f32 %v1605, %v1659
        %v1671 = vadd.f32 %v1606, %v1656
        %s1672 = sld [smem:[#allocation3 + $0x2]]
        %v1673 = vstv %s1672
        %v1674 = vmul.f32 %v1673, %v906
        %v1675 = vmul.f32 %v1673, %v907
        %v1676 = vmul.f32 %v1673, %v908
        %v1677 = vmul.f32 %v1673, %v909
        %v1678 = vmul.f32 %v1673, %v910
        %v1679 = vmul.f32 %v1673, %v911
        %s1680 = sld [smem:[#allocation3 + $0x33]]
        %v1681 = vstv %s1680
        %v1682 = vmul.f32 %v1681, %v914
        %v1683 = vmul.f32 %v1681, %v915
        %v1684 = vmul.f32 %v1681, %v916
        %v1685 = vmul.f32 %v1681, %v917
        %v1686 = vmul.f32 %v1681, %v918
        %v1687 = vmul.f32 %v1681, %v919
        %v1688 = vadd.f32 %v1674, %v1682
        %v1689 = vadd.f32 %v1675, %v1683
        %v1690 = vadd.f32 %v1676, %v1684
        %v1691 = vadd.f32 %v1677, %v1685
        %v1692 = vadd.f32 %v1678, %v1686
        %v1693 = vadd.f32 %v1679, %v1687
        %1700 = vrot.lane.b32.xlu0 %v1688, 126
        %v1701 = vpop.permute.xlu0 %1700
        %1702 = vrot.lane.b32.xlu0 %v1689, 126
        %v1703 = vpop.permute.xlu0 %1702
        %1704 = vrot.lane.b32.xlu0 %v1690, 126
        %v1705 = vpop.permute.xlu0 %1704
        %1706 = vrot.lane.b32.xlu0 %v1691, 126
        %v1707 = vpop.permute.xlu0 %1706
        %1708 = vrot.lane.b32.xlu0 %v1692, 126
        %v1709 = vpop.permute.xlu0 %1708
        %1710 = vrot.lane.b32.xlu0 %v1693, 126
        %v1711 = vpop.permute.xlu0 %1710
        %vm1712 = vcmask 1031168
        %v1713 = vsel %vm1712, %v1701, %v1703
        %v1714 = vsel %vm1712, %v1705, %v1707
        %v1715 = vsel %vm1712, %v1709, %v1711
        %v1722 = vadd.f32 %v1666, %v1713
        %v1723 = vadd.f32 %v1667, %v1703
        %v1724 = vadd.f32 %v1668, %v1714
        %v1725 = vadd.f32 %v1669, %v1707
        %v1726 = vadd.f32 %v1670, %v1715
        %v1727 = vadd.f32 %v1671, %v1711
        %s1728 = sld [smem:[#allocation3 + $0x9]]
        %v1729 = vstv %s1728
        %v1730 = vmul.f32 %v1729, %v906
        %v1731 = vmul.f32 %v1729, %v907
        %v1732 = vmul.f32 %v1729, %v908
        %v1733 = vmul.f32 %v1729, %v909
        %v1734 = vmul.f32 %v1729, %v910
        %v1735 = vmul.f32 %v1729, %v911
        %s1736 = sld [smem:[#allocation3 + $0x3a]]
        %v1737 = vstv %s1736
        %v1738 = vmul.f32 %v1737, %v914
        %v1739 = vmul.f32 %v1737, %v915
        %v1740 = vmul.f32 %v1737, %v916
        %v1741 = vmul.f32 %v1737, %v917
        %v1742 = vmul.f32 %v1737, %v918
        %v1743 = vmul.f32 %v1737, %v919
        %v1744 = vadd.f32 %v1730, %v1738
        %v1745 = vadd.f32 %v1731, %v1739
        %v1746 = vadd.f32 %v1732, %v1740
        %v1747 = vadd.f32 %v1733, %v1741
        %v1748 = vadd.f32 %v1734, %v1742
        %v1749 = vadd.f32 %v1735, %v1743
        %v1756 = vrot.slane %v1744, 1
        %v1757 = vrot.slane %v1746, 1
        %v1758 = vsel %vm972, %v1756, %v1757
        %v1759 = vrot.slane %v1745, 1
        %v1760 = vrot.slane %v1747, 1
        %v1761 = vsel %vm972, %v1759, %v1760
        %v1762 = vrot.slane %v1748, 1
        %v1763 = vsel %vm972, %v1757, %v1762
        %v1764 = vrot.slane %v1749, 1
        %v1765 = vsel %vm972, %v1760, %v1764
        %1766 = vrot.lane.b32.xlu0 %v1758, 126
        %v1767 = vpop.permute.xlu0 %1766
        %1768 = vrot.lane.b32.xlu0 %v1761, 126
        %v1769 = vpop.permute.xlu0 %1768
        %1770 = vrot.lane.b32.xlu0 %v1763, 126
        %v1771 = vpop.permute.xlu0 %1770
        %1772 = vrot.lane.b32.xlu0 %v1765, 126
        %v1773 = vpop.permute.xlu0 %1772
        %1774 = vrot.lane.b32.xlu0 %v1762, 126
        %v1775 = vpop.permute.xlu0 %1774
        %1776 = vrot.lane.b32.xlu0 %v1764, 126
        %v1777 = vpop.permute.xlu0 %1776
        %v1778 = vsel %vm1712, %v1767, %v1769
        %v1779 = vsel %vm1712, %v1771, %v1773
        %v1780 = vsel %vm1712, %v1775, %v1777
        %v1787 = vadd.f32 %v1722, %v1778
        %v1788 = vadd.f32 %v1723, %v1769
        %v1789 = vadd.f32 %v1724, %v1779
        %v1790 = vadd.f32 %v1725, %v1773
        %v1791 = vadd.f32 %v1726, %v1780
        %v1792 = vadd.f32 %v1727, %v1777
        %s1793 = sld [smem:[#allocation3 + $0x10]]
        %v1794 = vstv %s1793
        %v1795 = vmul.f32 %v1794, %v906
        %v1796 = vmul.f32 %v1794, %v907
        %v1797 = vmul.f32 %v1794, %v908
        %v1798 = vmul.f32 %v1794, %v909
        %v1799 = vmul.f32 %v1794, %v910
        %v1800 = vmul.f32 %v1794, %v911
        %s1801 = sld [smem:[#allocation3 + $0x41]]
        %v1802 = vstv %s1801
        %v1803 = vmul.f32 %v1802, %v914
        %v1804 = vmul.f32 %v1802, %v915
        %v1805 = vmul.f32 %v1802, %v916
        %v1806 = vmul.f32 %v1802, %v917
        %v1807 = vmul.f32 %v1802, %v918
        %v1808 = vmul.f32 %v1802, %v919
        %v1809 = vadd.f32 %v1795, %v1803
        %v1810 = vadd.f32 %v1796, %v1804
        %v1811 = vadd.f32 %v1797, %v1805
        %v1812 = vadd.f32 %v1798, %v1806
        %v1813 = vadd.f32 %v1799, %v1807
        %v1814 = vadd.f32 %v1800, %v1808
        %v1821 = vrot.slane %v1809, 2
        %v1822 = vrot.slane %v1811, 2
        %v1823 = vsel %vm1023, %v1821, %v1822
        %v1824 = vrot.slane %v1810, 2
        %v1825 = vrot.slane %v1812, 2
        %v1826 = vsel %vm1023, %v1824, %v1825
        %v1827 = vrot.slane %v1813, 2
        %v1828 = vsel %vm1023, %v1822, %v1827
        %v1829 = vrot.slane %v1814, 2
        %v1830 = vsel %vm1023, %v1825, %v1829
        %1831 = vrot.lane.b32.xlu0 %v1823, 126
        %v1832 = vpop.permute.xlu0 %1831
        %1833 = vrot.lane.b32.xlu0 %v1826, 126
        %v1834 = vpop.permute.xlu0 %1833
        %1835 = vrot.lane.b32.xlu0 %v1828, 126
        %v1836 = vpop.permute.xlu0 %1835
        %1837 = vrot.lane.b32.xlu0 %v1830, 126
        %v1838 = vpop.permute.xlu0 %1837
        %1839 = vrot.lane.b32.xlu0 %v1827, 126
        %v1840 = vpop.permute.xlu0 %1839
        %1841 = vrot.lane.b32.xlu0 %v1829, 126
        %v1842 = vpop.permute.xlu0 %1841
        %v1843 = vsel %vm1712, %v1832, %v1834
        %v1844 = vsel %vm1712, %v1836, %v1838
        %v1845 = vsel %vm1712, %v1840, %v1842
        %v1852 = vadd.f32 %v1787, %v1843
        %v1853 = vadd.f32 %v1788, %v1834
        %v1854 = vadd.f32 %v1789, %v1844
        %v1855 = vadd.f32 %v1790, %v1838
        %v1856 = vadd.f32 %v1791, %v1845
        %v1857 = vadd.f32 %v1792, %v1842
        %s1858 = sld [smem:[#allocation3 + $0x17]]
        %v1859 = vstv %s1858
        %v1860 = vmul.f32 %v1859, %v908
        %v1861 = vmul.f32 %v1859, %v909
        %v1862 = vmul.f32 %v1859, %v910
        %v1863 = vmul.f32 %v1859, %v911
        %s1864 = sld [smem:[#allocation3 + $0x48]]
        %v1865 = vstv %s1864
        %v1866 = vmul.f32 %v1865, %v916
        %v1867 = vmul.f32 %v1865, %v917
        %v1868 = vmul.f32 %v1865, %v918
        %v1869 = vmul.f32 %v1865, %v919
        %v1870 = vadd.f32 %v1860, %v1866
        %v1871 = vadd.f32 %v1861, %v1867
        %v1872 = vadd.f32 %v1862, %v1868
        %v1873 = vadd.f32 %v1863, %v1869
        %v1878 = vrot.slane %v1870, 3
        %v1879 = vrot.slane %v1871, 3
        %v1880 = vrot.slane %v1872, 3
        %v1881 = vsel %vm1066, %v1878, %v1880
        %v1882 = vrot.slane %v1873, 3
        %v1883 = vsel %vm1066, %v1879, %v1882
        %1884 = vrot.lane.b32.xlu0 %v1878, 126
        %v1885 = vpop.permute.xlu0 %1884
        %1886 = vrot.lane.b32.xlu0 %v1879, 126
        %v1887 = vpop.permute.xlu0 %1886
        %1888 = vrot.lane.b32.xlu0 %v1881, 126
        %v1889 = vpop.permute.xlu0 %1888
        %1890 = vrot.lane.b32.xlu0 %v1883, 126
        %v1891 = vpop.permute.xlu0 %1890
        %1892 = vrot.lane.b32.xlu0 %v1880, 126
        %v1893 = vpop.permute.xlu0 %1892
        %1894 = vrot.lane.b32.xlu0 %v1882, 126
        %v1895 = vpop.permute.xlu0 %1894
        %v1896 = vsel %vm1712, %v1885, %v1887
        %v1897 = vsel %vm1712, %v1889, %v1891
        %v1898 = vsel %vm1712, %v1893, %v1895
        %v1905 = vadd.f32 %v1852, %v1896
        %v1906 = vadd.f32 %v1853, %v1887
        %v1907 = vadd.f32 %v1854, %v1897
        %v1908 = vadd.f32 %v1855, %v1891
        %v1909 = vadd.f32 %v1856, %v1898
        %v1910 = vadd.f32 %v1857, %v1895
        %s1911 = sld [smem:[#allocation3 + $0x1e]]
        %v1912 = vstv %s1911
        %v1913 = vmul.f32 %v1912, %v908
        %v1914 = vmul.f32 %v1912, %v909
        %v1915 = vmul.f32 %v1912, %v910
        %v1916 = vmul.f32 %v1912, %v911
        %v1917 = vmul.f32 %v1912, %v912
        %v1918 = vmul.f32 %v1912, %v913
        %s1919 = sld [smem:[#allocation3 + $0x4f]]
        %v1920 = vstv %s1919
        %v1921 = vmul.f32 %v1920, %v916
        %v1922 = vmul.f32 %v1920, %v917
        %v1923 = vmul.f32 %v1920, %v918
        %v1924 = vmul.f32 %v1920, %v919
        %v1925 = vmul.f32 %v1920, %v920
        %v1926 = vmul.f32 %v1920, %v921
        %v1927 = vadd.f32 %v1913, %v1921
        %v1928 = vadd.f32 %v1914, %v1922
        %v1929 = vadd.f32 %v1915, %v1923
        %v1930 = vadd.f32 %v1916, %v1924
        %v1931 = vadd.f32 %v1917, %v1925
        %v1932 = vadd.f32 %v1918, %v1926
        %v1939 = vrot.slane %v1927, 4
        %v1940 = vrot.slane %v1928, 4
        %v1941 = vrot.slane %v1929, 4
        %v1942 = vsel %vm1113, %v1939, %v1941
        %v1943 = vrot.slane %v1930, 4
        %v1944 = vsel %vm1113, %v1940, %v1943
        %v1945 = vrot.slane %v1931, 4
        %v1946 = vsel %vm1113, %v1941, %v1945
        %v1947 = vrot.slane %v1932, 4
        %v1948 = vsel %vm1113, %v1943, %v1947
        %1949 = vrot.lane.b32.xlu0 %v1939, 126
        %v1950 = vpop.permute.xlu0 %1949
        %1951 = vrot.lane.b32.xlu0 %v1940, 126
        %v1952 = vpop.permute.xlu0 %1951
        %1953 = vrot.lane.b32.xlu0 %v1942, 126
        %v1954 = vpop.permute.xlu0 %1953
        %1955 = vrot.lane.b32.xlu0 %v1944, 126
        %v1956 = vpop.permute.xlu0 %1955
        %1957 = vrot.lane.b32.xlu0 %v1946, 126
        %v1958 = vpop.permute.xlu0 %1957
        %1959 = vrot.lane.b32.xlu0 %v1948, 126
        %v1960 = vpop.permute.xlu0 %1959
        %v1961 = vsel %vm1712, %v1950, %v1952
        %v1962 = vsel %vm1712, %v1954, %v1956
        %v1963 = vsel %vm1712, %v1958, %v1960
        %v1970 = vadd.f32 %v1905, %v1961
        %v1971 = vadd.f32 %v1906, %v1952
        %v1972 = vadd.f32 %v1907, %v1962
        %v1973 = vadd.f32 %v1908, %v1956
        %v1974 = vadd.f32 %v1909, %v1963
        %v1975 = vadd.f32 %v1910, %v1960
        %s1976 = sld [smem:[#allocation3 + $0x25]]
        %v1977 = vstv %s1976
        %v1978 = vmul.f32 %v1977, %v908
        %v1979 = vmul.f32 %v1977, %v909
        %v1980 = vmul.f32 %v1977, %v910
        %v1981 = vmul.f32 %v1977, %v911
        %v1982 = vmul.f32 %v1977, %v912
        %v1983 = vmul.f32 %v1977, %v913
        %s1984 = sld [smem:[#allocation3 + $0x56]]
        %v1985 = vstv %s1984
        %v1986 = vmul.f32 %v1985, %v916
        %v1987 = vmul.f32 %v1985, %v917
        %v1988 = vmul.f32 %v1985, %v918
        %v1989 = vmul.f32 %v1985, %v919
        %v1990 = vmul.f32 %v1985, %v920
        %v1991 = vmul.f32 %v1985, %v921
        %v1992 = vadd.f32 %v1978, %v1986
        %v1993 = vadd.f32 %v1979, %v1987
        %v1994 = vadd.f32 %v1980, %v1988
        %v1995 = vadd.f32 %v1981, %v1989
        %v1996 = vadd.f32 %v1982, %v1990
        %v1997 = vadd.f32 %v1983, %v1991
        %v2004 = vrot.slane %v1992, 5
        %v2005 = vrot.slane %v1993, 5
        %v2006 = vrot.slane %v1994, 5
        %v2007 = vsel %vm1164, %v2004, %v2006
        %v2008 = vrot.slane %v1995, 5
        %v2009 = vsel %vm1164, %v2005, %v2008
        %v2010 = vrot.slane %v1996, 5
        %v2011 = vsel %vm1164, %v2006, %v2010
        %v2012 = vrot.slane %v1997, 5
        %v2013 = vsel %vm1164, %v2008, %v2012
        %2014 = vrot.lane.b32.xlu0 %v2004, 126
        %v2015 = vpop.permute.xlu0 %2014
        %2016 = vrot.lane.b32.xlu0 %v2005, 126
        %v2017 = vpop.permute.xlu0 %2016
        %2018 = vrot.lane.b32.xlu0 %v2007, 126
        %v2019 = vpop.permute.xlu0 %2018
        %2020 = vrot.lane.b32.xlu0 %v2009, 126
        %v2021 = vpop.permute.xlu0 %2020
        %2022 = vrot.lane.b32.xlu0 %v2011, 126
        %v2023 = vpop.permute.xlu0 %2022
        %2024 = vrot.lane.b32.xlu0 %v2013, 126
        %v2025 = vpop.permute.xlu0 %2024
        %v2026 = vsel %vm1712, %v2015, %v2017
        %v2027 = vsel %vm1712, %v2019, %v2021
        %v2028 = vsel %vm1712, %v2023, %v2025
        %v2035 = vadd.f32 %v1970, %v2026
        %v2036 = vadd.f32 %v1971, %v2017
        %v2037 = vadd.f32 %v1972, %v2027
        %v2038 = vadd.f32 %v1973, %v2021
        %v2039 = vadd.f32 %v1974, %v2028
        %v2040 = vadd.f32 %v1975, %v2025
        %s2041 = sld [smem:[#allocation3 + $0x2c]]
        %v2042 = vstv %s2041
        %v2043 = vmul.f32 %v2042, %v908
        %v2044 = vmul.f32 %v2042, %v909
        %v2045 = vmul.f32 %v2042, %v910
        %v2046 = vmul.f32 %v2042, %v911
        %v2047 = vmul.f32 %v2042, %v912
        %v2048 = vmul.f32 %v2042, %v913
        %s2049 = sld [smem:[#allocation3 + $0x5d]]
        %v2050 = vstv %s2049
        %v2051 = vmul.f32 %v2050, %v916
        %v2052 = vmul.f32 %v2050, %v917
        %v2053 = vmul.f32 %v2050, %v918
        %v2054 = vmul.f32 %v2050, %v919
        %v2055 = vmul.f32 %v2050, %v920
        %v2056 = vmul.f32 %v2050, %v921
        %v2057 = vadd.f32 %v2043, %v2051
        %v2058 = vadd.f32 %v2044, %v2052
        %v2059 = vadd.f32 %v2045, %v2053
        %v2060 = vadd.f32 %v2046, %v2054
        %v2061 = vadd.f32 %v2047, %v2055
        %v2062 = vadd.f32 %v2048, %v2056
        %v2069 = vrot.slane %v2057, 6
        %v2070 = vrot.slane %v2058, 6
        %v2071 = vrot.slane %v2059, 6
        %v2072 = vsel %vm1215, %v2069, %v2071
        %v2073 = vrot.slane %v2060, 6
        %v2074 = vsel %vm1215, %v2070, %v2073
        %v2075 = vrot.slane %v2061, 6
        %v2076 = vsel %vm1215, %v2071, %v2075
        %v2077 = vrot.slane %v2062, 6
        %v2078 = vsel %vm1215, %v2073, %v2077
        %2079 = vrot.lane.b32.xlu0 %v2069, 126
        %v2080 = vpop.permute.xlu0 %2079
        %2081 = vrot.lane.b32.xlu0 %v2070, 126
        %v2082 = vpop.permute.xlu0 %2081
        %2083 = vrot.lane.b32.xlu0 %v2072, 126
        %v2084 = vpop.permute.xlu0 %2083
        %2085 = vrot.lane.b32.xlu0 %v2074, 126
        %v2086 = vpop.permute.xlu0 %2085
        %2087 = vrot.lane.b32.xlu0 %v2076, 126
        %v2088 = vpop.permute.xlu0 %2087
        %2089 = vrot.lane.b32.xlu0 %v2078, 126
        %v2090 = vpop.permute.xlu0 %2089
        %v2091 = vsel %vm1712, %v2080, %v2082
        %v2092 = vsel %vm1712, %v2084, %v2086
        %v2093 = vsel %vm1712, %v2088, %v2090
        %v2100 = vadd.f32 %v2035, %v2091
        %v2101 = vadd.f32 %v2036, %v2082
        %v2102 = vadd.f32 %v2037, %v2092
        %v2103 = vadd.f32 %v2038, %v2086
        %v2104 = vadd.f32 %v2039, %v2093
        %v2105 = vadd.f32 %v2040, %v2090
        %s2106 = sld [smem:[#allocation3 + $0x3]]
        %v2107 = vstv %s2106
        %v2108 = vmul.f32 %v2107, %v907
        %v2109 = vmul.f32 %v2107, %v909
        %v2110 = vmul.f32 %v2107, %v911
        %s2111 = sld [smem:[#allocation3 + $0x34]]
        %v2112 = vstv %s2111
        %v2113 = vmul.f32 %v2112, %v915
        %v2114 = vmul.f32 %v2112, %v917
        %v2115 = vmul.f32 %v2112, %v919
        %v2116 = vadd.f32 %v2108, %v2113
        %v2117 = vadd.f32 %v2109, %v2114
        %v2118 = vadd.f32 %v2110, %v2115
        %2122 = vrot.lane.b32.xlu0 %v2116, 125
        %v2123 = vpop.permute.xlu0 %2122
        %2124 = vrot.lane.b32.xlu0 %v2117, 125
        %v2125 = vpop.permute.xlu0 %2124
        %2126 = vrot.lane.b32.xlu0 %v2118, 125
        %v2127 = vpop.permute.xlu0 %2126
        %v2131 = vadd.f32 %v2100, %v2123
        %v2132 = vadd.f32 %v2101, %v2123
        %v2133 = vadd.f32 %v2102, %v2125
        %v2134 = vadd.f32 %v2103, %v2125
        %v2135 = vadd.f32 %v2104, %v2127
        %v2136 = vadd.f32 %v2105, %v2127
        %s2137 = sld [smem:[#allocation3 + $0xa]]
        %v2138 = vstv %s2137
        %v2139 = vmul.f32 %v2138, %v907
        %v2140 = vmul.f32 %v2138, %v909
        %v2141 = vmul.f32 %v2138, %v911
        %s2142 = sld [smem:[#allocation3 + $0x3b]]
        %v2143 = vstv %s2142
        %v2144 = vmul.f32 %v2143, %v915
        %v2145 = vmul.f32 %v2143, %v917
        %v2146 = vmul.f32 %v2143, %v919
        %v2147 = vadd.f32 %v2139, %v2144
        %v2148 = vadd.f32 %v2140, %v2145
        %v2149 = vadd.f32 %v2141, %v2146
        %v2153 = vrot.slane %v2147, 1
        %v2154 = vrot.slane %v2148, 1
        %v2155 = vsel %vm972, %v2153, %v2154
        %v2156 = vrot.slane %v2149, 1
        %v2157 = vsel %vm972, %v2154, %v2156
        %2158 = vrot.lane.b32.xlu0 %v2155, 125
        %v2159 = vpop.permute.xlu0 %2158
        %2160 = vrot.lane.b32.xlu0 %v2157, 125
        %v2161 = vpop.permute.xlu0 %2160
        %2162 = vrot.lane.b32.xlu0 %v2156, 125
        %v2163 = vpop.permute.xlu0 %2162
        %v2167 = vadd.f32 %v2131, %v2159
        %v2168 = vadd.f32 %v2132, %v2159
        %v2169 = vadd.f32 %v2133, %v2161
        %v2170 = vadd.f32 %v2134, %v2161
        %v2171 = vadd.f32 %v2135, %v2163
        %v2172 = vadd.f32 %v2136, %v2163
        %s2173 = sld [smem:[#allocation3 + $0x11]]
        %v2174 = vstv %s2173
        %v2175 = vmul.f32 %v2174, %v907
        %v2176 = vmul.f32 %v2174, %v909
        %v2177 = vmul.f32 %v2174, %v911
        %s2178 = sld [smem:[#allocation3 + $0x42]]
        %v2179 = vstv %s2178
        %v2180 = vmul.f32 %v2179, %v915
        %v2181 = vmul.f32 %v2179, %v917
        %v2182 = vmul.f32 %v2179, %v919
        %v2183 = vadd.f32 %v2175, %v2180
        %v2184 = vadd.f32 %v2176, %v2181
        %v2185 = vadd.f32 %v2177, %v2182
        %v2189 = vrot.slane %v2183, 2
        %v2190 = vrot.slane %v2184, 2
        %v2191 = vsel %vm1023, %v2189, %v2190
        %v2192 = vrot.slane %v2185, 2
        %v2193 = vsel %vm1023, %v2190, %v2192
        %2194 = vrot.lane.b32.xlu0 %v2191, 125
        %v2195 = vpop.permute.xlu0 %2194
        %2196 = vrot.lane.b32.xlu0 %v2193, 125
        %v2197 = vpop.permute.xlu0 %2196
        %2198 = vrot.lane.b32.xlu0 %v2192, 125
        %v2199 = vpop.permute.xlu0 %2198
        %v2203 = vadd.f32 %v2167, %v2195
        %v2204 = vadd.f32 %v2168, %v2195
        %v2205 = vadd.f32 %v2169, %v2197
        %v2206 = vadd.f32 %v2170, %v2197
        %v2207 = vadd.f32 %v2171, %v2199
        %v2208 = vadd.f32 %v2172, %v2199
        %s2209 = sld [smem:[#allocation3 + $0x18]]
        %v2210 = vstv %s2209
        %v2211 = vmul.f32 %v2210, %v909
        %v2212 = vmul.f32 %v2210, %v911
        %s2213 = sld [smem:[#allocation3 + $0x49]]
        %v2214 = vstv %s2213
        %v2215 = vmul.f32 %v2214, %v917
        %v2216 = vmul.f32 %v2214, %v919
        %v2217 = vadd.f32 %v2211, %v2215
        %v2218 = vadd.f32 %v2212, %v2216
        %v2221 = vrot.slane %v2217, 3
        %v2222 = vrot.slane %v2218, 3
        %v2223 = vsel %vm1066, %v2221, %v2222
        %2224 = vrot.lane.b32.xlu0 %v2221, 125
        %v2225 = vpop.permute.xlu0 %2224
        %2226 = vrot.lane.b32.xlu0 %v2223, 125
        %v2227 = vpop.permute.xlu0 %2226
        %2228 = vrot.lane.b32.xlu0 %v2222, 125
        %v2229 = vpop.permute.xlu0 %2228
        %v2233 = vadd.f32 %v2203, %v2225
        %v2234 = vadd.f32 %v2204, %v2225
        %v2235 = vadd.f32 %v2205, %v2227
        %v2236 = vadd.f32 %v2206, %v2227
        %v2237 = vadd.f32 %v2207, %v2229
        %v2238 = vadd.f32 %v2208, %v2229
        %s2239 = sld [smem:[#allocation3 + $0x1f]]
        %v2240 = vstv %s2239
        %v2241 = vmul.f32 %v2240, %v909
        %v2242 = vmul.f32 %v2240, %v911
        %v2243 = vmul.f32 %v2240, %v913
        %s2244 = sld [smem:[#allocation3 + $0x50]]
        %v2245 = vstv %s2244
        %v2246 = vmul.f32 %v2245, %v917
        %v2247 = vmul.f32 %v2245, %v919
        %v2248 = vmul.f32 %v2245, %v921
        %v2249 = vadd.f32 %v2241, %v2246
        %v2250 = vadd.f32 %v2242, %v2247
        %v2251 = vadd.f32 %v2243, %v2248
        %v2255 = vrot.slane %v2249, 4
        %v2256 = vrot.slane %v2250, 4
        %v2257 = vsel %vm1113, %v2255, %v2256
        %v2258 = vrot.slane %v2251, 4
        %v2259 = vsel %vm1113, %v2256, %v2258
        %2260 = vrot.lane.b32.xlu0 %v2255, 125
        %v2261 = vpop.permute.xlu0 %2260
        %2262 = vrot.lane.b32.xlu0 %v2257, 125
        %v2263 = vpop.permute.xlu0 %2262
        %2264 = vrot.lane.b32.xlu0 %v2259, 125
        %v2265 = vpop.permute.xlu0 %2264
        %v2269 = vadd.f32 %v2233, %v2261
        %v2270 = vadd.f32 %v2234, %v2261
        %v2271 = vadd.f32 %v2235, %v2263
        %v2272 = vadd.f32 %v2236, %v2263
        %v2273 = vadd.f32 %v2237, %v2265
        %v2274 = vadd.f32 %v2238, %v2265
        %s2275 = sld [smem:[#allocation3 + $0x26]]
        %v2276 = vstv %s2275
        %v2277 = vmul.f32 %v2276, %v909
        %v2278 = vmul.f32 %v2276, %v911
        %v2279 = vmul.f32 %v2276, %v913
        %s2280 = sld [smem:[#allocation3 + $0x57]]
        %v2281 = vstv %s2280
        %v2282 = vmul.f32 %v2281, %v917
        %v2283 = vmul.f32 %v2281, %v919
        %v2284 = vmul.f32 %v2281, %v921
        %v2285 = vadd.f32 %v2277, %v2282
        %v2286 = vadd.f32 %v2278, %v2283
        %v2287 = vadd.f32 %v2279, %v2284
        %v2291 = vrot.slane %v2285, 5
        %v2292 = vrot.slane %v2286, 5
        %v2293 = vsel %vm1164, %v2291, %v2292
        %v2294 = vrot.slane %v2287, 5
        %v2295 = vsel %vm1164, %v2292, %v2294
        %2296 = vrot.lane.b32.xlu0 %v2291, 125
        %v2297 = vpop.permute.xlu0 %2296
        %2298 = vrot.lane.b32.xlu0 %v2293, 125
        %v2299 = vpop.permute.xlu0 %2298
        %2300 = vrot.lane.b32.xlu0 %v2295, 125
        %v2301 = vpop.permute.xlu0 %2300
        %v2305 = vadd.f32 %v2269, %v2297
        %v2306 = vadd.f32 %v2270, %v2297
        %v2307 = vadd.f32 %v2271, %v2299
        %v2308 = vadd.f32 %v2272, %v2299
        %v2309 = vadd.f32 %v2273, %v2301
        %v2310 = vadd.f32 %v2274, %v2301
        %s2311 = sld [smem:[#allocation3 + $0x2d]]
        %v2312 = vstv %s2311
        %v2313 = vmul.f32 %v2312, %v909
        %v2314 = vmul.f32 %v2312, %v911
        %v2315 = vmul.f32 %v2312, %v913
        %s2316 = sld [smem:[#allocation3 + $0x5e]]
        %v2317 = vstv %s2316
        %v2318 = vmul.f32 %v2317, %v917
        %v2319 = vmul.f32 %v2317, %v919
        %v2320 = vmul.f32 %v2317, %v921
        %v2321 = vadd.f32 %v2313, %v2318
        %v2322 = vadd.f32 %v2314, %v2319
        %v2323 = vadd.f32 %v2315, %v2320
        %v2327 = vrot.slane %v2321, 6
        %v2328 = vrot.slane %v2322, 6
        %v2329 = vsel %vm1215, %v2327, %v2328
        %v2330 = vrot.slane %v2323, 6
        %v2331 = vsel %vm1215, %v2328, %v2330
        %2332 = vrot.lane.b32.xlu0 %v2327, 125
        %v2333 = vpop.permute.xlu0 %2332
        %2334 = vrot.lane.b32.xlu0 %v2329, 125
        %v2335 = vpop.permute.xlu0 %2334
        %2336 = vrot.lane.b32.xlu0 %v2331, 125
        %v2337 = vpop.permute.xlu0 %2336
        %v2341 = vadd.f32 %v2305, %v2333
        %v2342 = vadd.f32 %v2306, %v2333
        %v2343 = vadd.f32 %v2307, %v2335
        %v2344 = vadd.f32 %v2308, %v2335
        %v2345 = vadd.f32 %v2309, %v2337
        %v2346 = vadd.f32 %v2310, %v2337
        %s2347 = sld [smem:[#allocation3 + $0x4]]
        %v2348 = vstv %s2347
        %v2349 = vmul.f32 %v2348, %v907
        %v2350 = vmul.f32 %v2348, %v909
        %v2351 = vmul.f32 %v2348, %v911
        %s2352 = sld [smem:[#allocation3 + $0x35]]
        %v2353 = vstv %s2352
        %v2354 = vmul.f32 %v2353, %v915
        %v2355 = vmul.f32 %v2353, %v917
        %v2356 = vmul.f32 %v2353, %v919
        %v2357 = vadd.f32 %v2349, %v2354
        %v2358 = vadd.f32 %v2350, %v2355
        %v2359 = vadd.f32 %v2351, %v2356
        %2363 = vrot.lane.b32.xlu0 %v2357, 124
        %v2364 = vpop.permute.xlu0 %2363
        %2365 = vrot.lane.b32.xlu0 %v2358, 124
        %v2366 = vpop.permute.xlu0 %2365
        %2367 = vrot.lane.b32.xlu0 %v2359, 124
        %v2368 = vpop.permute.xlu0 %2367
        %v2372 = vadd.f32 %v2341, %v2364
        %v2373 = vadd.f32 %v2342, %v2364
        %v2374 = vadd.f32 %v2343, %v2366
        %v2375 = vadd.f32 %v2344, %v2366
        %v2376 = vadd.f32 %v2345, %v2368
        %v2377 = vadd.f32 %v2346, %v2368
        %s2378 = sld [smem:[#allocation3 + $0xb]]
        %v2379 = vstv %s2378
        %v2380 = vmul.f32 %v2379, %v907
        %v2381 = vmul.f32 %v2379, %v909
        %v2382 = vmul.f32 %v2379, %v911
        %s2383 = sld [smem:[#allocation3 + $0x3c]]
        %v2384 = vstv %s2383
        %v2385 = vmul.f32 %v2384, %v915
        %v2386 = vmul.f32 %v2384, %v917
        %v2387 = vmul.f32 %v2384, %v919
        %v2388 = vadd.f32 %v2380, %v2385
        %v2389 = vadd.f32 %v2381, %v2386
        %v2390 = vadd.f32 %v2382, %v2387
        %v2394 = vrot.slane %v2388, 1
        %v2395 = vrot.slane %v2389, 1
        %v2396 = vsel %vm972, %v2394, %v2395
        %v2397 = vrot.slane %v2390, 1
        %v2398 = vsel %vm972, %v2395, %v2397
        %2399 = vrot.lane.b32.xlu0 %v2396, 124
        %v2400 = vpop.permute.xlu0 %2399
        %2401 = vrot.lane.b32.xlu0 %v2398, 124
        %v2402 = vpop.permute.xlu0 %2401
        %2403 = vrot.lane.b32.xlu0 %v2397, 124
        %v2404 = vpop.permute.xlu0 %2403
        %v2408 = vadd.f32 %v2372, %v2400
        %v2409 = vadd.f32 %v2373, %v2400
        %v2410 = vadd.f32 %v2374, %v2402
        %v2411 = vadd.f32 %v2375, %v2402
        %v2412 = vadd.f32 %v2376, %v2404
        %v2413 = vadd.f32 %v2377, %v2404
        %s2414 = sld [smem:[#allocation3 + $0x12]]
        %v2415 = vstv %s2414
        %v2416 = vmul.f32 %v2415, %v907
        %v2417 = vmul.f32 %v2415, %v909
        %v2418 = vmul.f32 %v2415, %v911
        %s2419 = sld [smem:[#allocation3 + $0x43]]
        %v2420 = vstv %s2419
        %v2421 = vmul.f32 %v2420, %v915
        %v2422 = vmul.f32 %v2420, %v917
        %v2423 = vmul.f32 %v2420, %v919
        %v2424 = vadd.f32 %v2416, %v2421
        %v2425 = vadd.f32 %v2417, %v2422
        %v2426 = vadd.f32 %v2418, %v2423
        %v2430 = vrot.slane %v2424, 2
        %v2431 = vrot.slane %v2425, 2
        %v2432 = vsel %vm1023, %v2430, %v2431
        %v2433 = vrot.slane %v2426, 2
        %v2434 = vsel %vm1023, %v2431, %v2433
        %2435 = vrot.lane.b32.xlu0 %v2432, 124
        %v2436 = vpop.permute.xlu0 %2435
        %2437 = vrot.lane.b32.xlu0 %v2434, 124
        %v2438 = vpop.permute.xlu0 %2437
        %2439 = vrot.lane.b32.xlu0 %v2433, 124
        %v2440 = vpop.permute.xlu0 %2439
        %v2444 = vadd.f32 %v2408, %v2436
        %v2445 = vadd.f32 %v2409, %v2436
        %v2446 = vadd.f32 %v2410, %v2438
        %v2447 = vadd.f32 %v2411, %v2438
        %v2448 = vadd.f32 %v2412, %v2440
        %v2449 = vadd.f32 %v2413, %v2440
        %s2450 = sld [smem:[#allocation3 + $0x19]]
        %v2451 = vstv %s2450
        %v2452 = vmul.f32 %v2451, %v909
        %v2453 = vmul.f32 %v2451, %v911
        %s2454 = sld [smem:[#allocation3 + $0x4a]]
        %v2455 = vstv %s2454
        %v2456 = vmul.f32 %v2455, %v917
        %v2457 = vmul.f32 %v2455, %v919
        %v2458 = vadd.f32 %v2452, %v2456
        %v2459 = vadd.f32 %v2453, %v2457
        %v2462 = vrot.slane %v2458, 3
        %v2463 = vrot.slane %v2459, 3
        %v2464 = vsel %vm1066, %v2462, %v2463
        %2465 = vrot.lane.b32.xlu0 %v2462, 124
        %v2466 = vpop.permute.xlu0 %2465
        %2467 = vrot.lane.b32.xlu0 %v2464, 124
        %v2468 = vpop.permute.xlu0 %2467
        %2469 = vrot.lane.b32.xlu0 %v2463, 124
        %v2470 = vpop.permute.xlu0 %2469
        %v2474 = vadd.f32 %v2444, %v2466
        %v2475 = vadd.f32 %v2445, %v2466
        %v2476 = vadd.f32 %v2446, %v2468
        %v2477 = vadd.f32 %v2447, %v2468
        %v2478 = vadd.f32 %v2448, %v2470
        %v2479 = vadd.f32 %v2449, %v2470
        %s2480 = sld [smem:[#allocation3 + $0x20]]
        %v2481 = vstv %s2480
        %v2482 = vmul.f32 %v2481, %v909
        %v2483 = vmul.f32 %v2481, %v911
        %v2484 = vmul.f32 %v2481, %v913
        %s2485 = sld [smem:[#allocation3 + $0x51]]
        %v2486 = vstv %s2485
        %v2487 = vmul.f32 %v2486, %v917
        %v2488 = vmul.f32 %v2486, %v919
        %v2489 = vmul.f32 %v2486, %v921
        %v2490 = vadd.f32 %v2482, %v2487
        %v2491 = vadd.f32 %v2483, %v2488
        %v2492 = vadd.f32 %v2484, %v2489
        %v2496 = vrot.slane %v2490, 4
        %v2497 = vrot.slane %v2491, 4
        %v2498 = vsel %vm1113, %v2496, %v2497
        %v2499 = vrot.slane %v2492, 4
        %v2500 = vsel %vm1113, %v2497, %v2499
        %2501 = vrot.lane.b32.xlu0 %v2496, 124
        %v2502 = vpop.permute.xlu0 %2501
        %2503 = vrot.lane.b32.xlu0 %v2498, 124
        %v2504 = vpop.permute.xlu0 %2503
        %2505 = vrot.lane.b32.xlu0 %v2500, 124
        %v2506 = vpop.permute.xlu0 %2505
        %v2510 = vadd.f32 %v2474, %v2502
        %v2511 = vadd.f32 %v2475, %v2502
        %v2512 = vadd.f32 %v2476, %v2504
        %v2513 = vadd.f32 %v2477, %v2504
        %v2514 = vadd.f32 %v2478, %v2506
        %v2515 = vadd.f32 %v2479, %v2506
        %s2516 = sld [smem:[#allocation3 + $0x27]]
        %v2517 = vstv %s2516
        %v2518 = vmul.f32 %v2517, %v909
        %v2519 = vmul.f32 %v2517, %v911
        %v2520 = vmul.f32 %v2517, %v913
        %s2521 = sld [smem:[#allocation3 + $0x58]]
        %v2522 = vstv %s2521
        %v2523 = vmul.f32 %v2522, %v917
        %v2524 = vmul.f32 %v2522, %v919
        %v2525 = vmul.f32 %v2522, %v921
        %v2526 = vadd.f32 %v2518, %v2523
        %v2527 = vadd.f32 %v2519, %v2524
        %v2528 = vadd.f32 %v2520, %v2525
        %v2532 = vrot.slane %v2526, 5
        %v2533 = vrot.slane %v2527, 5
        %v2534 = vsel %vm1164, %v2532, %v2533
        %v2535 = vrot.slane %v2528, 5
        %v2536 = vsel %vm1164, %v2533, %v2535
        %2537 = vrot.lane.b32.xlu0 %v2532, 124
        %v2538 = vpop.permute.xlu0 %2537
        %2539 = vrot.lane.b32.xlu0 %v2534, 124
        %v2540 = vpop.permute.xlu0 %2539
        %2541 = vrot.lane.b32.xlu0 %v2536, 124
        %v2542 = vpop.permute.xlu0 %2541
        %v2546 = vadd.f32 %v2510, %v2538
        %v2547 = vadd.f32 %v2511, %v2538
        %v2548 = vadd.f32 %v2512, %v2540
        %v2549 = vadd.f32 %v2513, %v2540
        %v2550 = vadd.f32 %v2514, %v2542
        %v2551 = vadd.f32 %v2515, %v2542
        %s2552 = sld [smem:[#allocation3 + $0x2e]]
        %v2553 = vstv %s2552
        %v2554 = vmul.f32 %v2553, %v909
        %v2555 = vmul.f32 %v2553, %v911
        %v2556 = vmul.f32 %v2553, %v913
        %s2557 = sld [smem:[#allocation3 + $0x5f]]
        %v2558 = vstv %s2557
        %v2559 = vmul.f32 %v2558, %v917
        %v2560 = vmul.f32 %v2558, %v919
        %v2561 = vmul.f32 %v2558, %v921
        %v2562 = vadd.f32 %v2554, %v2559
        %v2563 = vadd.f32 %v2555, %v2560
        %v2564 = vadd.f32 %v2556, %v2561
        %v2568 = vrot.slane %v2562, 6
        %v2569 = vrot.slane %v2563, 6
        %v2570 = vsel %vm1215, %v2568, %v2569
        %v2571 = vrot.slane %v2564, 6
        %v2572 = vsel %vm1215, %v2569, %v2571
        %2573 = vrot.lane.b32.xlu0 %v2568, 124
        %v2574 = vpop.permute.xlu0 %2573
        %2575 = vrot.lane.b32.xlu0 %v2570, 124
        %v2576 = vpop.permute.xlu0 %2575
        %2577 = vrot.lane.b32.xlu0 %v2572, 124
        %v2578 = vpop.permute.xlu0 %2577
        %v2582 = vadd.f32 %v2546, %v2574
        %v2583 = vadd.f32 %v2547, %v2574
        %v2584 = vadd.f32 %v2548, %v2576
        %v2585 = vadd.f32 %v2549, %v2576
        %v2586 = vadd.f32 %v2550, %v2578
        %v2587 = vadd.f32 %v2551, %v2578
        %s2588 = sld [smem:[#allocation3 + $0x5]]
        %v2589 = vstv %s2588
        %v2590 = vmul.f32 %v2589, %v907
        %v2591 = vmul.f32 %v2589, %v909
        %v2592 = vmul.f32 %v2589, %v911
        %s2593 = sld [smem:[#allocation3 + $0x36]]
        %v2594 = vstv %s2593
        %v2595 = vmul.f32 %v2594, %v915
        %v2596 = vmul.f32 %v2594, %v917
        %v2597 = vmul.f32 %v2594, %v919
        %v2598 = vadd.f32 %v2590, %v2595
        %v2599 = vadd.f32 %v2591, %v2596
        %v2600 = vadd.f32 %v2592, %v2597
        %2604 = vrot.lane.b32.xlu0 %v2598, 123
        %v2605 = vpop.permute.xlu0 %2604
        %2606 = vrot.lane.b32.xlu0 %v2599, 123
        %v2607 = vpop.permute.xlu0 %2606
        %2608 = vrot.lane.b32.xlu0 %v2600, 123
        %v2609 = vpop.permute.xlu0 %2608
        %v2613 = vadd.f32 %v2582, %v2605
        %v2614 = vadd.f32 %v2583, %v2605
        %v2615 = vadd.f32 %v2584, %v2607
        %v2616 = vadd.f32 %v2585, %v2607
        %v2617 = vadd.f32 %v2586, %v2609
        %v2618 = vadd.f32 %v2587, %v2609
        %s2619 = sld [smem:[#allocation3 + $0xc]]
        %v2620 = vstv %s2619
        %v2621 = vmul.f32 %v2620, %v907
        %v2622 = vmul.f32 %v2620, %v909
        %v2623 = vmul.f32 %v2620, %v911
        %s2624 = sld [smem:[#allocation3 + $0x3d]]
        %v2625 = vstv %s2624
        %v2626 = vmul.f32 %v2625, %v915
        %v2627 = vmul.f32 %v2625, %v917
        %v2628 = vmul.f32 %v2625, %v919
        %v2629 = vadd.f32 %v2621, %v2626
        %v2630 = vadd.f32 %v2622, %v2627
        %v2631 = vadd.f32 %v2623, %v2628
        %v2635 = vrot.slane %v2629, 1
        %v2636 = vrot.slane %v2630, 1
        %v2637 = vsel %vm972, %v2635, %v2636
        %v2638 = vrot.slane %v2631, 1
        %v2639 = vsel %vm972, %v2636, %v2638
        %2640 = vrot.lane.b32.xlu0 %v2637, 123
        %v2641 = vpop.permute.xlu0 %2640
        %2642 = vrot.lane.b32.xlu0 %v2639, 123
        %v2643 = vpop.permute.xlu0 %2642
        %2644 = vrot.lane.b32.xlu0 %v2638, 123
        %v2645 = vpop.permute.xlu0 %2644
        %v2649 = vadd.f32 %v2613, %v2641
        %v2650 = vadd.f32 %v2614, %v2641
        %v2651 = vadd.f32 %v2615, %v2643
        %v2652 = vadd.f32 %v2616, %v2643
        %v2653 = vadd.f32 %v2617, %v2645
        %v2654 = vadd.f32 %v2618, %v2645
        %s2655 = sld [smem:[#allocation3 + $0x13]]
        %v2656 = vstv %s2655
        %v2657 = vmul.f32 %v2656, %v907
        %v2658 = vmul.f32 %v2656, %v909
        %v2659 = vmul.f32 %v2656, %v911
        %s2660 = sld [smem:[#allocation3 + $0x44]]
        %v2661 = vstv %s2660
        %v2662 = vmul.f32 %v2661, %v915
        %v2663 = vmul.f32 %v2661, %v917
        %v2664 = vmul.f32 %v2661, %v919
        %v2665 = vadd.f32 %v2657, %v2662
        %v2666 = vadd.f32 %v2658, %v2663
        %v2667 = vadd.f32 %v2659, %v2664
        %v2671 = vrot.slane %v2665, 2
        %v2672 = vrot.slane %v2666, 2
        %v2673 = vsel %vm1023, %v2671, %v2672
        %v2674 = vrot.slane %v2667, 2
        %v2675 = vsel %vm1023, %v2672, %v2674
        %2676 = vrot.lane.b32.xlu0 %v2673, 123
        %v2677 = vpop.permute.xlu0 %2676
        %2678 = vrot.lane.b32.xlu0 %v2675, 123
        %v2679 = vpop.permute.xlu0 %2678
        %2680 = vrot.lane.b32.xlu0 %v2674, 123
        %v2681 = vpop.permute.xlu0 %2680
        %v2685 = vadd.f32 %v2649, %v2677
        %v2686 = vadd.f32 %v2650, %v2677
        %v2687 = vadd.f32 %v2651, %v2679
        %v2688 = vadd.f32 %v2652, %v2679
        %v2689 = vadd.f32 %v2653, %v2681
        %v2690 = vadd.f32 %v2654, %v2681
        %s2691 = sld [smem:[#allocation3 + $0x1a]]
        %v2692 = vstv %s2691
        %v2693 = vmul.f32 %v2692, %v909
        %v2694 = vmul.f32 %v2692, %v911
        %s2695 = sld [smem:[#allocation3 + $0x4b]]
        %v2696 = vstv %s2695
        %v2697 = vmul.f32 %v2696, %v917
        %v2698 = vmul.f32 %v2696, %v919
        %v2699 = vadd.f32 %v2693, %v2697
        %v2700 = vadd.f32 %v2694, %v2698
        %v2703 = vrot.slane %v2699, 3
        %v2704 = vrot.slane %v2700, 3
        %v2705 = vsel %vm1066, %v2703, %v2704
        %2706 = vrot.lane.b32.xlu0 %v2703, 123
        %v2707 = vpop.permute.xlu0 %2706
        %2708 = vrot.lane.b32.xlu0 %v2705, 123
        %v2709 = vpop.permute.xlu0 %2708
        %2710 = vrot.lane.b32.xlu0 %v2704, 123
        %v2711 = vpop.permute.xlu0 %2710
        %v2715 = vadd.f32 %v2685, %v2707
        %v2716 = vadd.f32 %v2686, %v2707
        %v2717 = vadd.f32 %v2687, %v2709
        %v2718 = vadd.f32 %v2688, %v2709
        %v2719 = vadd.f32 %v2689, %v2711
        %v2720 = vadd.f32 %v2690, %v2711
        %s2721 = sld [smem:[#allocation3 + $0x21]]
        %v2722 = vstv %s2721
        %v2723 = vmul.f32 %v2722, %v909
        %v2724 = vmul.f32 %v2722, %v911
        %v2725 = vmul.f32 %v2722, %v913
        %s2726 = sld [smem:[#allocation3 + $0x52]]
        %v2727 = vstv %s2726
        %v2728 = vmul.f32 %v2727, %v917
        %v2729 = vmul.f32 %v2727, %v919
        %v2730 = vmul.f32 %v2727, %v921
        %v2731 = vadd.f32 %v2723, %v2728
        %v2732 = vadd.f32 %v2724, %v2729
        %v2733 = vadd.f32 %v2725, %v2730
        %v2737 = vrot.slane %v2731, 4
        %v2738 = vrot.slane %v2732, 4
        %v2739 = vsel %vm1113, %v2737, %v2738
        %v2740 = vrot.slane %v2733, 4
        %v2741 = vsel %vm1113, %v2738, %v2740
        %2742 = vrot.lane.b32.xlu0 %v2737, 123
        %v2743 = vpop.permute.xlu0 %2742
        %2744 = vrot.lane.b32.xlu0 %v2739, 123
        %v2745 = vpop.permute.xlu0 %2744
        %2746 = vrot.lane.b32.xlu0 %v2741, 123
        %v2747 = vpop.permute.xlu0 %2746
        %v2751 = vadd.f32 %v2715, %v2743
        %v2752 = vadd.f32 %v2716, %v2743
        %v2753 = vadd.f32 %v2717, %v2745
        %v2754 = vadd.f32 %v2718, %v2745
        %v2755 = vadd.f32 %v2719, %v2747
        %v2756 = vadd.f32 %v2720, %v2747
        %s2757 = sld [smem:[#allocation3 + $0x28]]
        %v2758 = vstv %s2757
        %v2759 = vmul.f32 %v2758, %v909
        %v2760 = vmul.f32 %v2758, %v911
        %v2761 = vmul.f32 %v2758, %v913
        %s2762 = sld [smem:[#allocation3 + $0x59]]
        %v2763 = vstv %s2762
        %v2764 = vmul.f32 %v2763, %v917
        %v2765 = vmul.f32 %v2763, %v919
        %v2766 = vmul.f32 %v2763, %v921
        %v2767 = vadd.f32 %v2759, %v2764
        %v2768 = vadd.f32 %v2760, %v2765
        %v2769 = vadd.f32 %v2761, %v2766
        %v2773 = vrot.slane %v2767, 5
        %v2774 = vrot.slane %v2768, 5
        %v2775 = vsel %vm1164, %v2773, %v2774
        %v2776 = vrot.slane %v2769, 5
        %v2777 = vsel %vm1164, %v2774, %v2776
        %2778 = vrot.lane.b32.xlu0 %v2773, 123
        %v2779 = vpop.permute.xlu0 %2778
        %2780 = vrot.lane.b32.xlu0 %v2775, 123
        %v2781 = vpop.permute.xlu0 %2780
        %2782 = vrot.lane.b32.xlu0 %v2777, 123
        %v2783 = vpop.permute.xlu0 %2782
        %v2787 = vadd.f32 %v2751, %v2779
        %v2788 = vadd.f32 %v2752, %v2779
        %v2789 = vadd.f32 %v2753, %v2781
        %v2790 = vadd.f32 %v2754, %v2781
        %v2791 = vadd.f32 %v2755, %v2783
        %v2792 = vadd.f32 %v2756, %v2783
        %s2793 = sld [smem:[#allocation3 + $0x2f]]
        %v2794 = vstv %s2793
        %v2795 = vmul.f32 %v2794, %v909
        %v2796 = vmul.f32 %v2794, %v911
        %v2797 = vmul.f32 %v2794, %v913
        %s2798 = sld [smem:[#allocation3 + $0x60]]
        %v2799 = vstv %s2798
        %v2800 = vmul.f32 %v2799, %v917
        %v2801 = vmul.f32 %v2799, %v919
        %v2802 = vmul.f32 %v2799, %v921
        %v2803 = vadd.f32 %v2795, %v2800
        %v2804 = vadd.f32 %v2796, %v2801
        %v2805 = vadd.f32 %v2797, %v2802
        %v2809 = vrot.slane %v2803, 6
        %v2810 = vrot.slane %v2804, 6
        %v2811 = vsel %vm1215, %v2809, %v2810
        %v2812 = vrot.slane %v2805, 6
        %v2813 = vsel %vm1215, %v2810, %v2812
        %2814 = vrot.lane.b32.xlu0 %v2809, 123
        %v2815 = vpop.permute.xlu0 %2814
        %2816 = vrot.lane.b32.xlu0 %v2811, 123
        %v2817 = vpop.permute.xlu0 %2816
        %2818 = vrot.lane.b32.xlu0 %v2813, 123
        %v2819 = vpop.permute.xlu0 %2818
        %v2823 = vadd.f32 %v2787, %v2815
        %v2824 = vadd.f32 %v2788, %v2815
        %v2825 = vadd.f32 %v2789, %v2817
        %v2826 = vadd.f32 %v2790, %v2817
        %v2827 = vadd.f32 %v2791, %v2819
        %v2828 = vadd.f32 %v2792, %v2819
        %s2829 = sld [smem:[#allocation3 + $0x6]]
        %v2830 = vstv %s2829
        %v2831 = vmul.f32 %v2830, %v907
        %v2832 = vmul.f32 %v2830, %v909
        %v2833 = vmul.f32 %v2830, %v911
        %s2834 = sld [smem:[#allocation3 + $0x37]]
        %v2835 = vstv %s2834
        %v2836 = vmul.f32 %v2835, %v915
        %v2837 = vmul.f32 %v2835, %v917
        %v2838 = vmul.f32 %v2835, %v919
        %v2839 = vadd.f32 %v2831, %v2836
        %v2840 = vadd.f32 %v2832, %v2837
        %v2841 = vadd.f32 %v2833, %v2838
        %2845 = vrot.lane.b32.xlu0 %v2839, 122
        %v2846 = vpop.permute.xlu0 %2845
        %2847 = vrot.lane.b32.xlu0 %v2840, 122
        %v2848 = vpop.permute.xlu0 %2847
        %2849 = vrot.lane.b32.xlu0 %v2841, 122
        %v2850 = vpop.permute.xlu0 %2849
        %v2854 = vadd.f32 %v2823, %v2846
        %v2855 = vadd.f32 %v2824, %v2846
        %v2856 = vadd.f32 %v2825, %v2848
        %v2857 = vadd.f32 %v2826, %v2848
        %v2858 = vadd.f32 %v2827, %v2850
        %v2859 = vadd.f32 %v2828, %v2850
        %s2860 = sld [smem:[#allocation3 + $0xd]]
        %v2861 = vstv %s2860
        %v2862 = vmul.f32 %v2861, %v907
        %v2863 = vmul.f32 %v2861, %v909
        %v2864 = vmul.f32 %v2861, %v911
        %s2865 = sld [smem:[#allocation3 + $0x3e]]
        %v2866 = vstv %s2865
        %v2867 = vmul.f32 %v2866, %v915
        %v2868 = vmul.f32 %v2866, %v917
        %v2869 = vmul.f32 %v2866, %v919
        %v2870 = vadd.f32 %v2862, %v2867
        %v2871 = vadd.f32 %v2863, %v2868
        %v2872 = vadd.f32 %v2864, %v2869
        %v2876 = vrot.slane %v2870, 1
        %v2877 = vrot.slane %v2871, 1
        %v2878 = vsel %vm972, %v2876, %v2877
        %v2879 = vrot.slane %v2872, 1
        %v2880 = vsel %vm972, %v2877, %v2879
        %2881 = vrot.lane.b32.xlu0 %v2878, 122
        %v2882 = vpop.permute.xlu0 %2881
        %2883 = vrot.lane.b32.xlu0 %v2880, 122
        %v2884 = vpop.permute.xlu0 %2883
        %2885 = vrot.lane.b32.xlu0 %v2879, 122
        %v2886 = vpop.permute.xlu0 %2885
        %v2890 = vadd.f32 %v2854, %v2882
        %v2891 = vadd.f32 %v2855, %v2882
        %v2892 = vadd.f32 %v2856, %v2884
        %v2893 = vadd.f32 %v2857, %v2884
        %v2894 = vadd.f32 %v2858, %v2886
        %v2895 = vadd.f32 %v2859, %v2886
        %s2896 = sld [smem:[#allocation3 + $0x14]]
        %v2897 = vstv %s2896
        %v2898 = vmul.f32 %v2897, %v907
        %v2899 = vmul.f32 %v2897, %v909
        %v2900 = vmul.f32 %v2897, %v911
        %s2901 = sld [smem:[#allocation3 + $0x45]]
        %v2902 = vstv %s2901
        %v2903 = vmul.f32 %v2902, %v915
        %v2904 = vmul.f32 %v2902, %v917
        %v2905 = vmul.f32 %v2902, %v919
        %v2906 = vadd.f32 %v2898, %v2903
        %v2907 = vadd.f32 %v2899, %v2904
        %v2908 = vadd.f32 %v2900, %v2905
        %v2912 = vrot.slane %v2906, 2
        %v2913 = vrot.slane %v2907, 2
        %v2914 = vsel %vm1023, %v2912, %v2913
        %v2915 = vrot.slane %v2908, 2
        %v2916 = vsel %vm1023, %v2913, %v2915
        %2917 = vrot.lane.b32.xlu0 %v2914, 122
        %v2918 = vpop.permute.xlu0 %2917
        %2919 = vrot.lane.b32.xlu0 %v2916, 122
        %v2920 = vpop.permute.xlu0 %2919
        %2921 = vrot.lane.b32.xlu0 %v2915, 122
        %v2922 = vpop.permute.xlu0 %2921
        %v2926 = vadd.f32 %v2890, %v2918
        %v2927 = vadd.f32 %v2891, %v2918
        %v2928 = vadd.f32 %v2892, %v2920
        %v2929 = vadd.f32 %v2893, %v2920
        %v2930 = vadd.f32 %v2894, %v2922
        %v2931 = vadd.f32 %v2895, %v2922
        %s2932 = sld [smem:[#allocation3 + $0x1b]]
        %v2933 = vstv %s2932
        %v2934 = vmul.f32 %v2933, %v909
        %v2935 = vmul.f32 %v2933, %v911
        %s2936 = sld [smem:[#allocation3 + $0x4c]]
        %v2937 = vstv %s2936
        %v2938 = vmul.f32 %v2937, %v917
        %v2939 = vmul.f32 %v2937, %v919
        %v2940 = vadd.f32 %v2934, %v2938
        %v2941 = vadd.f32 %v2935, %v2939
        %v2944 = vrot.slane %v2940, 3
        %v2945 = vrot.slane %v2941, 3
        %v2946 = vsel %vm1066, %v2944, %v2945
        %2947 = vrot.lane.b32.xlu0 %v2944, 122
        %v2948 = vpop.permute.xlu0 %2947
        %2949 = vrot.lane.b32.xlu0 %v2946, 122
        %v2950 = vpop.permute.xlu0 %2949
        %2951 = vrot.lane.b32.xlu0 %v2945, 122
        %v2952 = vpop.permute.xlu0 %2951
        %v2956 = vadd.f32 %v2926, %v2948
        %v2957 = vadd.f32 %v2927, %v2948
        %v2958 = vadd.f32 %v2928, %v2950
        %v2959 = vadd.f32 %v2929, %v2950
        %v2960 = vadd.f32 %v2930, %v2952
        %v2961 = vadd.f32 %v2931, %v2952
        %s2962 = sld [smem:[#allocation3 + $0x22]]
        %v2963 = vstv %s2962
        %v2964 = vmul.f32 %v2963, %v909
        %v2965 = vmul.f32 %v2963, %v911
        %v2966 = vmul.f32 %v2963, %v913
        %s2967 = sld [smem:[#allocation3 + $0x53]]
        %v2968 = vstv %s2967
        %v2969 = vmul.f32 %v2968, %v917
        %v2970 = vmul.f32 %v2968, %v919
        %v2971 = vmul.f32 %v2968, %v921
        %v2972 = vadd.f32 %v2964, %v2969
        %v2973 = vadd.f32 %v2965, %v2970
        %v2974 = vadd.f32 %v2966, %v2971
        %v2978 = vrot.slane %v2972, 4
        %v2979 = vrot.slane %v2973, 4
        %v2980 = vsel %vm1113, %v2978, %v2979
        %v2981 = vrot.slane %v2974, 4
        %v2982 = vsel %vm1113, %v2979, %v2981
        %2983 = vrot.lane.b32.xlu0 %v2978, 122
        %v2984 = vpop.permute.xlu0 %2983
        %2985 = vrot.lane.b32.xlu0 %v2980, 122
        %v2986 = vpop.permute.xlu0 %2985
        %2987 = vrot.lane.b32.xlu0 %v2982, 122
        %v2988 = vpop.permute.xlu0 %2987
        %v2992 = vadd.f32 %v2956, %v2984
        %v2993 = vadd.f32 %v2957, %v2984
        %v2994 = vadd.f32 %v2958, %v2986
        %v2995 = vadd.f32 %v2959, %v2986
        %v2996 = vadd.f32 %v2960, %v2988
        %v2997 = vadd.f32 %v2961, %v2988
        %s2998 = sld [smem:[#allocation3 + $0x29]]
        %v2999 = vstv %s2998
        %v3000 = vmul.f32 %v2999, %v909
        %v3001 = vmul.f32 %v2999, %v911
        %v3002 = vmul.f32 %v2999, %v913
        %s3003 = sld [smem:[#allocation3 + $0x5a]]
        %v3004 = vstv %s3003
        %v3005 = vmul.f32 %v3004, %v917
        %v3006 = vmul.f32 %v3004, %v919
        %v3007 = vmul.f32 %v3004, %v921
        %v3008 = vadd.f32 %v3000, %v3005
        %v3009 = vadd.f32 %v3001, %v3006
        %v3010 = vadd.f32 %v3002, %v3007
        %v3014 = vrot.slane %v3008, 5
        %v3015 = vrot.slane %v3009, 5
        %v3016 = vsel %vm1164, %v3014, %v3015
        %v3017 = vrot.slane %v3010, 5
        %v3018 = vsel %vm1164, %v3015, %v3017
        %3019 = vrot.lane.b32.xlu0 %v3014, 122
        %v3020 = vpop.permute.xlu0 %3019
        %3021 = vrot.lane.b32.xlu0 %v3016, 122
        %v3022 = vpop.permute.xlu0 %3021
        %3023 = vrot.lane.b32.xlu0 %v3018, 122
        %v3024 = vpop.permute.xlu0 %3023
        %v3028 = vadd.f32 %v2992, %v3020
        %v3029 = vadd.f32 %v2993, %v3020
        %v3030 = vadd.f32 %v2994, %v3022
        %v3031 = vadd.f32 %v2995, %v3022
        %v3032 = vadd.f32 %v2996, %v3024
        %v3033 = vadd.f32 %v2997, %v3024
        %s3034 = sld [smem:[#allocation3 + $0x30]]
        %v3035 = vstv %s3034
        %v3036 = vmul.f32 %v3035, %v909
        %v3037 = vmul.f32 %v3035, %v911
        %v3038 = vmul.f32 %v3035, %v913
        %s3039 = sld [smem:[#allocation3 + $0x61]]
        %v3040 = vstv %s3039
        %v3041 = vmul.f32 %v3040, %v917
        %v3042 = vmul.f32 %v3040, %v919
        %v3043 = vmul.f32 %v3040, %v921
        %v3044 = vadd.f32 %v3036, %v3041
        %v3045 = vadd.f32 %v3037, %v3042
        %v3046 = vadd.f32 %v3038, %v3043
        %v3050 = vrot.slane %v3044, 6
        %v3051 = vrot.slane %v3045, 6
        %v3052 = vsel %vm1215, %v3050, %v3051
        %v3053 = vrot.slane %v3046, 6
        %v3054 = vsel %vm1215, %v3051, %v3053
        %3055 = vrot.lane.b32.xlu0 %v3050, 122
        %v3056 = vpop.permute.xlu0 %3055
        %3057 = vrot.lane.b32.xlu0 %v3052, 122
        %v3058 = vpop.permute.xlu0 %3057
        %3059 = vrot.lane.b32.xlu0 %v3054, 122
        %v3060 = vpop.permute.xlu0 %3059
        %v3064 = vadd.f32 %v3028, %v3056
        %v3065 = vadd.f32 %v3029, %v3056
        %v3066 = vadd.f32 %v3030, %v3058
        %v3067 = vadd.f32 %v3031, %v3058
        %v3068 = vadd.f32 %v3032, %v3060
        %v3069 = vadd.f32 %v3033, %v3060
        %v3070 = vxor.u32 %v3064, 2147483648
        %v3071 = vxor.u32 %v3065, 2147483648
        %v3072 = vxor.u32 %v3066, 2147483648
        %v3073 = vxor.u32 %v3067, 2147483648
        %v3074 = vxor.u32 %v3068, 2147483648
        %v3075 = vxor.u32 %v3069, 2147483648
        %v3076 = vmul.f32 %v3070, 1.442695
        %v3077 = vpow.pop %v3076
        %v3078 = vmul.f32 %v3071, 1.442695
        %v3079 = vpow.pop %v3078
        %v3080 = vmul.f32 %v3072, 1.442695
        %v3081 = vpow.pop %v3080
        %v3082 = vmul.f32 %v3073, 1.442695
        %v3083 = vpow.pop %v3082
        %v3084 = vmul.f32 %v3074, 1.442695
        %v3085 = vpow.pop %v3084
        %v3086 = vmul.f32 %v3075, 1.442695
        %v3087 = vpow.pop %v3086
        %v3088 = vadd.f32 %v3077, 1.0
        %v3089 = vadd.f32 %v3079, 1.0
        %v3090 = vadd.f32 %v3081, 1.0
        %v3091 = vadd.f32 %v3083, 1.0
        %v3092 = vadd.f32 %v3085, 1.0
        %v3093 = vadd.f32 %v3087, 1.0
        %v3094 = vrcp.pop %v3088
        %v3095 = vmul.f32 %v3088, %v3094
        %v3096 = vsub.f32 1.0, %v3095
        %v3097 = vmul.f32 %v3094, %v3096
        %v3098 = vadd.f32 %v3094, %v3097
        %vm3099 = vweird.f32 %v3088
        %vm3100 = vweird.f32 %v3094
        %vm3101 = vmor %vm3099, %vm3100
        %v3102 = vsel %vm3101, %v3094, %v3098
        %v3103 = vand.u32 2147483647, %v3088
        %vm3104 = vcmp.eq.f32.partialorder %v3103, 8.507059e+37
        %v3105 = vand.u32 %v3088, 2147483648
        %v3106 = vor.u32 1.1754944e-38, %v3105
        %v3107 = vsel %vm3104, %v3106, %v3102
        %v3108 = vmul.f32 1.0, %v3107
        %v3109 = vrcp.pop %v3089
        %v3110 = vmul.f32 %v3089, %v3109
        %v3111 = vsub.f32 1.0, %v3110
        %v3112 = vmul.f32 %v3109, %v3111
        %v3113 = vadd.f32 %v3109, %v3112
        %vm3114 = vweird.f32 %v3089
        %vm3115 = vweird.f32 %v3109
        %vm3116 = vmor %vm3114, %vm3115
        %v3117 = vsel %vm3116, %v3109, %v3113
        %v3118 = vand.u32 2147483647, %v3089
        %vm3119 = vcmp.eq.f32.partialorder %v3118, 8.507059e+37
        %v3120 = vand.u32 %v3089, 2147483648
        %v3121 = vor.u32 1.1754944e-38, %v3120
        %v3122 = vsel %vm3119, %v3121, %v3117
        %v3123 = vmul.f32 1.0, %v3122
        %v3124 = vrcp.pop %v3090
        %v3125 = vmul.f32 %v3090, %v3124
        %v3126 = vsub.f32 1.0, %v3125
        %v3127 = vmul.f32 %v3124, %v3126
        %v3128 = vadd.f32 %v3124, %v3127
        %vm3129 = vweird.f32 %v3090
        %vm3130 = vweird.f32 %v3124
        %vm3131 = vmor %vm3129, %vm3130
        %v3132 = vsel %vm3131, %v3124, %v3128
        %v3133 = vand.u32 2147483647, %v3090
        %vm3134 = vcmp.eq.f32.partialorder %v3133, 8.507059e+37
        %v3135 = vand.u32 %v3090, 2147483648
        %v3136 = vor.u32 1.1754944e-38, %v3135
        %v3137 = vsel %vm3134, %v3136, %v3132
        %v3138 = vmul.f32 1.0, %v3137
        %v3139 = vrcp.pop %v3091
        %v3140 = vmul.f32 %v3091, %v3139
        %v3141 = vsub.f32 1.0, %v3140
        %v3142 = vmul.f32 %v3139, %v3141
        %v3143 = vadd.f32 %v3139, %v3142
        %vm3144 = vweird.f32 %v3091
        %vm3145 = vweird.f32 %v3139
        %vm3146 = vmor %vm3144, %vm3145
        %v3147 = vsel %vm3146, %v3139, %v3143
        %v3148 = vand.u32 2147483647, %v3091
        %vm3149 = vcmp.eq.f32.partialorder %v3148, 8.507059e+37
        %v3150 = vand.u32 %v3091, 2147483648
        %v3151 = vor.u32 1.1754944e-38, %v3150
        %v3152 = vsel %vm3149, %v3151, %v3147
        %v3153 = vmul.f32 1.0, %v3152
        %v3154 = vrcp.pop %v3092
        %v3155 = vmul.f32 %v3092, %v3154
        %v3156 = vsub.f32 1.0, %v3155
        %v3157 = vmul.f32 %v3154, %v3156
        %v3158 = vadd.f32 %v3154, %v3157
        %vm3159 = vweird.f32 %v3092
        %vm3160 = vweird.f32 %v3154
        %vm3161 = vmor %vm3159, %vm3160
        %v3162 = vsel %vm3161, %v3154, %v3158
        %v3163 = vand.u32 2147483647, %v3092
        %vm3164 = vcmp.eq.f32.partialorder %v3163, 8.507059e+37
        %v3165 = vand.u32 %v3092, 2147483648
        %v3166 = vor.u32 1.1754944e-38, %v3165
        %v3167 = vsel %vm3164, %v3166, %v3162
        %v3168 = vmul.f32 1.0, %v3167
        %v3169 = vrcp.pop %v3093
        %v3170 = vmul.f32 %v3093, %v3169
        %v3171 = vsub.f32 1.0, %v3170
        %v3172 = vmul.f32 %v3169, %v3171
        %v3173 = vadd.f32 %v3169, %v3172
        %vm3174 = vweird.f32 %v3093
        %vm3175 = vweird.f32 %v3169
        %vm3176 = vmor %vm3174, %vm3175
        %v3177 = vsel %vm3176, %v3169, %v3173
        %v3178 = vand.u32 2147483647, %v3093
        %vm3179 = vcmp.eq.f32.partialorder %v3178, 8.507059e+37
        %v3180 = vand.u32 %v3093, 2147483648
        %v3181 = vor.u32 1.1754944e-38, %v3180
        %v3182 = vsel %vm3179, %v3181, %v3177
        %v3183 = vmul.f32 1.0, %v3182
        %v3184 = vld [vmem:[%s491] sm:$0xff]
        %v3185 = vld [vmem:[%s491 + $0x8] sm:$0xff]
        %v3186 = vld [vmem:[%s491 + $0x10] sm:$0xff]
        %v3187 = vld [vmem:[%s491 + $0x18] sm:$0xff]
        %v3188 = vld [vmem:[%s491 + $0x20] sm:$0xff]
        %v3189 = vld [vmem:[%s491 + $0x28] sm:$0xff]
        %v3190 = vld [vmem:[%s491 + $0x30] sm:$0xff]
        %v3191 = vld [vmem:[%s491 + $0x38] sm:$0xff]
        %v3192 = vld [vmem:[%s491 + $0x40] sm:$0xff]
        %v3193 = vld [vmem:[%s491 + $0x48] sm:$0xff]
        %v3194 = vld [vmem:[%s491 + $0x50] sm:$0xff]
        %v3195 = vld [vmem:[%s491 + $0x58] sm:$0xff]
        %v3196 = vld [vmem:[%s491 + $0x60] sm:$0xff]
        %v3197 = vld [vmem:[%s491 + $0x68] sm:$0xff]
        %v3198 = vld [vmem:[%s491 + $0x70] sm:$0xff]
        %v3199 = vld [vmem:[%s491 + $0x78] sm:$0xff]
        %3200 = vst.msk [vmem:[%s598] sm:$0xff] %vm634, %v3184
        %3201 = vst.msk [vmem:[%s598 + $0x8] sm:$0xff] %vm634, %v3185
        %3202 = vst.msk [vmem:[%s598 + $0x10] sm:$0xff] %vm634, %v3186
        %3203 = vst.msk [vmem:[%s598 + $0x18] sm:$0xff] %vm634, %v3187
        %3204 = vst.msk [vmem:[%s598 + $0x20] sm:$0xff] %vm634, %v3188
        %3205 = vst.msk [vmem:[%s598 + $0x28] sm:$0xff] %vm634, %v3189
        %3206 = vst.msk [vmem:[%s598 + $0x30] sm:$0xff] %vm634, %v3190
        %3207 = vst.msk [vmem:[%s598 + $0x38] sm:$0xff] %vm634, %v3191
        %3208 = vst.msk [vmem:[%s598 + $0x40] sm:$0xff] %vm634, %v3192
        %3209 = vst.msk [vmem:[%s598 + $0x48] sm:$0xff] %vm634, %v3193
        %3210 = vst.msk [vmem:[%s598 + $0x50] sm:$0xff] %vm634, %v3194
        %3211 = vst.msk [vmem:[%s598 + $0x58] sm:$0xff] %vm634, %v3195
        %3212 = vst.msk [vmem:[%s598 + $0x60] sm:$0xff] %vm634, %v3196
        %3213 = vst.msk [vmem:[%s598 + $0x68] sm:$0xff] %vm634, %v3197
        %3214 = vst.msk [vmem:[%s598 + $0x70] sm:$0xff] %vm634, %v3198
        %3215 = vst.msk [vmem:[%s598 + $0x78] sm:$0xff] %vm634, %v3199
        %v3216 = vld [vmem:[%s501] sm:$0xff]
        %v3217 = vld [vmem:[%s501 + $0x8] sm:$0xff]
        %v3218 = vld [vmem:[%s501 + $0x10] sm:$0xff]
        %v3219 = vld [vmem:[%s501 + $0x18] sm:$0xff]
        %v3220 = vld [vmem:[%s501 + $0x20] sm:$0xff]
        %v3221 = vld [vmem:[%s501 + $0x28] sm:$0xff]
        %v3222 = vld [vmem:[%s501 + $0x30] sm:$0xff]
        %v3223 = vld [vmem:[%s501 + $0x38] sm:$0xff]
        %v3230 = vrot.slane %v3108, 5
        %v3231 = vrot.slane %v3138, 5
        %v3232 = vsel %vm1164, %v3230, %v3231
        %v3233 = vrot.slane %v3123, 5
        %v3234 = vrot.slane %v3153, 5
        %v3235 = vsel %vm1164, %v3233, %v3234
        %v3236 = vrot.slane %v3168, 5
        %v3237 = vsel %vm1164, %v3231, %v3236
        %v3238 = vrot.slane %v3183, 5
        %v3239 = vsel %vm1164, %v3234, %v3238
        %3240 = vrot.lane.b32.xlu0 %v3232, 3
        %v3241 = vpop.permute.xlu0 %3240
        %3242 = vrot.lane.b32.xlu0 %v3235, 3
        %v3243 = vpop.permute.xlu0 %3242
        %3244 = vrot.lane.b32.xlu0 %v3237, 3
        %v3245 = vpop.permute.xlu0 %3244
        %3246 = vrot.lane.b32.xlu0 %v3239, 3
        %v3247 = vpop.permute.xlu0 %3246
        %vm3248 = vcmask 23552
        %v3249 = vsel %vm3248, %v3241, %v3243
        %v3250 = vsel %vm3248, %v3245, %v3247
        %v3253 = vmul.f32 %v3216, %v3249
        %v3254 = vmul.f32 %v3217, %v3250
        %v3255 = vmul.f32 %v3218, %v3249
        %v3256 = vmul.f32 %v3219, %v3250
        %v3257 = vmul.f32 %v3220, %v3249
        %v3258 = vmul.f32 %v3221, %v3250
        %v3259 = vmul.f32 %v3222, %v3249
        %v3260 = vmul.f32 %v3223, %v3250
        %s3261 = scalar_lea.vmem %s598, 128 [#allocation16]
        %3262 = vst.msk [vmem:[%s3261] sm:$0xff] %vm634, %v3253
        %3263 = vst.msk [vmem:[%s3261 + $0x8] sm:$0xff] %vm634, %v3254
        %3264 = vst.msk [vmem:[%s3261 + $0x10] sm:$0xff] %vm634, %v3255
        %3265 = vst.msk [vmem:[%s3261 + $0x18] sm:$0xff] %vm634, %v3256
        %3266 = vst.msk [vmem:[%s3261 + $0x20] sm:$0xff] %vm634, %v3257
        %3267 = vst.msk [vmem:[%s3261 + $0x28] sm:$0xff] %vm634, %v3258
        %3268 = vst.msk [vmem:[%s3261 + $0x30] sm:$0xff] %vm634, %v3259
        %3269 = vst.msk [vmem:[%s3261 + $0x38] sm:$0xff] %vm634, %v3260
        %s3270 = sand.u32 %s277, 1
        %s3271 = scalar_lea.sflag [#allocation5], %s3270
        %s3272 = sand.u32 %s277, 1
        %s3273 = smul.addr %s3272, 192
        %s3274 = scalar_lea.vmem [#allocation16], %s3273
        // Predicated region
        $region77: #{tpu_custom_call.1} parent=47 // pred_check
          %p3275 = pneg %p287
        $region78: #{tpu_custom_call.1} parent=47 // pred_check_branch
          %3277 = sbr.rel (%p3275) target = $region80
        $region79: #{tpu_custom_call.1} parent=47 // pred_region
          %s3278 = smul.u32 2, %s39
          %3280 = vsyncadd %s3271, 0
          %s3281 = smul.addr %s38, 24
          %s3282 = sadd.s32 %s3278, %s3281
          %s3283 = smul.addr %s3282, 8
          %s3284 = scalar_lea.hbm %s7, %s3283
          %s3285 = sshll.u32 %s3274, 4
          %s3286 = int_to_ptr.vmem [resolvable:$true] %s3285
          %s3287 = sshll.u32 %s3284, 4
          %s3288 = int_to_ptr.hbm [resolvable:$true] %s3287
          %3293 = dma.vmem_to_hbm [thread:$0]  %s3286, 3072, %s3288, %s3271, 128, 128, 8
        $region80: #{tpu_custom_call.1} parent=47 // pred_fallthru
          _
      $region48: #{tpu_custom_call.1} parent=5 // pred_fallthru
        _
      %p3294 = scmp.le.s32.totalorder 2, %s29
      // Predicated region
      $region81: #{tpu_custom_call.1} parent=5 // pred_check
        %p3295 = pneg %p3294
      $region82: #{tpu_custom_call.1} parent=5 // pred_check_branch
        %3297 = sbr.rel (%p3295) target = $region84
      $region83: #{tpu_custom_call.1} parent=5 // pred_region
        %s3298 = ssub.s32 %s29, 2
        // Predicated region
        $region85: #{tpu_custom_call.1} parent=83 // pred_check
          %p3299 = pneg %p293
        $region86: #{tpu_custom_call.1} parent=83 // pred_check_branch
          %3301 = sbr.rel (%p3299) target = $region88
        $region87: #{tpu_custom_call.1} parent=83 // pred_region
          %s3302 = sand.u32 %s278, 1
          %s3303 = scalar_lea.sflag [#allocation5], %s3302
          %s3304 = sand.u32 %s278, 1
          %s3305 = smul.addr %s3304, 192
          %s3306 = scalar_lea.vmem [#allocation16], %s3305
          %3308 = dma.done %s3303, 3072
        $region88: #{tpu_custom_call.1} parent=83 // pred_fallthru
          _
      $region84: #{tpu_custom_call.1} parent=5 // pred_fallthru
        _
    $region6: #{tpu_custom_call.1} parent=1 // loop_footer
      %s33 = sadd.s32 1, %s29
    $region7: #{tpu_custom_call.1} parent=1 // loop_footer_branch
      %28 = sbr.rel target = $region3
    $region8: #{tpu_custom_call.1} parent=1 // loop_exit
      _
    %3309 = vsyncpa [#allocation4], 1
    %s3310 = scalar_lea.sflag [#allocation4], 1
    %3311 = vsyncpa %s3310, 1
    %3312 = vsyncpa [#allocation9], 1
    %s3313 = scalar_lea.sflag [#allocation9], 1
    %3314 = vsyncpa %s3313, 1
    %3315 = vsyncpa [#allocation12], 1
    %s3316 = scalar_lea.sflag [#allocation12], 1
    %3317 = vsyncpa %s3316, 1
    %3318 = vsyncpa [#allocation15], 1
    %s3319 = scalar_lea.sflag [#allocation15], 1
    %3320 = vsyncpa %s3319, 1
    %3321 = vsyncpa [#allocation5], 1
    %s3322 = scalar_lea.sflag [#allocation5], 1
    %3323 = vsyncpa %s3322, 1
    %3324 = vsyncpa [#allocation6], 1
    %s3325 = scalar_lea.sflag [#allocation6], 1
    %3326 = vsyncpa %s3325, 1

</llo_original>
